<compile_context>
chip_gen: v7x
topology: tpu7x:2x2x1
jax: 0.10.0
libtpu: 0.0.40
codegen_flags: <defaults>
</compile_context>

<pallas_src>
import functools

import jax
import jax.numpy as jnp
from jax import lax
from jax.experimental import pallas as pl
from jax.experimental.pallas import tpu as pltpu

KS = 3
N = KS * KS          # 9 deformable sampling points


def _ceil_to(x, m):
    return ((x + m - 1) // m) * m


def _deform_conv_kernel(C_pad, Hp, Hp_pad, Wp, O, pr_ref, pc_ref, xrows_ref, w2_ref,
                        o_ref, v_ref):
    THW = pr_ref.shape[-1]

    p_r = pr_ref[0]                      # (N, THW) sampling rows (padded-image coords)
    p_c = pc_ref[0]                      # (N, THW) sampling cols
    x_rows = xrows_ref[0]                # (C_pad*Hp_pad, Wp) zero-padded image rows

    max_r = float(Hp - 1)
    max_c = float(Wp - 1)
    fl_r = jnp.floor(p_r)
    fl_c = jnp.floor(p_c)
    q_lt_r = jnp.clip(fl_r, 0.0, max_r)
    q_rb_r = jnp.clip(fl_r + 1.0, 0.0, max_r)
    q_lt_c = jnp.clip(fl_c, 0.0, max_c)
    q_rb_c = jnp.clip(fl_c + 1.0, 0.0, max_c)
    pr = jnp.clip(p_r, 0.0, max_r)
    pc = jnp.clip(p_c, 0.0, max_c)

    # separable bilinear weights: each corner weight factors into (row wt) x (col wt)
    wr_lt = 1.0 + (q_lt_r - pr)
    wr_rb = 1.0 - (q_rb_r - pr)
    wc_lt = 1.0 + (q_lt_c - pc)
    wc_rb = 1.0 - (q_rb_c - pc)

    lt_ri = q_lt_r.astype(jnp.int32)
    rb_ri = q_rb_r.astype(jnp.int32)
    lt_ci = q_lt_c.astype(jnp.int32)
    rb_ci = q_rb_c.astype(jnp.int32)

    cols_iota = lax.broadcasted_iota(jnp.int32, (Wp, THW), 0)
    rows_iota = lax.broadcasted_iota(jnp.int32, (Hp_pad, THW), 0)

    # ---- ONE wide column-gather matmul over all 9 kernel points ----
    gcols = []
    for n in range(N):                   # static unroll; builds (Wp, THW) one-hot columns
        gcols.append(
            jnp.where(cols_iota == lt_ci[n:n + 1, :], wc_lt[n:n + 1, :], 0.0)
            + jnp.where(cols_iota == rb_ci[n:n + 1, :], wc_rb[n:n + 1, :], 0.0))
    gcol_all = jnp.concatenate(gcols, axis=-1)                       # (Wp, 9*THW)
    u_all = jnp.dot(x_rows, gcol_all,
                    preferred_element_type=jnp.float32)              # (C_pad*Hp_pad, 9*THW)

    # ---- row weights at row resolution, sublane reduce, stash into V scratch ----
    for n in range(N):
        u_n = u_all[:, n * THW:(n + 1) * THW].reshape(C_pad, Hp_pad, THW)
        grow = (jnp.where(rows_iota == lt_ri[n:n + 1, :], wr_lt[n:n + 1, :], 0.0)
                + jnp.where(rows_iota == rb_ri[n:n + 1, :], wr_rb[n:n + 1, :], 0.0))
        v_n = jnp.sum(u_n * grow[None, :, :], axis=1)                # (C_pad, THW)
        v_ref[pl.ds(n * C_pad, C_pad), :] = v_n

    # ---- single small matmul: channel mix + sum over the 9 points, then ReLU ----
    out = jnp.dot(w2_ref[...], v_ref[...],
                  preferred_element_type=jnp.float32)                # (O_pad, THW)
    o_ref[0] = jnp.maximum(out[:O], 0.0).astype(o_ref.dtype)


@jax.jit
def encoder3conv_pallas(x, p_w, p_b, c_w):
    """x: (B, C, H, W) NCHW. p_w: (2N, C, 3, 3), p_b: (2N,), c_w: (O, C, 3, 3) (no bias)."""
    B, C, H, W = x.shape
    O = c_w.shape[0]
    HW = H * W
    Hp, Wp = H + 2, W + 2
    C_pad = _ceil_to(C, 8)
    Hp_pad = _ceil_to(Hp, 8)
    O_pad = _ceil_to(O, 8)

    # offset-producing 3x3 conv stays in XLA (per perf review): only its (B, N, HW)
    # row/col sampling positions are streamed into the kernel, not 9x im2col patches.
    offset = lax.conv_general_dilated(
        x, p_w, (1, 1), "SAME",
        dimension_numbers=("NCHW", "OIHW", "NCHW")) + p_b[None, :, None, None]

    pn_r = (jnp.arange(N) // KS - 1).astype(jnp.float32)
    pn_c = (jnp.arange(N) % KS - 1).astype(jnp.float32)
    hs, ws = jnp.meshgrid(jnp.arange(H, dtype=jnp.float32),
                          jnp.arange(W, dtype=jnp.float32), indexing="ij")
    base_r = pn_r[:, None] + hs.reshape(1, HW) + 1.0                 # (N, HW) padded coords
    base_c = pn_c[:, None] + ws.reshape(1, HW) + 1.0
    p_r = base_r[None] + offset[:, :N].reshape(B, N, HW)             # (B, N, HW)
    p_c = base_c[None] + offset[:, N:].reshape(B, N, HW)

    # zero-padded image, per-channel rows stacked on sublanes; C and Hp padded to x8
    xp = jnp.pad(x, ((0, 0), (0, C_pad - C), (1, 1 + Hp_pad - Hp), (1, 1)))
    x_rows = xp.reshape(B, C_pad * Hp_pad, Wp)                       # (B, C_pad*Hp_pad, Wp)

    # un-expanded main conv weight: w2e[o, n*C_pad + c] = c_w[o, c, n//3, n%3]
    w2 = jnp.transpose(c_w.reshape(O, C, N), (0, 2, 1)).astype(jnp.float32)   # (O, 9, C)
    w2p = jnp.zeros((O_pad, N, C_pad), jnp.float32).at[:O, :, :C].set(w2)
    w2e = w2p.reshape(O_pad, N * C_pad)

    # ---- lane tile over HW: largest multiple-of-128 divisor fitting the VMEM budget ----
    cands = [c for c in (2048, 1024, 512, 384, 256, 128) if c <= HW and HW % c == 0]
    if not cands:
        cands = [HW]

    def vmem_est(thw):
        words = (
            2 * 2 * N * thw                          # p_r / p_c blocks (double-buffered)
            + 2 * O_pad * thw                        # output block (double-buffered)
            + 2 * C_pad * Hp_pad * max(Wp, 128)      # x_rows block
            + 2 * O_pad * N * C_pad                  # w2e
            + N * C_pad * thw                        # V scratch
            + C_pad * Hp_pad * N * thw               # u_all (wide gather result)
            + _ceil_to(Wp, 8) * N * thw              # Gcol_all
            + 16 * N * thw                           # live position / weight temporaries
        )
        return 4 * words

    budget = 24 * 1024 * 1024
    THW = next((c for c in cands if vmem_est(c) <= budget), cands[-1])
    # keep >= 2 total grid tiles so both TensorCores of a dual-core chip get work
    if B * (HW // THW) < 2:
        smaller = [c for c in cands if c < THW]
        if smaller:
            THW = smaller[0]
    n_t = HW // THW

    est = vmem_est(THW)
    cp_kwargs = dict(dimension_semantics=("parallel", "parallel"))
    if est > 12 * 1024 * 1024:   # only override the default scoped limit when needed
        cp_kwargs["vmem_limit_bytes"] = int(min(2 * est, 60 * 1024 * 1024))

    kernel = functools.partial(_deform_conv_kernel, C_pad, Hp, Hp_pad, Wp, O)
    out = pl.pallas_call(
        kernel,
        out_shape=jax.ShapeDtypeStruct((B, O, HW), jnp.float32),
        grid_spec=pltpu.PrefetchScalarGridSpec(
            num_scalar_prefetch=0,
            grid=(B, n_t),
            in_specs=[
                pl.BlockSpec((1, N, THW), lambda b, t: (b, 0, t)),               # p_r
                pl.BlockSpec((1, N, THW), lambda b, t: (b, 0, t)),               # p_c
                pl.BlockSpec((1, C_pad * Hp_pad, Wp), lambda b, t: (b, 0, 0)),   # x_rows
                pl.BlockSpec((O_pad, N * C_pad), lambda b, t: (0, 0)),           # w2e
            ],
            out_specs=pl.BlockSpec((1, O, THW), lambda b, t: (b, 0, t)),
            scratch_shapes=[pltpu.VMEM((N * C_pad, THW), jnp.float32)],
        ),
        compiler_params=pltpu.CompilerParams(**cp_kwargs),
    )(p_r, p_c, x_rows, w2e)

    return out.reshape(B, O, H, W)   # already NCHW-ordered


def ref_encoder3conv(x, p_w, p_b, c_w):
    """Pure-JAX transliteration of DeformConv2d.forward + ReLU (for verification)."""
    B, C, H, W = x.shape
    O = c_w.shape[0]
    Hp, Wp = H + 2, W + 2

    offset = lax.conv_general_dilated(
        x, p_w, (1, 1), "SAME",
        dimension_numbers=("NCHW", "OIHW", "NCHW")) + p_b[None, :, None, None]
    xp = jnp.pad(x, ((0, 0), (0, 0), (1, 1), (1, 1)))

    off_r = offset[:, :N].transpose(0, 2, 3, 1)  # (B,H,W,N)
    off_c = offset[:, N:].transpose(0, 2, 3, 1)
    pn_r = (jnp.arange(N) // KS - 1).astype(jnp.float32)
    pn_c = (jnp.arange(N) % KS - 1).astype(jnp.float32)
    p0_r = jnp.arange(1, H + 1, dtype=jnp.float32)[None, :, None, None]
    p0_c = jnp.arange(1, W + 1, dtype=jnp.float32)[None, None, :, None]
    p_r = p0_r + pn_r[None, None, None, :] + off_r
    p_c = p0_c + pn_c[None, None, None, :] + off_c

    fl_r, fl_c = jnp.floor(p_r), jnp.floor(p_c)
    q_lt_r = jnp.clip(fl_r, 0, Hp - 1)
    q_lt_c = jnp.clip(fl_c, 0, Wp - 1)
    q_rb_r = jnp.clip(fl_r + 1, 0, Hp - 1)
    q_rb_c = jnp.clip(fl_c + 1, 0, Wp - 1)
    pr = jnp.clip(p_r, 0, Hp - 1)
    pc = jnp.clip(p_c, 0, Wp - 1)

    g_lt = (1 + (q_lt_r - pr)) * (1 + (q_lt_c - pc))
    g_rb = (1 - (q_rb_r - pr)) * (1 - (q_rb_c - pc))
    g_lb = (1 + (q_lt_r - pr)) * (1 - (q_rb_c - pc))
    g_rt = (1 - (q_rb_r - pr)) * (1 + (q_lt_c - pc))

    xflat = xp.reshape(B, C, Hp * Wp)

    def gather(qr, qc):
        idx = (qr * Wp + qc).astype(jnp.int32).reshape(B, 1, -1)
        idx = jnp.broadcast_to(idx, (B, C, idx.shape[-1]))
        return jnp.take_along_axis(xflat, idx, axis=2).reshape(B, C, H, W, N)

    x_lt, x_rb = gather(q_lt_r, q_lt_c), gather(q_rb_r, q_rb_c)
    x_lb, x_rt = gather(q_lt_r, q_rb_c), gather(q_rb_r, q_lt_c)
    x_off = (g_lt[:, None] * x_lt + g_rb[:, None] * x_rb
             + g_lb[:, None] * x_lb + g_rt[:, None] * x_rt)  # (B,C,H,W,N)

    w2 = c_w.reshape(O, C, N)
    out = jnp.einsum("ocn,bchwn->bohw", w2, x_off)
    return jnp.maximum(out, 0.0)


if __name__ == "__main__":
    key = jax.random.PRNGKey(0)
    k1, k2, k3, k4 = jax.random.split(key, 4)
    B, C_in, C_out, H, W = 2, 4, 8, 16, 16

    x = jax.random.normal(k1, (B, C_in, H, W), jnp.float32)
    # DeformConv2d params. NOTE: the module inits p_conv.weight to 0; here we use small
    # deterministic random values so the offset / bilinear-sampling path is exercised.
    p_w = 0.1 * jax.random.normal(k2, (2 * N, C_in, KS, KS), jnp.float32)
    p_b = 0.3 * jax.random.normal(k3, (2 * N,), jnp.float32)
    c_w = 0.2 * jax.random.normal(k4, (C_out, C_in, KS, KS), jnp.float32)  # main conv, no bias

    out = encoder3conv_pallas(x, p_w, p_b, c_w)
    out = jax.block_until_ready(out)

    ref = ref_encoder3conv(x, p_w, p_b, c_w)
    assert out.shape == (B, C_out, H, W)
    err = float(jnp.max(jnp.abs(out - ref)))
    if err > 2e-3:
        raise AssertionError(f"Pallas output mismatch vs JAX reference, max abs err={err}")
    print("KERNEL_OK")
</pallas_src>

<mosaic_0001>
module attributes {stable_mosaic.version = 11 : i64} {
  func.func @_deform_conv_kernel(%arg0: i32, %arg1: i32, %arg2: memref<1x9x256xf32, #tpu.memory_space<vmem>>, %arg3: memref<1x9x256xf32, #tpu.memory_space<vmem>>, %arg4: memref<1x192x18xf32, #tpu.memory_space<vmem>>, %arg5: memref<8x72xf32, #tpu.memory_space<vmem>>, %arg6: memref<1x8x256xf32, #tpu.memory_space<vmem>>, %arg7: memref<72x256xf32, #tpu.memory_space<vmem>>) attributes {dimension_semantics = [#tpu.dimension_semantics<parallel>, #tpu.dimension_semantics<parallel>], iteration_bounds = array<i64: 2, 1>, scalar_prefetch = 0 : i64, scratch_operands = 1 : i64, tpu.core_type = #tpu.core_type<tc>, window_params = [{transform_indices = @transform_0, window_bounds = array<i64: 1, 9, 256>}, {transform_indices = @transform_1, window_bounds = array<i64: 1, 9, 256>}, {transform_indices = @transform_2, window_bounds = array<i64: 1, 192, 18>}, {pipeline_mode = #tpu.pipeline_mode<synchronous>, transform_indices = @transform_3, window_bounds = array<i64: 8, 72>}, {transform_indices = @transform_4, window_bounds = array<i64: 1, 8, 256>}]} {
    %c0 = arith.constant 0 : index
    %c0_0 = arith.constant 0 : index
    %c0_1 = arith.constant 0 : index
    %0 = vector.load %arg2[%c0, %c0_0, %c0_1] : memref<1x9x256xf32, #tpu.memory_space<vmem>>, vector<1x9x256xf32>
    %1 = vector.shape_cast %0 : vector<1x9x256xf32> to vector<9x256xf32>
    %c0_2 = arith.constant 0 : index
    %c0_3 = arith.constant 0 : index
    %c0_4 = arith.constant 0 : index
    %2 = vector.load %arg3[%c0_2, %c0_3, %c0_4] : memref<1x9x256xf32, #tpu.memory_space<vmem>>, vector<1x9x256xf32>
    %3 = vector.shape_cast %2 : vector<1x9x256xf32> to vector<9x256xf32>
    %c0_5 = arith.constant 0 : index
    %c0_6 = arith.constant 0 : index
    %c0_7 = arith.constant 0 : index
    %4 = vector.load %arg4[%c0_5, %c0_6, %c0_7] : memref<1x192x18xf32, #tpu.memory_space<vmem>>, vector<1x192x18xf32>
    %5 = vector.shape_cast %4 : vector<1x192x18xf32> to vector<192x18xf32>
    %6 = math.floor %1 : vector<9x256xf32>
    %7 = math.floor %3 : vector<9x256xf32>
    %cst = arith.constant 0.000000e+00 : f32
    %cst_8 = arith.constant 1.700000e+01 : f32
    %8 = vector.broadcast %cst : f32 to vector<9x256xf32>
    %9 = arith.maximumf %8, %6 : vector<9x256xf32>
    %10 = vector.broadcast %cst_8 : f32 to vector<9x256xf32>
    %11 = arith.minimumf %10, %9 : vector<9x256xf32>
    %cst_9 = arith.constant 1.000000e+00 : f32
    %12 = vector.broadcast %cst_9 : f32 to vector<9x256xf32>
    %13 = arith.addf %6, %12 : vector<9x256xf32>
    %cst_10 = arith.constant 0.000000e+00 : f32
    %cst_11 = arith.constant 1.700000e+01 : f32
    %14 = vector.broadcast %cst_10 : f32 to vector<9x256xf32>
    %15 = arith.maximumf %14, %13 : vector<9x256xf32>
    %16 = vector.broadcast %cst_11 : f32 to vector<9x256xf32>
    %17 = arith.minimumf %16, %15 : vector<9x256xf32>
    %cst_12 = arith.constant 0.000000e+00 : f32
    %cst_13 = arith.constant 1.700000e+01 : f32
    %18 = vector.broadcast %cst_12 : f32 to vector<9x256xf32>
    %19 = arith.maximumf %18, %7 : vector<9x256xf32>
    %20 = vector.broadcast %cst_13 : f32 to vector<9x256xf32>
    %21 = arith.minimumf %20, %19 : vector<9x256xf32>
    %cst_14 = arith.constant 1.000000e+00 : f32
    %22 = vector.broadcast %cst_14 : f32 to vector<9x256xf32>
    %23 = arith.addf %7, %22 : vector<9x256xf32>
    %cst_15 = arith.constant 0.000000e+00 : f32
    %cst_16 = arith.constant 1.700000e+01 : f32
    %24 = vector.broadcast %cst_15 : f32 to vector<9x256xf32>
    %25 = arith.maximumf %24, %23 : vector<9x256xf32>
    %26 = vector.broadcast %cst_16 : f32 to vector<9x256xf32>
    %27 = arith.minimumf %26, %25 : vector<9x256xf32>
    %cst_17 = arith.constant 0.000000e+00 : f32
    %cst_18 = arith.constant 1.700000e+01 : f32
    %28 = vector.broadcast %cst_17 : f32 to vector<9x256xf32>
    %29 = arith.maximumf %28, %1 : vector<9x256xf32>
    %30 = vector.broadcast %cst_18 : f32 to vector<9x256xf32>
    %31 = arith.minimumf %30, %29 : vector<9x256xf32>
    %cst_19 = arith.constant 0.000000e+00 : f32
    %cst_20 = arith.constant 1.700000e+01 : f32
    %32 = vector.broadcast %cst_19 : f32 to vector<9x256xf32>
    %33 = arith.maximumf %32, %3 : vector<9x256xf32>
    %34 = vector.broadcast %cst_20 : f32 to vector<9x256xf32>
    %35 = arith.minimumf %34, %33 : vector<9x256xf32>
    %36 = arith.subf %11, %31 : vector<9x256xf32>
    %cst_21 = arith.constant 1.000000e+00 : f32
    %37 = vector.broadcast %cst_21 : f32 to vector<9x256xf32>
    %38 = arith.addf %37, %36 : vector<9x256xf32>
    %39 = arith.subf %17, %31 : vector<9x256xf32>
    %cst_22 = arith.constant 1.000000e+00 : f32
    %40 = vector.broadcast %cst_22 : f32 to vector<9x256xf32>
    %41 = arith.subf %40, %39 : vector<9x256xf32>
    %42 = arith.subf %21, %35 : vector<9x256xf32>
    %cst_23 = arith.constant 1.000000e+00 : f32
    %43 = vector.broadcast %cst_23 : f32 to vector<9x256xf32>
    %44 = arith.addf %43, %42 : vector<9x256xf32>
    %45 = arith.subf %27, %35 : vector<9x256xf32>
    %cst_24 = arith.constant 1.000000e+00 : f32
    %46 = vector.broadcast %cst_24 : f32 to vector<9x256xf32>
    %47 = arith.subf %46, %45 : vector<9x256xf32>
    %48 = arith.fptosi %11 : vector<9x256xf32> to vector<9x256xi32>
    %49 = arith.fptosi %17 : vector<9x256xf32> to vector<9x256xi32>
    %50 = arith.fptosi %21 : vector<9x256xf32> to vector<9x256xi32>
    %51 = arith.fptosi %27 : vector<9x256xf32> to vector<9x256xi32>
    %52 = tpu.iota {dimensions = array<i32: 0>} : vector<18x256xi32>
    %53 = tpu.iota {dimensions = array<i32: 0>} : vector<24x256xi32>
    %54 = vector.extract_strided_slice %50 {offsets = [0, 0], sizes = [1, 256], strides = [1, 1]} : vector<9x256xi32> to vector<1x256xi32>
    %55 = vector.broadcast %54 : vector<1x256xi32> to vector<18x256xi32>
    %56 = arith.cmpi eq, %52, %55 : vector<18x256xi32>
    %57 = vector.extract_strided_slice %44 {offsets = [0, 0], sizes = [1, 256], strides = [1, 1]} : vector<9x256xf32> to vector<1x256xf32>
    %cst_25 = arith.constant 0.000000e+00 : f32
    %58 = vector.shape_cast %57 : vector<1x256xf32> to vector<1x256xf32>
    %59 = vector.broadcast %58 : vector<1x256xf32> to vector<18x256xf32>
    %60 = vector.broadcast %cst_25 : f32 to vector<18x256xf32>
    %61 = arith.select %56, %59, %60 : vector<18x256xi1>, vector<18x256xf32>
    %62 = vector.extract_strided_slice %51 {offsets = [0, 0], sizes = [1, 256], strides = [1, 1]} : vector<9x256xi32> to vector<1x256xi32>
    %63 = vector.broadcast %62 : vector<1x256xi32> to vector<18x256xi32>
    %64 = arith.cmpi eq, %52, %63 : vector<18x256xi32>
    %65 = vector.extract_strided_slice %47 {offsets = [0, 0], sizes = [1, 256], strides = [1, 1]} : vector<9x256xf32> to vector<1x256xf32>
    %cst_26 = arith.constant 0.000000e+00 : f32
    %66 = vector.shape_cast %65 : vector<1x256xf32> to vector<1x256xf32>
    %67 = vector.broadcast %66 : vector<1x256xf32> to vector<18x256xf32>
    %68 = vector.broadcast %cst_26 : f32 to vector<18x256xf32>
    %69 = arith.select %64, %67, %68 : vector<18x256xi1>, vector<18x256xf32>
    %70 = arith.addf %61, %69 : vector<18x256xf32>
    %71 = vector.extract_strided_slice %50 {offsets = [1, 0], sizes = [1, 256], strides = [1, 1]} : vector<9x256xi32> to vector<1x256xi32>
    %72 = vector.broadcast %71 : vector<1x256xi32> to vector<18x256xi32>
    %73 = arith.cmpi eq, %52, %72 : vector<18x256xi32>
    %74 = vector.extract_strided_slice %44 {offsets = [1, 0], sizes = [1, 256], strides = [1, 1]} : vector<9x256xf32> to vector<1x256xf32>
    %cst_27 = arith.constant 0.000000e+00 : f32
    %75 = vector.shape_cast %74 : vector<1x256xf32> to vector<1x256xf32>
    %76 = vector.broadcast %75 : vector<1x256xf32> to vector<18x256xf32>
    %77 = vector.broadcast %cst_27 : f32 to vector<18x256xf32>
    %78 = arith.select %73, %76, %77 : vector<18x256xi1>, vector<18x256xf32>
    %79 = vector.extract_strided_slice %51 {offsets = [1, 0], sizes = [1, 256], strides = [1, 1]} : vector<9x256xi32> to vector<1x256xi32>
    %80 = vector.broadcast %79 : vector<1x256xi32> to vector<18x256xi32>
    %81 = arith.cmpi eq, %52, %80 : vector<18x256xi32>
    %82 = vector.extract_strided_slice %47 {offsets = [1, 0], sizes = [1, 256], strides = [1, 1]} : vector<9x256xf32> to vector<1x256xf32>
    %cst_28 = arith.constant 0.000000e+00 : f32
    %83 = vector.shape_cast %82 : vector<1x256xf32> to vector<1x256xf32>
    %84 = vector.broadcast %83 : vector<1x256xf32> to vector<18x256xf32>
    %85 = vector.broadcast %cst_28 : f32 to vector<18x256xf32>
    %86 = arith.select %81, %84, %85 : vector<18x256xi1>, vector<18x256xf32>
    %87 = arith.addf %78, %86 : vector<18x256xf32>
    %88 = vector.extract_strided_slice %50 {offsets = [2, 0], sizes = [1, 256], strides = [1, 1]} : vector<9x256xi32> to vector<1x256xi32>
    %89 = vector.broadcast %88 : vector<1x256xi32> to vector<18x256xi32>
    %90 = arith.cmpi eq, %52, %89 : vector<18x256xi32>
    %91 = vector.extract_strided_slice %44 {offsets = [2, 0], sizes = [1, 256], strides = [1, 1]} : vector<9x256xf32> to vector<1x256xf32>
    %cst_29 = arith.constant 0.000000e+00 : f32
    %92 = vector.shape_cast %91 : vector<1x256xf32> to vector<1x256xf32>
    %93 = vector.broadcast %92 : vector<1x256xf32> to vector<18x256xf32>
    %94 = vector.broadcast %cst_29 : f32 to vector<18x256xf32>
    %95 = arith.select %90, %93, %94 : vector<18x256xi1>, vector<18x256xf32>
    %96 = vector.extract_strided_slice %51 {offsets = [2, 0], sizes = [1, 256], strides = [1, 1]} : vector<9x256xi32> to vector<1x256xi32>
    %97 = vector.broadcast %96 : vector<1x256xi32> to vector<18x256xi32>
    %98 = arith.cmpi eq, %52, %97 : vector<18x256xi32>
    %99 = vector.extract_strided_slice %47 {offsets = [2, 0], sizes = [1, 256], strides = [1, 1]} : vector<9x256xf32> to vector<1x256xf32>
    %cst_30 = arith.constant 0.000000e+00 : f32
    %100 = vector.shape_cast %99 : vector<1x256xf32> to vector<1x256xf32>
    %101 = vector.broadcast %100 : vector<1x256xf32> to vector<18x256xf32>
    %102 = vector.broadcast %cst_30 : f32 to vector<18x256xf32>
    %103 = arith.select %98, %101, %102 : vector<18x256xi1>, vector<18x256xf32>
    %104 = arith.addf %95, %103 : vector<18x256xf32>
    %105 = vector.extract_strided_slice %50 {offsets = [3, 0], sizes = [1, 256], strides = [1, 1]} : vector<9x256xi32> to vector<1x256xi32>
    %106 = vector.broadcast %105 : vector<1x256xi32> to vector<18x256xi32>
    %107 = arith.cmpi eq, %52, %106 : vector<18x256xi32>
    %108 = vector.extract_strided_slice %44 {offsets = [3, 0], sizes = [1, 256], strides = [1, 1]} : vector<9x256xf32> to vector<1x256xf32>
    %cst_31 = arith.constant 0.000000e+00 : f32
    %109 = vector.shape_cast %108 : vector<1x256xf32> to vector<1x256xf32>
    %110 = vector.broadcast %109 : vector<1x256xf32> to vector<18x256xf32>
    %111 = vector.broadcast %cst_31 : f32 to vector<18x256xf32>
    %112 = arith.select %107, %110, %111 : vector<18x256xi1>, vector<18x256xf32>
    %113 = vector.extract_strided_slice %51 {offsets = [3, 0], sizes = [1, 256], strides = [1, 1]} : vector<9x256xi32> to vector<1x256xi32>
    %114 = vector.broadcast %113 : vector<1x256xi32> to vector<18x256xi32>
    %115 = arith.cmpi eq, %52, %114 : vector<18x256xi32>
    %116 = vector.extract_strided_slice %47 {offsets = [3, 0], sizes = [1, 256], strides = [1, 1]} : vector<9x256xf32> to vector<1x256xf32>
    %cst_32 = arith.constant 0.000000e+00 : f32
    %117 = vector.shape_cast %116 : vector<1x256xf32> to vector<1x256xf32>
    %118 = vector.broadcast %117 : vector<1x256xf32> to vector<18x256xf32>
    %119 = vector.broadcast %cst_32 : f32 to vector<18x256xf32>
    %120 = arith.select %115, %118, %119 : vector<18x256xi1>, vector<18x256xf32>
    %121 = arith.addf %112, %120 : vector<18x256xf32>
    %122 = vector.extract_strided_slice %50 {offsets = [4, 0], sizes = [1, 256], strides = [1, 1]} : vector<9x256xi32> to vector<1x256xi32>
    %123 = vector.broadcast %122 : vector<1x256xi32> to vector<18x256xi32>
    %124 = arith.cmpi eq, %52, %123 : vector<18x256xi32>
    %125 = vector.extract_strided_slice %44 {offsets = [4, 0], sizes = [1, 256], strides = [1, 1]} : vector<9x256xf32> to vector<1x256xf32>
    %cst_33 = arith.constant 0.000000e+00 : f32
    %126 = vector.shape_cast %125 : vector<1x256xf32> to vector<1x256xf32>
    %127 = vector.broadcast %126 : vector<1x256xf32> to vector<18x256xf32>
    %128 = vector.broadcast %cst_33 : f32 to vector<18x256xf32>
    %129 = arith.select %124, %127, %128 : vector<18x256xi1>, vector<18x256xf32>
    %130 = vector.extract_strided_slice %51 {offsets = [4, 0], sizes = [1, 256], strides = [1, 1]} : vector<9x256xi32> to vector<1x256xi32>
    %131 = vector.broadcast %130 : vector<1x256xi32> to vector<18x256xi32>
    %132 = arith.cmpi eq, %52, %131 : vector<18x256xi32>
    %133 = vector.extract_strided_slice %47 {offsets = [4, 0], sizes = [1, 256], strides = [1, 1]} : vector<9x256xf32> to vector<1x256xf32>
    %cst_34 = arith.constant 0.000000e+00 : f32
    %134 = vector.shape_cast %133 : vector<1x256xf32> to vector<1x256xf32>
    %135 = vector.broadcast %134 : vector<1x256xf32> to vector<18x256xf32>
    %136 = vector.broadcast %cst_34 : f32 to vector<18x256xf32>
    %137 = arith.select %132, %135, %136 : vector<18x256xi1>, vector<18x256xf32>
    %138 = arith.addf %129, %137 : vector<18x256xf32>
    %139 = vector.extract_strided_slice %50 {offsets = [5, 0], sizes = [1, 256], strides = [1, 1]} : vector<9x256xi32> to vector<1x256xi32>
    %140 = vector.broadcast %139 : vector<1x256xi32> to vector<18x256xi32>
    %141 = arith.cmpi eq, %52, %140 : vector<18x256xi32>
    %142 = vector.extract_strided_slice %44 {offsets = [5, 0], sizes = [1, 256], strides = [1, 1]} : vector<9x256xf32> to vector<1x256xf32>
    %cst_35 = arith.constant 0.000000e+00 : f32
    %143 = vector.shape_cast %142 : vector<1x256xf32> to vector<1x256xf32>
    %144 = vector.broadcast %143 : vector<1x256xf32> to vector<18x256xf32>
    %145 = vector.broadcast %cst_35 : f32 to vector<18x256xf32>
    %146 = arith.select %141, %144, %145 : vector<18x256xi1>, vector<18x256xf32>
    %147 = vector.extract_strided_slice %51 {offsets = [5, 0], sizes = [1, 256], strides = [1, 1]} : vector<9x256xi32> to vector<1x256xi32>
    %148 = vector.broadcast %147 : vector<1x256xi32> to vector<18x256xi32>
    %149 = arith.cmpi eq, %52, %148 : vector<18x256xi32>
    %150 = vector.extract_strided_slice %47 {offsets = [5, 0], sizes = [1, 256], strides = [1, 1]} : vector<9x256xf32> to vector<1x256xf32>
    %cst_36 = arith.constant 0.000000e+00 : f32
    %151 = vector.shape_cast %150 : vector<1x256xf32> to vector<1x256xf32>
    %152 = vector.broadcast %151 : vector<1x256xf32> to vector<18x256xf32>
    %153 = vector.broadcast %cst_36 : f32 to vector<18x256xf32>
    %154 = arith.select %149, %152, %153 : vector<18x256xi1>, vector<18x256xf32>
    %155 = arith.addf %146, %154 : vector<18x256xf32>
    %156 = vector.extract_strided_slice %50 {offsets = [6, 0], sizes = [1, 256], strides = [1, 1]} : vector<9x256xi32> to vector<1x256xi32>
    %157 = vector.broadcast %156 : vector<1x256xi32> to vector<18x256xi32>
    %158 = arith.cmpi eq, %52, %157 : vector<18x256xi32>
    %159 = vector.extract_strided_slice %44 {offsets = [6, 0], sizes = [1, 256], strides = [1, 1]} : vector<9x256xf32> to vector<1x256xf32>
    %cst_37 = arith.constant 0.000000e+00 : f32
    %160 = vector.shape_cast %159 : vector<1x256xf32> to vector<1x256xf32>
    %161 = vector.broadcast %160 : vector<1x256xf32> to vector<18x256xf32>
    %162 = vector.broadcast %cst_37 : f32 to vector<18x256xf32>
    %163 = arith.select %158, %161, %162 : vector<18x256xi1>, vector<18x256xf32>
    %164 = vector.extract_strided_slice %51 {offsets = [6, 0], sizes = [1, 256], strides = [1, 1]} : vector<9x256xi32> to vector<1x256xi32>
    %165 = vector.broadcast %164 : vector<1x256xi32> to vector<18x256xi32>
    %166 = arith.cmpi eq, %52, %165 : vector<18x256xi32>
    %167 = vector.extract_strided_slice %47 {offsets = [6, 0], sizes = [1, 256], strides = [1, 1]} : vector<9x256xf32> to vector<1x256xf32>
    %cst_38 = arith.constant 0.000000e+00 : f32
    %168 = vector.shape_cast %167 : vector<1x256xf32> to vector<1x256xf32>
    %169 = vector.broadcast %168 : vector<1x256xf32> to vector<18x256xf32>
    %170 = vector.broadcast %cst_38 : f32 to vector<18x256xf32>
    %171 = arith.select %166, %169, %170 : vector<18x256xi1>, vector<18x256xf32>
    %172 = arith.addf %163, %171 : vector<18x256xf32>
    %173 = vector.extract_strided_slice %50 {offsets = [7, 0], sizes = [1, 256], strides = [1, 1]} : vector<9x256xi32> to vector<1x256xi32>
    %174 = vector.broadcast %173 : vector<1x256xi32> to vector<18x256xi32>
    %175 = arith.cmpi eq, %52, %174 : vector<18x256xi32>
    %176 = vector.extract_strided_slice %44 {offsets = [7, 0], sizes = [1, 256], strides = [1, 1]} : vector<9x256xf32> to vector<1x256xf32>
    %cst_39 = arith.constant 0.000000e+00 : f32
    %177 = vector.shape_cast %176 : vector<1x256xf32> to vector<1x256xf32>
    %178 = vector.broadcast %177 : vector<1x256xf32> to vector<18x256xf32>
    %179 = vector.broadcast %cst_39 : f32 to vector<18x256xf32>
    %180 = arith.select %175, %178, %179 : vector<18x256xi1>, vector<18x256xf32>
    %181 = vector.extract_strided_slice %51 {offsets = [7, 0], sizes = [1, 256], strides = [1, 1]} : vector<9x256xi32> to vector<1x256xi32>
    %182 = vector.broadcast %181 : vector<1x256xi32> to vector<18x256xi32>
    %183 = arith.cmpi eq, %52, %182 : vector<18x256xi32>
    %184 = vector.extract_strided_slice %47 {offsets = [7, 0], sizes = [1, 256], strides = [1, 1]} : vector<9x256xf32> to vector<1x256xf32>
    %cst_40 = arith.constant 0.000000e+00 : f32
    %185 = vector.shape_cast %184 : vector<1x256xf32> to vector<1x256xf32>
    %186 = vector.broadcast %185 : vector<1x256xf32> to vector<18x256xf32>
    %187 = vector.broadcast %cst_40 : f32 to vector<18x256xf32>
    %188 = arith.select %183, %186, %187 : vector<18x256xi1>, vector<18x256xf32>
    %189 = arith.addf %180, %188 : vector<18x256xf32>
    %190 = vector.extract_strided_slice %50 {offsets = [8, 0], sizes = [1, 256], strides = [1, 1]} : vector<9x256xi32> to vector<1x256xi32>
    %191 = vector.broadcast %190 : vector<1x256xi32> to vector<18x256xi32>
    %192 = arith.cmpi eq, %52, %191 : vector<18x256xi32>
    %193 = vector.extract_strided_slice %44 {offsets = [8, 0], sizes = [1, 256], strides = [1, 1]} : vector<9x256xf32> to vector<1x256xf32>
    %cst_41 = arith.constant 0.000000e+00 : f32
    %194 = vector.shape_cast %193 : vector<1x256xf32> to vector<1x256xf32>
    %195 = vector.broadcast %194 : vector<1x256xf32> to vector<18x256xf32>
    %196 = vector.broadcast %cst_41 : f32 to vector<18x256xf32>
    %197 = arith.select %192, %195, %196 : vector<18x256xi1>, vector<18x256xf32>
    %198 = vector.extract_strided_slice %51 {offsets = [8, 0], sizes = [1, 256], strides = [1, 1]} : vector<9x256xi32> to vector<1x256xi32>
    %199 = vector.broadcast %198 : vector<1x256xi32> to vector<18x256xi32>
    %200 = arith.cmpi eq, %52, %199 : vector<18x256xi32>
    %201 = vector.extract_strided_slice %47 {offsets = [8, 0], sizes = [1, 256], strides = [1, 1]} : vector<9x256xf32> to vector<1x256xf32>
    %cst_42 = arith.constant 0.000000e+00 : f32
    %202 = vector.shape_cast %201 : vector<1x256xf32> to vector<1x256xf32>
    %203 = vector.broadcast %202 : vector<1x256xf32> to vector<18x256xf32>
    %204 = vector.broadcast %cst_42 : f32 to vector<18x256xf32>
    %205 = arith.select %200, %203, %204 : vector<18x256xi1>, vector<18x256xf32>
    %206 = arith.addf %197, %205 : vector<18x256xf32>
    %207 = tpu.concatenate %70, %87, %104, %121, %138, %155, %172, %189, %206 in 1 : vector<18x256xf32>, vector<18x256xf32>, vector<18x256xf32>, vector<18x256xf32>, vector<18x256xf32>, vector<18x256xf32>, vector<18x256xf32>, vector<18x256xf32>, vector<18x256xf32> -> vector<18x2304xf32>
    %cst_43 = arith.constant dense<0.000000e+00> : vector<192x2304xf32>
    %208 = tpu.matmul %5, %207, %cst_43 {dimension_numbers = #tpu.dot_dimension_numbers<[1], [0], [0], [1], [0, 0, 1, 1], [], []>} : vector<192x18xf32>, vector<18x2304xf32>, vector<192x2304xf32> -> vector<192x2304xf32>
    %209 = vector.extract_strided_slice %208 {offsets = [0, 0], sizes = [192, 256], strides = [1, 1]} : vector<192x2304xf32> to vector<192x256xf32>
    %210 = vector.shape_cast %209 : vector<192x256xf32> to vector<8x24x256xf32>
    %211 = vector.extract_strided_slice %48 {offsets = [0, 0], sizes = [1, 256], strides = [1, 1]} : vector<9x256xi32> to vector<1x256xi32>
    %212 = vector.broadcast %211 : vector<1x256xi32> to vector<24x256xi32>
    %213 = arith.cmpi eq, %53, %212 : vector<24x256xi32>
    %214 = vector.extract_strided_slice %38 {offsets = [0, 0], sizes = [1, 256], strides = [1, 1]} : vector<9x256xf32> to vector<1x256xf32>
    %cst_44 = arith.constant 0.000000e+00 : f32
    %215 = vector.shape_cast %214 : vector<1x256xf32> to vector<1x256xf32>
    %216 = vector.broadcast %215 : vector<1x256xf32> to vector<24x256xf32>
    %217 = vector.broadcast %cst_44 : f32 to vector<24x256xf32>
    %218 = arith.select %213, %216, %217 : vector<24x256xi1>, vector<24x256xf32>
    %219 = vector.extract_strided_slice %49 {offsets = [0, 0], sizes = [1, 256], strides = [1, 1]} : vector<9x256xi32> to vector<1x256xi32>
    %220 = vector.broadcast %219 : vector<1x256xi32> to vector<24x256xi32>
    %221 = arith.cmpi eq, %53, %220 : vector<24x256xi32>
    %222 = vector.extract_strided_slice %41 {offsets = [0, 0], sizes = [1, 256], strides = [1, 1]} : vector<9x256xf32> to vector<1x256xf32>
    %cst_45 = arith.constant 0.000000e+00 : f32
    %223 = vector.shape_cast %222 : vector<1x256xf32> to vector<1x256xf32>
    %224 = vector.broadcast %223 : vector<1x256xf32> to vector<24x256xf32>
    %225 = vector.broadcast %cst_45 : f32 to vector<24x256xf32>
    %226 = arith.select %221, %224, %225 : vector<24x256xi1>, vector<24x256xf32>
    %227 = arith.addf %218, %226 : vector<24x256xf32>
    %228 = vector.shape_cast %227 : vector<24x256xf32> to vector<1x24x256xf32>
    %229 = vector.broadcast %228 : vector<1x24x256xf32> to vector<8x24x256xf32>
    %230 = arith.mulf %210, %229 : vector<8x24x256xf32>
    %cst_46 = arith.constant dense<0.000000e+00> : vector<8x256xf32>
    %231 = vector.multi_reduction <add>, %230, %cst_46 [1] : vector<8x24x256xf32> to vector<8x256xf32>
    %c0_47 = arith.constant 0 : index
    %c0_48 = arith.constant 0 : index
    %232 = vector.load %arg7[%c0_47, %c0_48] : memref<72x256xf32, #tpu.memory_space<vmem>>, vector<8x256xf32>
    tpu.vector_store %arg7[%c0_47, %c0_48], %231 {strides = array<i32>} : memref<72x256xf32, #tpu.memory_space<vmem>>, vector<8x256xf32>,
    %233 = vector.extract_strided_slice %208 {offsets = [0, 256], sizes = [192, 256], strides = [1, 1]} : vector<192x2304xf32> to vector<192x256xf32>
    %234 = vector.shape_cast %233 : vector<192x256xf32> to vector<8x24x256xf32>
    %235 = vector.extract_strided_slice %48 {offsets = [1, 0], sizes = [1, 256], strides = [1, 1]} : vector<9x256xi32> to vector<1x256xi32>
    %236 = vector.broadcast %235 : vector<1x256xi32> to vector<24x256xi32>
    %237 = arith.cmpi eq, %53, %236 : vector<24x256xi32>
    %238 = vector.extract_strided_slice %38 {offsets = [1, 0], sizes = [1, 256], strides = [1, 1]} : vector<9x256xf32> to vector<1x256xf32>
    %cst_49 = arith.constant 0.000000e+00 : f32
    %239 = vector.shape_cast %238 : vector<1x256xf32> to vector<1x256xf32>
    %240 = vector.broadcast %239 : vector<1x256xf32> to vector<24x256xf32>
    %241 = vector.broadcast %cst_49 : f32 to vector<24x256xf32>
    %242 = arith.select %237, %240, %241 : vector<24x256xi1>, vector<24x256xf32>
    %243 = vector.extract_strided_slice %49 {offsets = [1, 0], sizes = [1, 256], strides = [1, 1]} : vector<9x256xi32> to vector<1x256xi32>
    %244 = vector.broadcast %243 : vector<1x256xi32> to vector<24x256xi32>
    %245 = arith.cmpi eq, %53, %244 : vector<24x256xi32>
    %246 = vector.extract_strided_slice %41 {offsets = [1, 0], sizes = [1, 256], strides = [1, 1]} : vector<9x256xf32> to vector<1x256xf32>
    %cst_50 = arith.constant 0.000000e+00 : f32
    %247 = vector.shape_cast %246 : vector<1x256xf32> to vector<1x256xf32>
    %248 = vector.broadcast %247 : vector<1x256xf32> to vector<24x256xf32>
    %249 = vector.broadcast %cst_50 : f32 to vector<24x256xf32>
    %250 = arith.select %245, %248, %249 : vector<24x256xi1>, vector<24x256xf32>
    %251 = arith.addf %242, %250 : vector<24x256xf32>
    %252 = vector.shape_cast %251 : vector<24x256xf32> to vector<1x24x256xf32>
    %253 = vector.broadcast %252 : vector<1x24x256xf32> to vector<8x24x256xf32>
    %254 = arith.mulf %234, %253 : vector<8x24x256xf32>
    %cst_51 = arith.constant dense<0.000000e+00> : vector<8x256xf32>
    %255 = vector.multi_reduction <add>, %254, %cst_51 [1] : vector<8x24x256xf32> to vector<8x256xf32>
    %c8 = arith.constant 8 : index
    %c0_52 = arith.constant 0 : index
    %256 = vector.load %arg7[%c8, %c0_52] : memref<72x256xf32, #tpu.memory_space<vmem>>, vector<8x256xf32>
    tpu.vector_store %arg7[%c8, %c0_52], %255 {strides = array<i32>} : memref<72x256xf32, #tpu.memory_space<vmem>>, vector<8x256xf32>,
    %257 = vector.extract_strided_slice %208 {offsets = [0, 512], sizes = [192, 256], strides = [1, 1]} : vector<192x2304xf32> to vector<192x256xf32>
    %258 = vector.shape_cast %257 : vector<192x256xf32> to vector<8x24x256xf32>
    %259 = vector.extract_strided_slice %48 {offsets = [2, 0], sizes = [1, 256], strides = [1, 1]} : vector<9x256xi32> to vector<1x256xi32>
    %260 = vector.broadcast %259 : vector<1x256xi32> to vector<24x256xi32>
    %261 = arith.cmpi eq, %53, %260 : vector<24x256xi32>
    %262 = vector.extract_strided_slice %38 {offsets = [2, 0], sizes = [1, 256], strides = [1, 1]} : vector<9x256xf32> to vector<1x256xf32>
    %cst_53 = arith.constant 0.000000e+00 : f32
    %263 = vector.shape_cast %262 : vector<1x256xf32> to vector<1x256xf32>
    %264 = vector.broadcast %263 : vector<1x256xf32> to vector<24x256xf32>
    %265 = vector.broadcast %cst_53 : f32 to vector<24x256xf32>
    %266 = arith.select %261, %264, %265 : vector<24x256xi1>, vector<24x256xf32>
    %267 = vector.extract_strided_slice %49 {offsets = [2, 0], sizes = [1, 256], strides = [1, 1]} : vector<9x256xi32> to vector<1x256xi32>
    %268 = vector.broadcast %267 : vector<1x256xi32> to vector<24x256xi32>
    %269 = arith.cmpi eq, %53, %268 : vector<24x256xi32>
    %270 = vector.extract_strided_slice %41 {offsets = [2, 0], sizes = [1, 256], strides = [1, 1]} : vector<9x256xf32> to vector<1x256xf32>
    %cst_54 = arith.constant 0.000000e+00 : f32
    %271 = vector.shape_cast %270 : vector<1x256xf32> to vector<1x256xf32>
    %272 = vector.broadcast %271 : vector<1x256xf32> to vector<24x256xf32>
    %273 = vector.broadcast %cst_54 : f32 to vector<24x256xf32>
    %274 = arith.select %269, %272, %273 : vector<24x256xi1>, vector<24x256xf32>
    %275 = arith.addf %266, %274 : vector<24x256xf32>
    %276 = vector.shape_cast %275 : vector<24x256xf32> to vector<1x24x256xf32>
    %277 = vector.broadcast %276 : vector<1x24x256xf32> to vector<8x24x256xf32>
    %278 = arith.mulf %258, %277 : vector<8x24x256xf32>
    %cst_55 = arith.constant dense<0.000000e+00> : vector<8x256xf32>
    %279 = vector.multi_reduction <add>, %278, %cst_55 [1] : vector<8x24x256xf32> to vector<8x256xf32>
    %c16 = arith.constant 16 : index
    %c0_56 = arith.constant 0 : index
    %280 = vector.load %arg7[%c16, %c0_56] : memref<72x256xf32, #tpu.memory_space<vmem>>, vector<8x256xf32>
    tpu.vector_store %arg7[%c16, %c0_56], %279 {strides = array<i32>} : memref<72x256xf32, #tpu.memory_space<vmem>>, vector<8x256xf32>,
    %281 = vector.extract_strided_slice %208 {offsets = [0, 768], sizes = [192, 256], strides = [1, 1]} : vector<192x2304xf32> to vector<192x256xf32>
    %282 = vector.shape_cast %281 : vector<192x256xf32> to vector<8x24x256xf32>
    %283 = vector.extract_strided_slice %48 {offsets = [3, 0], sizes = [1, 256], strides = [1, 1]} : vector<9x256xi32> to vector<1x256xi32>
    %284 = vector.broadcast %283 : vector<1x256xi32> to vector<24x256xi32>
    %285 = arith.cmpi eq, %53, %284 : vector<24x256xi32>
    %286 = vector.extract_strided_slice %38 {offsets = [3, 0], sizes = [1, 256], strides = [1, 1]} : vector<9x256xf32> to vector<1x256xf32>
    %cst_57 = arith.constant 0.000000e+00 : f32
    %287 = vector.shape_cast %286 : vector<1x256xf32> to vector<1x256xf32>
    %288 = vector.broadcast %287 : vector<1x256xf32> to vector<24x256xf32>
    %289 = vector.broadcast %cst_57 : f32 to vector<24x256xf32>
    %290 = arith.select %285, %288, %289 : vector<24x256xi1>, vector<24x256xf32>
    %291 = vector.extract_strided_slice %49 {offsets = [3, 0], sizes = [1, 256], strides = [1, 1]} : vector<9x256xi32> to vector<1x256xi32>
    %292 = vector.broadcast %291 : vector<1x256xi32> to vector<24x256xi32>
    %293 = arith.cmpi eq, %53, %292 : vector<24x256xi32>
    %294 = vector.extract_strided_slice %41 {offsets = [3, 0], sizes = [1, 256], strides = [1, 1]} : vector<9x256xf32> to vector<1x256xf32>
    %cst_58 = arith.constant 0.000000e+00 : f32
    %295 = vector.shape_cast %294 : vector<1x256xf32> to vector<1x256xf32>
    %296 = vector.broadcast %295 : vector<1x256xf32> to vector<24x256xf32>
    %297 = vector.broadcast %cst_58 : f32 to vector<24x256xf32>
    %298 = arith.select %293, %296, %297 : vector<24x256xi1>, vector<24x256xf32>
    %299 = arith.addf %290, %298 : vector<24x256xf32>
    %300 = vector.shape_cast %299 : vector<24x256xf32> to vector<1x24x256xf32>
    %301 = vector.broadcast %300 : vector<1x24x256xf32> to vector<8x24x256xf32>
    %302 = arith.mulf %282, %301 : vector<8x24x256xf32>
    %cst_59 = arith.constant dense<0.000000e+00> : vector<8x256xf32>
    %303 = vector.multi_reduction <add>, %302, %cst_59 [1] : vector<8x24x256xf32> to vector<8x256xf32>
    %c24 = arith.constant 24 : index
    %c0_60 = arith.constant 0 : index
    %304 = vector.load %arg7[%c24, %c0_60] : memref<72x256xf32, #tpu.memory_space<vmem>>, vector<8x256xf32>
    tpu.vector_store %arg7[%c24, %c0_60], %303 {strides = array<i32>} : memref<72x256xf32, #tpu.memory_space<vmem>>, vector<8x256xf32>,
    %305 = vector.extract_strided_slice %208 {offsets = [0, 1024], sizes = [192, 256], strides = [1, 1]} : vector<192x2304xf32> to vector<192x256xf32>
    %306 = vector.shape_cast %305 : vector<192x256xf32> to vector<8x24x256xf32>
    %307 = vector.extract_strided_slice %48 {offsets = [4, 0], sizes = [1, 256], strides = [1, 1]} : vector<9x256xi32> to vector<1x256xi32>
    %308 = vector.broadcast %307 : vector<1x256xi32> to vector<24x256xi32>
    %309 = arith.cmpi eq, %53, %308 : vector<24x256xi32>
    %310 = vector.extract_strided_slice %38 {offsets = [4, 0], sizes = [1, 256], strides = [1, 1]} : vector<9x256xf32> to vector<1x256xf32>
    %cst_61 = arith.constant 0.000000e+00 : f32
    %311 = vector.shape_cast %310 : vector<1x256xf32> to vector<1x256xf32>
    %312 = vector.broadcast %311 : vector<1x256xf32> to vector<24x256xf32>
    %313 = vector.broadcast %cst_61 : f32 to vector<24x256xf32>
    %314 = arith.select %309, %312, %313 : vector<24x256xi1>, vector<24x256xf32>
    %315 = vector.extract_strided_slice %49 {offsets = [4, 0], sizes = [1, 256], strides = [1, 1]} : vector<9x256xi32> to vector<1x256xi32>
    %316 = vector.broadcast %315 : vector<1x256xi32> to vector<24x256xi32>
    %317 = arith.cmpi eq, %53, %316 : vector<24x256xi32>
    %318 = vector.extract_strided_slice %41 {offsets = [4, 0], sizes = [1, 256], strides = [1, 1]} : vector<9x256xf32> to vector<1x256xf32>
    %cst_62 = arith.constant 0.000000e+00 : f32
    %319 = vector.shape_cast %318 : vector<1x256xf32> to vector<1x256xf32>
    %320 = vector.broadcast %319 : vector<1x256xf32> to vector<24x256xf32>
    %321 = vector.broadcast %cst_62 : f32 to vector<24x256xf32>
    %322 = arith.select %317, %320, %321 : vector<24x256xi1>, vector<24x256xf32>
    %323 = arith.addf %314, %322 : vector<24x256xf32>
    %324 = vector.shape_cast %323 : vector<24x256xf32> to vector<1x24x256xf32>
    %325 = vector.broadcast %324 : vector<1x24x256xf32> to vector<8x24x256xf32>
    %326 = arith.mulf %306, %325 : vector<8x24x256xf32>
    %cst_63 = arith.constant dense<0.000000e+00> : vector<8x256xf32>
    %327 = vector.multi_reduction <add>, %326, %cst_63 [1] : vector<8x24x256xf32> to vector<8x256xf32>
    %c32 = arith.constant 32 : index
    %c0_64 = arith.constant 0 : index
    %328 = vector.load %arg7[%c32, %c0_64] : memref<72x256xf32, #tpu.memory_space<vmem>>, vector<8x256xf32>
    tpu.vector_store %arg7[%c32, %c0_64], %327 {strides = array<i32>} : memref<72x256xf32, #tpu.memory_space<vmem>>, vector<8x256xf32>,
    %329 = vector.extract_strided_slice %208 {offsets = [0, 1280], sizes = [192, 256], strides = [1, 1]} : vector<192x2304xf32> to vector<192x256xf32>
    %330 = vector.shape_cast %329 : vector<192x256xf32> to vector<8x24x256xf32>
    %331 = vector.extract_strided_slice %48 {offsets = [5, 0], sizes = [1, 256], strides = [1, 1]} : vector<9x256xi32> to vector<1x256xi32>
    %332 = vector.broadcast %331 : vector<1x256xi32> to vector<24x256xi32>
    %333 = arith.cmpi eq, %53, %332 : vector<24x256xi32>
    %334 = vector.extract_strided_slice %38 {offsets = [5, 0], sizes = [1, 256], strides = [1, 1]} : vector<9x256xf32> to vector<1x256xf32>
    %cst_65 = arith.constant 0.000000e+00 : f32
    %335 = vector.shape_cast %334 : vector<1x256xf32> to vector<1x256xf32>
    %336 = vector.broadcast %335 : vector<1x256xf32> to vector<24x256xf32>
    %337 = vector.broadcast %cst_65 : f32 to vector<24x256xf32>
    %338 = arith.select %333, %336, %337 : vector<24x256xi1>, vector<24x256xf32>
    %339 = vector.extract_strided_slice %49 {offsets = [5, 0], sizes = [1, 256], strides = [1, 1]} : vector<9x256xi32> to vector<1x256xi32>
    %340 = vector.broadcast %339 : vector<1x256xi32> to vector<24x256xi32>
    %341 = arith.cmpi eq, %53, %340 : vector<24x256xi32>
    %342 = vector.extract_strided_slice %41 {offsets = [5, 0], sizes = [1, 256], strides = [1, 1]} : vector<9x256xf32> to vector<1x256xf32>
    %cst_66 = arith.constant 0.000000e+00 : f32
    %343 = vector.shape_cast %342 : vector<1x256xf32> to vector<1x256xf32>
    %344 = vector.broadcast %343 : vector<1x256xf32> to vector<24x256xf32>
    %345 = vector.broadcast %cst_66 : f32 to vector<24x256xf32>
    %346 = arith.select %341, %344, %345 : vector<24x256xi1>, vector<24x256xf32>
    %347 = arith.addf %338, %346 : vector<24x256xf32>
    %348 = vector.shape_cast %347 : vector<24x256xf32> to vector<1x24x256xf32>
    %349 = vector.broadcast %348 : vector<1x24x256xf32> to vector<8x24x256xf32>
    %350 = arith.mulf %330, %349 : vector<8x24x256xf32>
    %cst_67 = arith.constant dense<0.000000e+00> : vector<8x256xf32>
    %351 = vector.multi_reduction <add>, %350, %cst_67 [1] : vector<8x24x256xf32> to vector<8x256xf32>
    %c40 = arith.constant 40 : index
    %c0_68 = arith.constant 0 : index
    %352 = vector.load %arg7[%c40, %c0_68] : memref<72x256xf32, #tpu.memory_space<vmem>>, vector<8x256xf32>
    tpu.vector_store %arg7[%c40, %c0_68], %351 {strides = array<i32>} : memref<72x256xf32, #tpu.memory_space<vmem>>, vector<8x256xf32>,
    %353 = vector.extract_strided_slice %208 {offsets = [0, 1536], sizes = [192, 256], strides = [1, 1]} : vector<192x2304xf32> to vector<192x256xf32>
    %354 = vector.shape_cast %353 : vector<192x256xf32> to vector<8x24x256xf32>
    %355 = vector.extract_strided_slice %48 {offsets = [6, 0], sizes = [1, 256], strides = [1, 1]} : vector<9x256xi32> to vector<1x256xi32>
    %356 = vector.broadcast %355 : vector<1x256xi32> to vector<24x256xi32>
    %357 = arith.cmpi eq, %53, %356 : vector<24x256xi32>
    %358 = vector.extract_strided_slice %38 {offsets = [6, 0], sizes = [1, 256], strides = [1, 1]} : vector<9x256xf32> to vector<1x256xf32>
    %cst_69 = arith.constant 0.000000e+00 : f32
    %359 = vector.shape_cast %358 : vector<1x256xf32> to vector<1x256xf32>
    %360 = vector.broadcast %359 : vector<1x256xf32> to vector<24x256xf32>
    %361 = vector.broadcast %cst_69 : f32 to vector<24x256xf32>
    %362 = arith.select %357, %360, %361 : vector<24x256xi1>, vector<24x256xf32>
    %363 = vector.extract_strided_slice %49 {offsets = [6, 0], sizes = [1, 256], strides = [1, 1]} : vector<9x256xi32> to vector<1x256xi32>
    %364 = vector.broadcast %363 : vector<1x256xi32> to vector<24x256xi32>
    %365 = arith.cmpi eq, %53, %364 : vector<24x256xi32>
    %366 = vector.extract_strided_slice %41 {offsets = [6, 0], sizes = [1, 256], strides = [1, 1]} : vector<9x256xf32> to vector<1x256xf32>
    %cst_70 = arith.constant 0.000000e+00 : f32
    %367 = vector.shape_cast %366 : vector<1x256xf32> to vector<1x256xf32>
    %368 = vector.broadcast %367 : vector<1x256xf32> to vector<24x256xf32>
    %369 = vector.broadcast %cst_70 : f32 to vector<24x256xf32>
    %370 = arith.select %365, %368, %369 : vector<24x256xi1>, vector<24x256xf32>
    %371 = arith.addf %362, %370 : vector<24x256xf32>
    %372 = vector.shape_cast %371 : vector<24x256xf32> to vector<1x24x256xf32>
    %373 = vector.broadcast %372 : vector<1x24x256xf32> to vector<8x24x256xf32>
    %374 = arith.mulf %354, %373 : vector<8x24x256xf32>
    %cst_71 = arith.constant dense<0.000000e+00> : vector<8x256xf32>
    %375 = vector.multi_reduction <add>, %374, %cst_71 [1] : vector<8x24x256xf32> to vector<8x256xf32>
    %c48 = arith.constant 48 : index
    %c0_72 = arith.constant 0 : index
    %376 = vector.load %arg7[%c48, %c0_72] : memref<72x256xf32, #tpu.memory_space<vmem>>, vector<8x256xf32>
    tpu.vector_store %arg7[%c48, %c0_72], %375 {strides = array<i32>} : memref<72x256xf32, #tpu.memory_space<vmem>>, vector<8x256xf32>,
    %377 = vector.extract_strided_slice %208 {offsets = [0, 1792], sizes = [192, 256], strides = [1, 1]} : vector<192x2304xf32> to vector<192x256xf32>
    %378 = vector.shape_cast %377 : vector<192x256xf32> to vector<8x24x256xf32>
    %379 = vector.extract_strided_slice %48 {offsets = [7, 0], sizes = [1, 256], strides = [1, 1]} : vector<9x256xi32> to vector<1x256xi32>
    %380 = vector.broadcast %379 : vector<1x256xi32> to vector<24x256xi32>
    %381 = arith.cmpi eq, %53, %380 : vector<24x256xi32>
    %382 = vector.extract_strided_slice %38 {offsets = [7, 0], sizes = [1, 256], strides = [1, 1]} : vector<9x256xf32> to vector<1x256xf32>
    %cst_73 = arith.constant 0.000000e+00 : f32
    %383 = vector.shape_cast %382 : vector<1x256xf32> to vector<1x256xf32>
    %384 = vector.broadcast %383 : vector<1x256xf32> to vector<24x256xf32>
    %385 = vector.broadcast %cst_73 : f32 to vector<24x256xf32>
    %386 = arith.select %381, %384, %385 : vector<24x256xi1>, vector<24x256xf32>
    %387 = vector.extract_strided_slice %49 {offsets = [7, 0], sizes = [1, 256], strides = [1, 1]} : vector<9x256xi32> to vector<1x256xi32>
    %388 = vector.broadcast %387 : vector<1x256xi32> to vector<24x256xi32>
    %389 = arith.cmpi eq, %53, %388 : vector<24x256xi32>
    %390 = vector.extract_strided_slice %41 {offsets = [7, 0], sizes = [1, 256], strides = [1, 1]} : vector<9x256xf32> to vector<1x256xf32>
    %cst_74 = arith.constant 0.000000e+00 : f32
    %391 = vector.shape_cast %390 : vector<1x256xf32> to vector<1x256xf32>
    %392 = vector.broadcast %391 : vector<1x256xf32> to vector<24x256xf32>
    %393 = vector.broadcast %cst_74 : f32 to vector<24x256xf32>
    %394 = arith.select %389, %392, %393 : vector<24x256xi1>, vector<24x256xf32>
    %395 = arith.addf %386, %394 : vector<24x256xf32>
    %396 = vector.shape_cast %395 : vector<24x256xf32> to vector<1x24x256xf32>
    %397 = vector.broadcast %396 : vector<1x24x256xf32> to vector<8x24x256xf32>
    %398 = arith.mulf %378, %397 : vector<8x24x256xf32>
    %cst_75 = arith.constant dense<0.000000e+00> : vector<8x256xf32>
    %399 = vector.multi_reduction <add>, %398, %cst_75 [1] : vector<8x24x256xf32> to vector<8x256xf32>
    %c56 = arith.constant 56 : index
    %c0_76 = arith.constant 0 : index
    %400 = vector.load %arg7[%c56, %c0_76] : memref<72x256xf32, #tpu.memory_space<vmem>>, vector<8x256xf32>
    tpu.vector_store %arg7[%c56, %c0_76], %399 {strides = array<i32>} : memref<72x256xf32, #tpu.memory_space<vmem>>, vector<8x256xf32>,
    %401 = vector.extract_strided_slice %208 {offsets = [0, 2048], sizes = [192, 256], strides = [1, 1]} : vector<192x2304xf32> to vector<192x256xf32>
    %402 = vector.shape_cast %401 : vector<192x256xf32> to vector<8x24x256xf32>
    %403 = vector.extract_strided_slice %48 {offsets = [8, 0], sizes = [1, 256], strides = [1, 1]} : vector<9x256xi32> to vector<1x256xi32>
    %404 = vector.broadcast %403 : vector<1x256xi32> to vector<24x256xi32>
    %405 = arith.cmpi eq, %53, %404 : vector<24x256xi32>
    %406 = vector.extract_strided_slice %38 {offsets = [8, 0], sizes = [1, 256], strides = [1, 1]} : vector<9x256xf32> to vector<1x256xf32>
    %cst_77 = arith.constant 0.000000e+00 : f32
    %407 = vector.shape_cast %406 : vector<1x256xf32> to vector<1x256xf32>
    %408 = vector.broadcast %407 : vector<1x256xf32> to vector<24x256xf32>
    %409 = vector.broadcast %cst_77 : f32 to vector<24x256xf32>
    %410 = arith.select %405, %408, %409 : vector<24x256xi1>, vector<24x256xf32>
    %411 = vector.extract_strided_slice %49 {offsets = [8, 0], sizes = [1, 256], strides = [1, 1]} : vector<9x256xi32> to vector<1x256xi32>
    %412 = vector.broadcast %411 : vector<1x256xi32> to vector<24x256xi32>
    %413 = arith.cmpi eq, %53, %412 : vector<24x256xi32>
    %414 = vector.extract_strided_slice %41 {offsets = [8, 0], sizes = [1, 256], strides = [1, 1]} : vector<9x256xf32> to vector<1x256xf32>
    %cst_78 = arith.constant 0.000000e+00 : f32
    %415 = vector.shape_cast %414 : vector<1x256xf32> to vector<1x256xf32>
    %416 = vector.broadcast %415 : vector<1x256xf32> to vector<24x256xf32>
    %417 = vector.broadcast %cst_78 : f32 to vector<24x256xf32>
    %418 = arith.select %413, %416, %417 : vector<24x256xi1>, vector<24x256xf32>
    %419 = arith.addf %410, %418 : vector<24x256xf32>
    %420 = vector.shape_cast %419 : vector<24x256xf32> to vector<1x24x256xf32>
    %421 = vector.broadcast %420 : vector<1x24x256xf32> to vector<8x24x256xf32>
    %422 = arith.mulf %402, %421 : vector<8x24x256xf32>
    %cst_79 = arith.constant dense<0.000000e+00> : vector<8x256xf32>
    %423 = vector.multi_reduction <add>, %422, %cst_79 [1] : vector<8x24x256xf32> to vector<8x256xf32>
    %c64 = arith.constant 64 : index
    %c0_80 = arith.constant 0 : index
    %424 = vector.load %arg7[%c64, %c0_80] : memref<72x256xf32, #tpu.memory_space<vmem>>, vector<8x256xf32>
    tpu.vector_store %arg7[%c64, %c0_80], %423 {strides = array<i32>} : memref<72x256xf32, #tpu.memory_space<vmem>>, vector<8x256xf32>,
    %c0_81 = arith.constant 0 : index
    %c0_82 = arith.constant 0 : index
    %425 = vector.load %arg5[%c0_81, %c0_82] : memref<8x72xf32, #tpu.memory_space<vmem>>, vector<8x72xf32>
    %c0_83 = arith.constant 0 : index
    %c0_84 = arith.constant 0 : index
    %426 = vector.load %arg7[%c0_83, %c0_84] : memref<72x256xf32, #tpu.memory_space<vmem>>, vector<72x256xf32>
    %cst_85 = arith.constant dense<0.000000e+00> : vector<8x256xf32>
    %427 = tpu.matmul %425, %426, %cst_85 {dimension_numbers = #tpu.dot_dimension_numbers<[1], [0], [0], [1], [0, 0, 1, 1], [], []>} : vector<8x72xf32>, vector<72x256xf32>, vector<8x256xf32> -> vector<8x256xf32>
    %cst_86 = arith.constant 0.000000e+00 : f32
    %428 = vector.broadcast %cst_86 : f32 to vector<8x256xf32>
    %429 = arith.maximumf %427, %428 : vector<8x256xf32>
    %c0_87 = arith.constant 0 : index
    %c0_88 = arith.constant 0 : index
    %c0_89 = arith.constant 0 : index
    %430 = vector.load %arg6[%c0_87, %c0_88, %c0_89] : memref<1x8x256xf32, #tpu.memory_space<vmem>>, vector<1x8x256xf32>
    %431 = vector.shape_cast %430 : vector<1x8x256xf32> to vector<8x256xf32>
    %432 = vector.shape_cast %429 : vector<8x256xf32> to vector<1x8x256xf32>
    tpu.vector_store %arg6[%c0_87, %c0_88, %c0_89], %432 {strides = array<i32>} : memref<1x8x256xf32, #tpu.memory_space<vmem>>, vector<1x8x256xf32>,
    return
  }
  func.func @transform_0(%arg0: i32, %arg1: i32) -> (i32, i32, i32) {
    %c0_i32 = arith.constant 0 : i32
    %c0_i32_0 = arith.constant 0 : i32
    return %arg0, %c0_i32, %arg1 : i32, i32, i32
  }
  func.func @transform_1(%arg0: i32, %arg1: i32) -> (i32, i32, i32) {
    %c0_i32 = arith.constant 0 : i32
    %c0_i32_0 = arith.constant 0 : i32
    return %arg0, %c0_i32, %arg1 : i32, i32, i32
  }
  func.func @transform_2(%arg0: i32, %arg1: i32) -> (i32, i32, i32) {
    %c0_i32 = arith.constant 0 : i32
    %c0_i32_0 = arith.constant 0 : i32
    %c0_i32_1 = arith.constant 0 : i32
    return %arg0, %c0_i32, %c0_i32_0 : i32, i32, i32
  }
  func.func @transform_3(%arg0: i32, %arg1: i32) -> (i32, i32) {
    %c0_i32 = arith.constant 0 : i32
    %c0_i32_0 = arith.constant 0 : i32
    %c0_i32_1 = arith.constant 0 : i32
    return %c0_i32, %c0_i32_0 : i32, i32
  }
  func.func @transform_4(%arg0: i32, %arg1: i32) -> (i32, i32, i32) {
    %c0_i32 = arith.constant 0 : i32
    %c0_i32_0 = arith.constant 0 : i32
    return %arg0, %c0_i32, %arg1 : i32, i32, i32
  }
}

</mosaic_0001>

<llo_original>
// kernel: encoder3conv_pallas.1
$region0: #{encoder3conv_pallas.1}
  #allocation0 [shape = 'u32[]', space=smem, size = 0x4, offset = 0x4, fixed_abs, tag = 'smem constant byte address 0x4 - core index']
  #allocation1 [shape = 'u32[144,128]{1,0:T(1,128)}', space=vmem, size = 0x12000, scoped, tag = 'internal scratch']
  #allocation2 [shape = 'f32[72,256]{1,0:T(8,128)}', space=vmem, size = 0x12000, scoped, tag = 'scratch operand']
  %s0 = inlined_call_operand.vmem [shape: f32[2,9,256], index: 0, kind: input, shape index: {}]
  %s1 = inlined_call_operand.vmem [shape: f32[2,9,256], index: 1, kind: input, shape index: {}]
  %s2 = inlined_call_operand.vmem [shape: f32[2,192,18], index: 2, kind: input, shape index: {}]
  %s3 = inlined_call_operand.vmem [shape: f32[8,72], index: 3, kind: input, shape index: {}]
  %s4 = inlined_call_operand.vmem [shape: f32[2,8,256], index: 4, kind: output, shape index: {}]
  %s5 = sld [smem:[#allocation0]]
  $region49: #{encoder3conv_pallas.1} parent=0
    _
  %s7 = ssub.s32 1, %s5
  %s8 = scalar_select 0, %s7, %s5
  loop: start=0, step=1, limit=4
  $region2: #{encoder3conv_pallas.1} parent=0 // loop_pre_header
    _
  $region3: #{encoder3conv_pallas.1} parent=0 // loop_header
    %s10 = sphi 0, %s14
    %p11 = scmp.ge.s32.totalorder %s10, 4
    %s17 = sphi 0, %s29
    %s18 = sphi 0, %s25
    %s19 = sphi 0, %s17
    %s20 = sphi 0, %s18
    %s21 = sphi 0, %s19
    %s22 = sphi 0, %s20
    %s34 = sphi 0, %s36
    %s37 = sphi 0, %s34
    %s38 = sphi 0, %s37
    %s54 = sphi 0, %s38
    %s62 = sphi 0, %s64
    %s65 = sphi 0, %s62
    %s66 = sphi 0, %s65
    %s82 = sphi 0, %s66
    %s88 = sphi 0, %s90
    %s91 = sphi 0, %s88
    %s92 = sphi 0, %s91
    %s108 = sphi 0, %s92
    %s112 = sphi 0, %s112
    %s114 = sphi 0, %s112
    %s115 = sphi 0, %s114
    %s129 = sphi 0, %s115
    %s137 = sphi 0, %s139
    %s140 = sphi 0, %s137
    %s141 = sphi 0, %s140
    %s157 = sphi 0, %s141
  $region4: #{encoder3conv_pallas.1} parent=0 // loop_header_branch
    %13 = sbr.rel (%p11) target = $region8
  $region5: #{encoder3conv_pallas.1} parent=0 // loop_body
    %s15 = ssub.s32 %s10, 1
    %s16 = ssub.s32 %s10, 2
    %s23 = sadd.s32 1, %s18
    %p24 = scmp.ge.s32.totalorder %s23, 1
    %s25 = scalar_select %p24, 0, %s23
    %s26 = sadd.s32 1, %s17
    %s27 = scalar_select %p24, %s26, %s17
    %p28 = scmp.ge.s32.totalorder %s27, 2
    %s29 = scalar_select %p28, 0, %s27
    %s30 = ssub.s32 %s17, %s29
    %s31 = ssub.s32 %s18, %s25
    %s32 = sor.u32 %s30, %s31
    %p33 = scmp.eq.s32.totalorder %s32, 0
    %s35 = sadd.s32 %s34, 1
    %s36 = scalar_select %p33, %s34, %s35
    %p39 = pneg %p33
    %p40 = scmp.eq.s32.totalorder %s10, 1
    %p41 = por %p39, %p40
    %p42 = scmp.ne.s32.totalorder %s34, %s37
    %p43 = scmp.eq.s32.totalorder %s10, 0
    %p44 = por %p42, %p43
    %p45 = scmp.ne.s32.totalorder %s34, %s37
    %p46 = scmp.eq.s32.totalorder %s15, 1
    %p47 = por %p45, %p46
    %p48 = scmp.ne.s32.totalorder %s37, %s38
    %p49 = scmp.eq.s32.totalorder %s15, 0
    %p50 = por %p48, %p49
    %p51 = scmp.ne.s32.totalorder %s37, %s38
    %p52 = scmp.eq.s32.totalorder %s16, 1
    %p53 = por %p51, %p52
    %p55 = scmp.ne.s32.totalorder %s38, %s54
    %p56 = scmp.eq.s32.totalorder %s16, 0
    %p57 = por %p55, %p56
    %s58 = ssub.s32 %s17, %s29
    %s59 = ssub.s32 %s18, %s25
    %s60 = sor.u32 %s58, %s59
    %p61 = scmp.eq.s32.totalorder %s60, 0
    %s63 = sadd.s32 %s62, 1
    %s64 = scalar_select %p61, %s62, %s63
    %p67 = pneg %p61
    %p68 = scmp.eq.s32.totalorder %s10, 1
    %p69 = por %p67, %p68
    %p70 = scmp.ne.s32.totalorder %s62, %s65
    %p71 = scmp.eq.s32.totalorder %s10, 0
    %p72 = por %p70, %p71
    %p73 = scmp.ne.s32.totalorder %s62, %s65
    %p74 = scmp.eq.s32.totalorder %s15, 1
    %p75 = por %p73, %p74
    %p76 = scmp.ne.s32.totalorder %s65, %s66
    %p77 = scmp.eq.s32.totalorder %s15, 0
    %p78 = por %p76, %p77
    %p79 = scmp.ne.s32.totalorder %s65, %s66
    %p80 = scmp.eq.s32.totalorder %s16, 1
    %p81 = por %p79, %p80
    %p83 = scmp.ne.s32.totalorder %s66, %s82
    %p84 = scmp.eq.s32.totalorder %s16, 0
    %p85 = por %p83, %p84
    %s86 = ssub.s32 %s17, %s29
    %p87 = scmp.eq.s32.totalorder %s86, 0
    %s89 = sadd.s32 %s88, 1
    %s90 = scalar_select %p87, %s88, %s89
    %p93 = pneg %p87
    %p94 = scmp.eq.s32.totalorder %s10, 1
    %p95 = por %p93, %p94
    %p96 = scmp.ne.s32.totalorder %s88, %s91
    %p97 = scmp.eq.s32.totalorder %s10, 0
    %p98 = por %p96, %p97
    %p99 = scmp.ne.s32.totalorder %s88, %s91
    %p100 = scmp.eq.s32.totalorder %s15, 1
    %p101 = por %p99, %p100
    %p102 = scmp.ne.s32.totalorder %s91, %s92
    %p103 = scmp.eq.s32.totalorder %s15, 0
    %p104 = por %p102, %p103
    %p105 = scmp.ne.s32.totalorder %s91, %s92
    %p106 = scmp.eq.s32.totalorder %s16, 1
    %p107 = por %p105, %p106
    %p109 = scmp.ne.s32.totalorder %s92, %s108
    %p110 = scmp.eq.s32.totalorder %s16, 0
    %p111 = por %p109, %p110
    %s113 = sadd.s32 %s112, 1
    %p116 = scmp.eq.s32.totalorder %s10, 1
    %p117 = scmp.ne.s32.totalorder %s112, %s114
    %p118 = scmp.eq.s32.totalorder %s10, 0
    %p119 = por %p117, %p118
    %p120 = scmp.ne.s32.totalorder %s112, %s114
    %p121 = scmp.eq.s32.totalorder %s15, 1
    %p122 = por %p120, %p121
    %p123 = scmp.ne.s32.totalorder %s114, %s115
    %p124 = scmp.eq.s32.totalorder %s15, 0
    %p125 = por %p123, %p124
    %p126 = scmp.ne.s32.totalorder %s114, %s115
    %p127 = scmp.eq.s32.totalorder %s16, 1
    %p128 = por %p126, %p127
    %p130 = scmp.ne.s32.totalorder %s115, %s129
    %p131 = scmp.eq.s32.totalorder %s16, 0
    %p132 = por %p130, %p131
    %s133 = ssub.s32 %s17, %s29
    %s134 = ssub.s32 %s18, %s25
    %s135 = sor.u32 %s133, %s134
    %p136 = scmp.eq.s32.totalorder %s135, 0
    %s138 = sadd.s32 %s137, 1
    %s139 = scalar_select %p136, %s137, %s138
    %p142 = pneg %p136
    %p143 = scmp.eq.s32.totalorder %s10, 1
    %p144 = por %p142, %p143
    %p145 = scmp.ne.s32.totalorder %s137, %s140
    %p146 = scmp.eq.s32.totalorder %s10, 0
    %p147 = por %p145, %p146
    %p148 = scmp.ne.s32.totalorder %s137, %s140
    %p149 = scmp.eq.s32.totalorder %s15, 1
    %p150 = por %p148, %p149
    %p151 = scmp.ne.s32.totalorder %s140, %s141
    %p152 = scmp.eq.s32.totalorder %s15, 0
    %p153 = por %p151, %p152
    %p154 = scmp.ne.s32.totalorder %s140, %s141
    %p155 = scmp.eq.s32.totalorder %s16, 1
    %p156 = por %p154, %p155
    %p158 = scmp.ne.s32.totalorder %s141, %s157
    %p159 = scmp.eq.s32.totalorder %s16, 0
    %p160 = por %p158, %p159
    %p161 = scmp.le.s32.totalorder 1, %s10
    %p162 = scmp.lt.s32.totalorder %s10, 3
    %p163 = pnand %p161, %p162
    %p164 = pneg %p163
    // Predicated region
    $region9: #{encoder3conv_pallas.1} parent=5 // pred_check
      _
    $region10: #{encoder3conv_pallas.1} parent=5 // pred_check_branch
      %166 = sbr.rel (%p163) target = $region12
    $region11: #{encoder3conv_pallas.1} parent=5 // pred_region
      %s167 = ssub.s32 %s10, 1
      // Predicated region
      $region13: #{encoder3conv_pallas.1} parent=11 // pred_check
        %p168 = pneg %p125
      $region14: #{encoder3conv_pallas.1} parent=11 // pred_check_branch
        %170 = sbr.rel (%p168) target = $region16
      $region15: #{encoder3conv_pallas.1} parent=11 // pred_region
        _
      $region16: #{encoder3conv_pallas.1} parent=11 // pred_fallthru
        _
    $region12: #{encoder3conv_pallas.1} parent=5 // pred_fallthru
      _
    %p171 = scmp.lt.s32.totalorder %s10, 2
    // Predicated region
    $region17: #{encoder3conv_pallas.1} parent=5 // pred_check
      %p172 = pneg %p171
    $region18: #{encoder3conv_pallas.1} parent=5 // pred_check_branch
      %174 = sbr.rel (%p172) target = $region20
    $region19: #{encoder3conv_pallas.1} parent=5 // pred_region
      // Predicated region
      $region21: #{encoder3conv_pallas.1} parent=19 // pred_check
        %p175 = pneg %p44
      $region22: #{encoder3conv_pallas.1} parent=19 // pred_check_branch
        %177 = sbr.rel (%p175) target = $region24
      $region23: #{encoder3conv_pallas.1} parent=19 // pred_region
        %s178 = smul.u32 2, %s18
        %p179 = scmp.lt.s32.totalorder %s17, 1
        %s180 = scalar_select %p179, %s17, 1
        %p181 = scmp.lt.s32.totalorder %s178, 1
        %s182 = scalar_select %p181, %s178, 1
        %s183 = smul.addr %s180, 4
        %s184 = sadd.s32 %s182, %s183
        %s185 = smul.addr %s184, 8
        %s186 = scalar_lea.vmem %s0, %s185
        %s187 = smul.u32 2, %s18
      $region24: #{encoder3conv_pallas.1} parent=19 // pred_fallthru
        _
      // Predicated region
      $region25: #{encoder3conv_pallas.1} parent=19 // pred_check
        %p188 = pneg %p72
      $region26: #{encoder3conv_pallas.1} parent=19 // pred_check_branch
        %190 = sbr.rel (%p188) target = $region28
      $region27: #{encoder3conv_pallas.1} parent=19 // pred_region
        %s191 = smul.u32 2, %s18
        %p192 = scmp.lt.s32.totalorder %s17, 1
        %s193 = scalar_select %p192, %s17, 1
        %p194 = scmp.lt.s32.totalorder %s191, 1
        %s195 = scalar_select %p194, %s191, 1
        %s196 = smul.addr %s193, 4
        %s197 = sadd.s32 %s195, %s196
        %s198 = smul.addr %s197, 8
        %s199 = scalar_lea.vmem %s1, %s198
        %s200 = smul.u32 2, %s18
      $region28: #{encoder3conv_pallas.1} parent=19 // pred_fallthru
        _
      // Predicated region
      $region29: #{encoder3conv_pallas.1} parent=19 // pred_check
        %p201 = pneg %p98
      $region30: #{encoder3conv_pallas.1} parent=19 // pred_check_branch
        %203 = sbr.rel (%p201) target = $region32
      $region31: #{encoder3conv_pallas.1} parent=19 // pred_region
        %p204 = scmp.lt.s32.totalorder %s17, 1
        %s205 = scalar_select %p204, %s17, 1
        %s206 = smul.addr %s205, 24
        %s207 = smul.addr %s206, 8
        %s208 = scalar_lea.vmem %s2, %s207
      $region32: #{encoder3conv_pallas.1} parent=19 // pred_fallthru
        _
    $region20: #{encoder3conv_pallas.1} parent=5 // pred_fallthru
      _
    %p209 = scmp.le.s32.totalorder 1, %s10
    %p210 = scmp.lt.s32.totalorder %s10, 3
    %p211 = pnand %p209, %p210
    %p212 = pneg %p211
    // Predicated region
    $region33: #{encoder3conv_pallas.1} parent=5 // pred_check
      _
    $region34: #{encoder3conv_pallas.1} parent=5 // pred_check_branch
      %214 = sbr.rel (%p211) target = $region36
    $region35: #{encoder3conv_pallas.1} parent=5 // pred_region
      %s215 = ssub.s32 %s10, 1
      %s216 = smul.u32 2, %s20
      %p217 = scmp.lt.s32.totalorder %s19, 1
      %s218 = scalar_select %p217, %s19, 1
      %p219 = scmp.lt.s32.totalorder %s216, 1
      %s220 = scalar_select %p219, %s216, 1
      %s221 = smul.addr %s218, 4
      %s222 = sadd.s32 %s220, %s221
      %s223 = smul.addr %s222, 8
      %s224 = scalar_lea.vmem %s0, %s223
      %p225 = pneg %p50
      %p226 = pneg %p47
      %s227 = smul.u32 2, %s20
      %p228 = scmp.lt.s32.totalorder %s19, 1
      %s229 = scalar_select %p228, %s19, 1
      %p230 = scmp.lt.s32.totalorder %s227, 1
      %s231 = scalar_select %p230, %s227, 1
      %s232 = smul.addr %s229, 4
      %s233 = sadd.s32 %s231, %s232
      %s234 = smul.addr %s233, 8
      %s235 = scalar_lea.vmem %s1, %s234
      %p236 = pneg %p78
      %p237 = pneg %p75
      %p238 = scmp.lt.s32.totalorder %s19, 1
      %s239 = scalar_select %p238, %s19, 1
      %s240 = smul.addr %s239, 24
      %s241 = smul.addr %s240, 8
      %s242 = scalar_lea.vmem %s2, %s241
      %p243 = pneg %p104
      %p244 = pneg %p101
      %p245 = pneg %p125
      %p246 = pneg %p122
      %p247 = pneg %p153
      %p248 = pneg %p150
      %s249 = smul.u32 2, %s20
      %p250 = scmp.lt.s32.totalorder %s19, 1
      %s251 = scalar_select %p250, %s19, 1
      %p252 = scmp.lt.s32.totalorder %s249, 1
      %s253 = scalar_select %p252, %s249, 1
      %s254 = smul.addr %s251, 2
      %s255 = sadd.s32 %s253, %s254
      %s256 = smul.addr %s255, 8
      %s257 = scalar_lea.vmem %s4, %s256
      %s258 = smul.u32 2, %s20
      %p259 = scmp.lt.s32.totalorder %s19, 1
      %s260 = scalar_select %p259, %s19, 1
      %p261 = scmp.lt.s32.totalorder %s258, 1
      %s262 = scalar_select %p261, %s258, 1
      %s263 = smul.addr %s260, 4
      %s264 = sadd.s32 %s262, %s263
      %s265 = smul.addr %s264, 8
      %s266 = scalar_lea.vmem %s0, %s265
      %s267 = smul.u32 2, %s20
      %s268 = smul.u32 2, %s20
      %p269 = scmp.lt.s32.totalorder %s19, 1
      %s270 = scalar_select %p269, %s19, 1
      %p271 = scmp.lt.s32.totalorder %s268, 1
      %s272 = scalar_select %p271, %s268, 1
      %s273 = smul.addr %s270, 4
      %s274 = sadd.s32 %s272, %s273
      %s275 = smul.addr %s274, 8
      %s276 = scalar_lea.vmem %s1, %s275
      %s277 = smul.u32 2, %s20
      %p278 = scmp.lt.s32.totalorder %s19, 1
      %s279 = scalar_select %p278, %s19, 1
      %s280 = smul.addr %s279, 24
      %s281 = smul.addr %s280, 8
      %s282 = scalar_lea.vmem %s2, %s281
      %s283 = smul.u32 2, %s20
      %p284 = scmp.lt.s32.totalorder %s19, 1
      %s285 = scalar_select %p284, %s19, 1
      %p286 = scmp.lt.s32.totalorder %s283, 1
      %s287 = scalar_select %p286, %s283, 1
      %s288 = smul.addr %s285, 2
      %s289 = sadd.s32 %s287, %s288
      %s290 = smul.addr %s289, 8
      %s291 = scalar_lea.vmem %s4, %s290
      %s292 = smul.u32 2, %s20
      %v293 = vld [vmem:[%s266] sm:$0xff]
      %v294 = vld [vmem:[%s266 + $0x8] sm:$0xff]
      %v295 = vld [vmem:[%s266 + $0x10] sm:$0x1]
      %v296 = vld [vmem:[%s266 + $0x18] sm:$0x1]
      %v297 = vld [vmem:[%s276] sm:$0xff]
      %v298 = vld [vmem:[%s276 + $0x8] sm:$0xff]
      %v299 = vld [vmem:[%s276 + $0x10] sm:$0x1]
      %v300 = vld [vmem:[%s276 + $0x18] sm:$0x1]
      %v301 = vld [vmem:[%s282] sm:$0xff]
      %v302 = vld [vmem:[%s282 + $0x8] sm:$0xff]
      %v303 = vld [vmem:[%s282 + $0x10] sm:$0xff]
      %v304 = vld [vmem:[%s282 + $0x18] sm:$0xff]
      %v305 = vld [vmem:[%s282 + $0x20] sm:$0xff]
      %v306 = vld [vmem:[%s282 + $0x28] sm:$0xff]
      %v307 = vld [vmem:[%s282 + $0x30] sm:$0xff]
      %v308 = vld [vmem:[%s282 + $0x38] sm:$0xff]
      %v309 = vld [vmem:[%s282 + $0x40] sm:$0xff]
      %v310 = vld [vmem:[%s282 + $0x48] sm:$0xff]
      %v311 = vld [vmem:[%s282 + $0x50] sm:$0xff]
      %v312 = vld [vmem:[%s282 + $0x58] sm:$0xff]
      %v313 = vld [vmem:[%s282 + $0x60] sm:$0xff]
      %v314 = vld [vmem:[%s282 + $0x68] sm:$0xff]
      %v315 = vld [vmem:[%s282 + $0x70] sm:$0xff]
      %v316 = vld [vmem:[%s282 + $0x78] sm:$0xff]
      %v317 = vld [vmem:[%s282 + $0x80] sm:$0xff]
      %v318 = vld [vmem:[%s282 + $0x88] sm:$0xff]
      %v319 = vld [vmem:[%s282 + $0x90] sm:$0xff]
      %v320 = vld [vmem:[%s282 + $0x98] sm:$0xff]
      %v321 = vld [vmem:[%s282 + $0xa0] sm:$0xff]
      %v322 = vld [vmem:[%s282 + $0xa8] sm:$0xff]
      %v323 = vld [vmem:[%s282 + $0xb0] sm:$0xff]
      %v324 = vld [vmem:[%s282 + $0xb8] sm:$0xff]
      %v325 = vfloor.f32 %v293
      %v326 = vfloor.f32 %v294
      %v327 = vfloor.f32 %v295
      %v328 = vfloor.f32 %v296
      %v329 = vfloor.f32 %v297
      %v330 = vfloor.f32 %v298
      %v331 = vfloor.f32 %v299
      %v332 = vfloor.f32 %v300
      %v333 = vmax.f32 %v325, 0.0
      %v334 = vmax.f32 %v326, 0.0
      %v335 = vmax.f32 %v327, 0.0
      %v336 = vmax.f32 %v328, 0.0
      %v337 = vmin.f32 %v333, 17.0
      %v338 = vmin.f32 %v334, 17.0
      %v339 = vmin.f32 %v335, 17.0
      %v340 = vmin.f32 %v336, 17.0
      %v341 = vadd.f32 %v325, 1.0
      %v342 = vadd.f32 %v326, 1.0
      %v343 = vadd.f32 %v327, 1.0
      %v344 = vadd.f32 %v328, 1.0
      %v345 = vmax.f32 %v341, 0.0
      %v346 = vmax.f32 %v342, 0.0
      %v347 = vmax.f32 %v343, 0.0
      %v348 = vmax.f32 %v344, 0.0
      %v349 = vmin.f32 %v345, 17.0
      %v350 = vmin.f32 %v346, 17.0
      %v351 = vmin.f32 %v347, 17.0
      %v352 = vmin.f32 %v348, 17.0
      %v353 = vmax.f32 %v329, 0.0
      %v354 = vmax.f32 %v330, 0.0
      %v355 = vmax.f32 %v331, 0.0
      %v356 = vmax.f32 %v332, 0.0
      %v357 = vmin.f32 %v353, 17.0
      %v358 = vmin.f32 %v354, 17.0
      %v359 = vmin.f32 %v355, 17.0
      %v360 = vmin.f32 %v356, 17.0
      %v361 = vadd.f32 %v329, 1.0
      %v362 = vadd.f32 %v330, 1.0
      %v363 = vadd.f32 %v331, 1.0
      %v364 = vadd.f32 %v332, 1.0
      %v365 = vmax.f32 %v361, 0.0
      %v366 = vmax.f32 %v362, 0.0
      %v367 = vmax.f32 %v363, 0.0
      %v368 = vmax.f32 %v364, 0.0
      %v369 = vmin.f32 %v365, 17.0
      %v370 = vmin.f32 %v366, 17.0
      %v371 = vmin.f32 %v367, 17.0
      %v372 = vmin.f32 %v368, 17.0
      %v373 = vmax.f32 %v293, 0.0
      %v374 = vmax.f32 %v294, 0.0
      %v375 = vmax.f32 %v295, 0.0
      %v376 = vmax.f32 %v296, 0.0
      %v377 = vmin.f32 %v373, 17.0
      %v378 = vmin.f32 %v374, 17.0
      %v379 = vmin.f32 %v375, 17.0
      %v380 = vmin.f32 %v376, 17.0
      %v381 = vmax.f32 %v297, 0.0
      %v382 = vmax.f32 %v298, 0.0
      %v383 = vmax.f32 %v299, 0.0
      %v384 = vmax.f32 %v300, 0.0
      %v385 = vmin.f32 %v381, 17.0
      %v386 = vmin.f32 %v382, 17.0
      %v387 = vmin.f32 %v383, 17.0
      %v388 = vmin.f32 %v384, 17.0
      %v389 = vsub.f32 %v337, %v377
      %v390 = vsub.f32 %v338, %v378
      %v391 = vsub.f32 %v339, %v379
      %v392 = vsub.f32 %v340, %v380
      %v393 = vadd.f32 %v389, 1.0
      %v394 = vadd.f32 %v390, 1.0
      %v395 = vadd.f32 %v391, 1.0
      %v396 = vadd.f32 %v392, 1.0
      %v397 = vsub.f32 %v349, %v377
      %v398 = vsub.f32 %v350, %v378
      %v399 = vsub.f32 %v351, %v379
      %v400 = vsub.f32 %v352, %v380
      %v401 = vsub.f32 1.0, %v397
      %v402 = vsub.f32 1.0, %v398
      %v403 = vsub.f32 1.0, %v399
      %v404 = vsub.f32 1.0, %v400
      %v405 = vsub.f32 %v357, %v385
      %v406 = vsub.f32 %v358, %v386
      %v407 = vsub.f32 %v359, %v387
      %v408 = vsub.f32 %v360, %v388
      %v409 = vadd.f32 %v405, 1.0
      %v410 = vadd.f32 %v406, 1.0
      %v411 = vadd.f32 %v407, 1.0
      %v412 = vadd.f32 %v408, 1.0
      %v413 = vsub.f32 %v369, %v385
      %v414 = vsub.f32 %v370, %v386
      %v415 = vsub.f32 %v371, %v387
      %v416 = vsub.f32 %v372, %v388
      %v417 = vsub.f32 1.0, %v413
      %v418 = vsub.f32 1.0, %v414
      %v419 = vsub.f32 1.0, %v415
      %v420 = vsub.f32 1.0, %v416
      %v421 = vcvt.f32.s32.to.zero.pseudo %v337
      %v422 = vcvt.f32.s32.to.zero.pseudo %v338
      %v423 = vcvt.f32.s32.to.zero.pseudo %v339
      %v424 = vcvt.f32.s32.to.zero.pseudo %v340
      %v425 = vcvt.f32.s32.to.zero.pseudo %v349
      %v426 = vcvt.f32.s32.to.zero.pseudo %v350
      %v427 = vcvt.f32.s32.to.zero.pseudo %v351
      %v428 = vcvt.f32.s32.to.zero.pseudo %v352
      %v429 = vcvt.f32.s32.to.zero.pseudo %v357
      %v430 = vcvt.f32.s32.to.zero.pseudo %v358
      %v431 = vcvt.f32.s32.to.zero.pseudo %v359
      %v432 = vcvt.f32.s32.to.zero.pseudo %v360
      %v433 = vcvt.f32.s32.to.zero.pseudo %v369
      %v434 = vcvt.f32.s32.to.zero.pseudo %v370
      %v435 = vcvt.f32.s32.to.zero.pseudo %v371
      %v436 = vcvt.f32.s32.to.zero.pseudo %v372
      %v437 = vlaneseq
      %v438 = vshrl.u32 %v437, 7
      %v439 = vadd.s32 %v438, 8
      %v440 = vadd.s32 %v438, 16
      %v441 = vlaneseq
      %v442 = vshrl.u32 %v441, 7
      %v443 = vsub.s32 0, %v442
      %v444 = vrot.slane %v429, %v443
      %v445 = vlaneseq
      %v446 = vshrl.u32 %v445, 7
      %v447 = vsub.s32 0, %v446
      %v448 = vrot.slane %v430, %v447
      %vm449 = vcmp.eq.s32.totalorder %v438, %v444
      %vm450 = vcmp.eq.s32.totalorder %v438, %v448
      %vm451 = vcmp.eq.s32.totalorder %v439, %v444
      %vm452 = vcmp.eq.s32.totalorder %v439, %v448
      %vm453 = vcmp.eq.s32.totalorder %v440, %v444
      %vm454 = vcmp.eq.s32.totalorder %v440, %v448
      %v455 = vlaneseq
      %v456 = vshrl.u32 %v455, 7
      %v457 = vsub.s32 0, %v456
      %v458 = vrot.slane %v409, %v457
      %v459 = vlaneseq
      %v460 = vshrl.u32 %v459, 7
      %v461 = vsub.s32 0, %v460
      %v462 = vrot.slane %v410, %v461
      %v463 = vsel %vm449, %v458, 0.0
      %v464 = vsel %vm450, %v462, 0.0
      %v465 = vsel %vm451, %v458, 0.0
      %v466 = vsel %vm452, %v462, 0.0
      %v467 = vsel %vm453, %v458, 0.0
      %v468 = vsel %vm454, %v462, 0.0
      %v469 = vlaneseq
      %v470 = vshrl.u32 %v469, 7
      %v471 = vsub.s32 0, %v470
      %v472 = vrot.slane %v433, %v471
      %v473 = vlaneseq
      %v474 = vshrl.u32 %v473, 7
      %v475 = vsub.s32 0, %v474
      %v476 = vrot.slane %v434, %v475
      %vm477 = vcmp.eq.s32.totalorder %v438, %v472
      %vm478 = vcmp.eq.s32.totalorder %v438, %v476
      %vm479 = vcmp.eq.s32.totalorder %v439, %v472
      %vm480 = vcmp.eq.s32.totalorder %v439, %v476
      %vm481 = vcmp.eq.s32.totalorder %v440, %v472
      %vm482 = vcmp.eq.s32.totalorder %v440, %v476
      %v483 = vlaneseq
      %v484 = vshrl.u32 %v483, 7
      %v485 = vsub.s32 0, %v484
      %v486 = vrot.slane %v417, %v485
      %v487 = vlaneseq
      %v488 = vshrl.u32 %v487, 7
      %v489 = vsub.s32 0, %v488
      %v490 = vrot.slane %v418, %v489
      %v491 = vsel %vm477, %v486, 0.0
      %v492 = vsel %vm478, %v490, 0.0
      %v493 = vsel %vm479, %v486, 0.0
      %v494 = vsel %vm480, %v490, 0.0
      %v495 = vsel %vm481, %v486, 0.0
      %v496 = vsel %vm482, %v490, 0.0
      %v497 = vadd.f32 %v463, %v491
      %v498 = vadd.f32 %v464, %v492
      %v499 = vadd.f32 %v465, %v493
      %v500 = vadd.f32 %v466, %v494
      %v501 = vadd.f32 %v467, %v495
      %v502 = vadd.f32 %v468, %v496
      %v503 = vlaneseq
      %v504 = vshrl.u32 %v503, 7
      %v505 = vsub.s32 1, %v504
      %v506 = vrot.slane %v429, %v505
      %v507 = vlaneseq
      %v508 = vshrl.u32 %v507, 7
      %v509 = vsub.s32 1, %v508
      %v510 = vrot.slane %v430, %v509
      %vm511 = vcmp.eq.s32.totalorder %v438, %v506
      %vm512 = vcmp.eq.s32.totalorder %v438, %v510
      %vm513 = vcmp.eq.s32.totalorder %v439, %v506
      %vm514 = vcmp.eq.s32.totalorder %v439, %v510
      %vm515 = vcmp.eq.s32.totalorder %v440, %v506
      %vm516 = vcmp.eq.s32.totalorder %v440, %v510
      %v517 = vlaneseq
      %v518 = vshrl.u32 %v517, 7
      %v519 = vsub.s32 1, %v518
      %v520 = vrot.slane %v409, %v519
      %v521 = vlaneseq
      %v522 = vshrl.u32 %v521, 7
      %v523 = vsub.s32 1, %v522
      %v524 = vrot.slane %v410, %v523
      %v525 = vsel %vm511, %v520, 0.0
      %v526 = vsel %vm512, %v524, 0.0
      %v527 = vsel %vm513, %v520, 0.0
      %v528 = vsel %vm514, %v524, 0.0
      %v529 = vsel %vm515, %v520, 0.0
      %v530 = vsel %vm516, %v524, 0.0
      %v531 = vlaneseq
      %v532 = vshrl.u32 %v531, 7
      %v533 = vsub.s32 1, %v532
      %v534 = vrot.slane %v433, %v533
      %v535 = vlaneseq
      %v536 = vshrl.u32 %v535, 7
      %v537 = vsub.s32 1, %v536
      %v538 = vrot.slane %v434, %v537
      %vm539 = vcmp.eq.s32.totalorder %v438, %v534
      %vm540 = vcmp.eq.s32.totalorder %v438, %v538
      %vm541 = vcmp.eq.s32.totalorder %v439, %v534
      %vm542 = vcmp.eq.s32.totalorder %v439, %v538
      %vm543 = vcmp.eq.s32.totalorder %v440, %v534
      %vm544 = vcmp.eq.s32.totalorder %v440, %v538
      %v545 = vlaneseq
      %v546 = vshrl.u32 %v545, 7
      %v547 = vsub.s32 1, %v546
      %v548 = vrot.slane %v417, %v547
      %v549 = vlaneseq
      %v550 = vshrl.u32 %v549, 7
      %v551 = vsub.s32 1, %v550
      %v552 = vrot.slane %v418, %v551
      %v553 = vsel %vm539, %v548, 0.0
      %v554 = vsel %vm540, %v552, 0.0
      %v555 = vsel %vm541, %v548, 0.0
      %v556 = vsel %vm542, %v552, 0.0
      %v557 = vsel %vm543, %v548, 0.0
      %v558 = vsel %vm544, %v552, 0.0
      %v559 = vadd.f32 %v525, %v553
      %v560 = vadd.f32 %v526, %v554
      %v561 = vadd.f32 %v527, %v555
      %v562 = vadd.f32 %v528, %v556
      %v563 = vadd.f32 %v529, %v557
      %v564 = vadd.f32 %v530, %v558
      %v565 = vlaneseq
      %v566 = vshrl.u32 %v565, 7
      %v567 = vsub.s32 2, %v566
      %v568 = vrot.slane %v429, %v567
      %v569 = vlaneseq
      %v570 = vshrl.u32 %v569, 7
      %v571 = vsub.s32 2, %v570
      %v572 = vrot.slane %v430, %v571
      %vm573 = vcmp.eq.s32.totalorder %v438, %v568
      %vm574 = vcmp.eq.s32.totalorder %v438, %v572
      %vm575 = vcmp.eq.s32.totalorder %v439, %v568
      %vm576 = vcmp.eq.s32.totalorder %v439, %v572
      %vm577 = vcmp.eq.s32.totalorder %v440, %v568
      %vm578 = vcmp.eq.s32.totalorder %v440, %v572
      %v579 = vlaneseq
      %v580 = vshrl.u32 %v579, 7
      %v581 = vsub.s32 2, %v580
      %v582 = vrot.slane %v409, %v581
      %v583 = vlaneseq
      %v584 = vshrl.u32 %v583, 7
      %v585 = vsub.s32 2, %v584
      %v586 = vrot.slane %v410, %v585
      %v587 = vsel %vm573, %v582, 0.0
      %v588 = vsel %vm574, %v586, 0.0
      %v589 = vsel %vm575, %v582, 0.0
      %v590 = vsel %vm576, %v586, 0.0
      %v591 = vsel %vm577, %v582, 0.0
      %v592 = vsel %vm578, %v586, 0.0
      %v593 = vlaneseq
      %v594 = vshrl.u32 %v593, 7
      %v595 = vsub.s32 2, %v594
      %v596 = vrot.slane %v433, %v595
      %v597 = vlaneseq
      %v598 = vshrl.u32 %v597, 7
      %v599 = vsub.s32 2, %v598
      %v600 = vrot.slane %v434, %v599
      %vm601 = vcmp.eq.s32.totalorder %v438, %v596
      %vm602 = vcmp.eq.s32.totalorder %v438, %v600
      %vm603 = vcmp.eq.s32.totalorder %v439, %v596
      %vm604 = vcmp.eq.s32.totalorder %v439, %v600
      %vm605 = vcmp.eq.s32.totalorder %v440, %v596
      %vm606 = vcmp.eq.s32.totalorder %v440, %v600
      %v607 = vlaneseq
      %v608 = vshrl.u32 %v607, 7
      %v609 = vsub.s32 2, %v608
      %v610 = vrot.slane %v417, %v609
      %v611 = vlaneseq
      %v612 = vshrl.u32 %v611, 7
      %v613 = vsub.s32 2, %v612
      %v614 = vrot.slane %v418, %v613
      %v615 = vsel %vm601, %v610, 0.0
      %v616 = vsel %vm602, %v614, 0.0
      %v617 = vsel %vm603, %v610, 0.0
      %v618 = vsel %vm604, %v614, 0.0
      %v619 = vsel %vm605, %v610, 0.0
      %v620 = vsel %vm606, %v614, 0.0
      %v621 = vadd.f32 %v587, %v615
      %v622 = vadd.f32 %v588, %v616
      %v623 = vadd.f32 %v589, %v617
      %v624 = vadd.f32 %v590, %v618
      %v625 = vadd.f32 %v591, %v619
      %v626 = vadd.f32 %v592, %v620
      %v627 = vlaneseq
      %v628 = vshrl.u32 %v627, 7
      %v629 = vsub.s32 3, %v628
      %v630 = vrot.slane %v429, %v629
      %v631 = vlaneseq
      %v632 = vshrl.u32 %v631, 7
      %v633 = vsub.s32 3, %v632
      %v634 = vrot.slane %v430, %v633
      %vm635 = vcmp.eq.s32.totalorder %v438, %v630
      %vm636 = vcmp.eq.s32.totalorder %v438, %v634
      %vm637 = vcmp.eq.s32.totalorder %v439, %v630
      %vm638 = vcmp.eq.s32.totalorder %v439, %v634
      %vm639 = vcmp.eq.s32.totalorder %v440, %v630
      %vm640 = vcmp.eq.s32.totalorder %v440, %v634
      %v641 = vlaneseq
      %v642 = vshrl.u32 %v641, 7
      %v643 = vsub.s32 3, %v642
      %v644 = vrot.slane %v409, %v643
      %v645 = vlaneseq
      %v646 = vshrl.u32 %v645, 7
      %v647 = vsub.s32 3, %v646
      %v648 = vrot.slane %v410, %v647
      %v649 = vsel %vm635, %v644, 0.0
      %v650 = vsel %vm636, %v648, 0.0
      %v651 = vsel %vm637, %v644, 0.0
      %v652 = vsel %vm638, %v648, 0.0
      %v653 = vsel %vm639, %v644, 0.0
      %v654 = vsel %vm640, %v648, 0.0
      %v655 = vlaneseq
      %v656 = vshrl.u32 %v655, 7
      %v657 = vsub.s32 3, %v656
      %v658 = vrot.slane %v433, %v657
      %v659 = vlaneseq
      %v660 = vshrl.u32 %v659, 7
      %v661 = vsub.s32 3, %v660
      %v662 = vrot.slane %v434, %v661
      %vm663 = vcmp.eq.s32.totalorder %v438, %v658
      %vm664 = vcmp.eq.s32.totalorder %v438, %v662
      %vm665 = vcmp.eq.s32.totalorder %v439, %v658
      %vm666 = vcmp.eq.s32.totalorder %v439, %v662
      %vm667 = vcmp.eq.s32.totalorder %v440, %v658
      %vm668 = vcmp.eq.s32.totalorder %v440, %v662
      %v669 = vlaneseq
      %v670 = vshrl.u32 %v669, 7
      %v671 = vsub.s32 3, %v670
      %v672 = vrot.slane %v417, %v671
      %v673 = vlaneseq
      %v674 = vshrl.u32 %v673, 7
      %v675 = vsub.s32 3, %v674
      %v676 = vrot.slane %v418, %v675
      %v677 = vsel %vm663, %v672, 0.0
      %v678 = vsel %vm664, %v676, 0.0
      %v679 = vsel %vm665, %v672, 0.0
      %v680 = vsel %vm666, %v676, 0.0
      %v681 = vsel %vm667, %v672, 0.0
      %v682 = vsel %vm668, %v676, 0.0
      %v683 = vadd.f32 %v649, %v677
      %v684 = vadd.f32 %v650, %v678
      %v685 = vadd.f32 %v651, %v679
      %v686 = vadd.f32 %v652, %v680
      %v687 = vadd.f32 %v653, %v681
      %v688 = vadd.f32 %v654, %v682
      %v689 = vlaneseq
      %v690 = vshrl.u32 %v689, 7
      %v691 = vsub.s32 4, %v690
      %v692 = vrot.slane %v429, %v691
      %v693 = vlaneseq
      %v694 = vshrl.u32 %v693, 7
      %v695 = vsub.s32 4, %v694
      %v696 = vrot.slane %v430, %v695
      %vm697 = vcmp.eq.s32.totalorder %v438, %v692
      %vm698 = vcmp.eq.s32.totalorder %v438, %v696
      %vm699 = vcmp.eq.s32.totalorder %v439, %v692
      %vm700 = vcmp.eq.s32.totalorder %v439, %v696
      %vm701 = vcmp.eq.s32.totalorder %v440, %v692
      %vm702 = vcmp.eq.s32.totalorder %v440, %v696
      %v703 = vlaneseq
      %v704 = vshrl.u32 %v703, 7
      %v705 = vsub.s32 4, %v704
      %v706 = vrot.slane %v409, %v705
      %v707 = vlaneseq
      %v708 = vshrl.u32 %v707, 7
      %v709 = vsub.s32 4, %v708
      %v710 = vrot.slane %v410, %v709
      %v711 = vsel %vm697, %v706, 0.0
      %v712 = vsel %vm698, %v710, 0.0
      %v713 = vsel %vm699, %v706, 0.0
      %v714 = vsel %vm700, %v710, 0.0
      %v715 = vsel %vm701, %v706, 0.0
      %v716 = vsel %vm702, %v710, 0.0
      %v717 = vlaneseq
      %v718 = vshrl.u32 %v717, 7
      %v719 = vsub.s32 4, %v718
      %v720 = vrot.slane %v433, %v719
      %v721 = vlaneseq
      %v722 = vshrl.u32 %v721, 7
      %v723 = vsub.s32 4, %v722
      %v724 = vrot.slane %v434, %v723
      %vm725 = vcmp.eq.s32.totalorder %v438, %v720
      %vm726 = vcmp.eq.s32.totalorder %v438, %v724
      %vm727 = vcmp.eq.s32.totalorder %v439, %v720
      %vm728 = vcmp.eq.s32.totalorder %v439, %v724
      %vm729 = vcmp.eq.s32.totalorder %v440, %v720
      %vm730 = vcmp.eq.s32.totalorder %v440, %v724
      %v731 = vlaneseq
      %v732 = vshrl.u32 %v731, 7
      %v733 = vsub.s32 4, %v732
      %v734 = vrot.slane %v417, %v733
      %v735 = vlaneseq
      %v736 = vshrl.u32 %v735, 7
      %v737 = vsub.s32 4, %v736
      %v738 = vrot.slane %v418, %v737
      %v739 = vsel %vm725, %v734, 0.0
      %v740 = vsel %vm726, %v738, 0.0
      %v741 = vsel %vm727, %v734, 0.0
      %v742 = vsel %vm728, %v738, 0.0
      %v743 = vsel %vm729, %v734, 0.0
      %v744 = vsel %vm730, %v738, 0.0
      %v745 = vadd.f32 %v711, %v739
      %v746 = vadd.f32 %v712, %v740
      %v747 = vadd.f32 %v713, %v741
      %v748 = vadd.f32 %v714, %v742
      %v749 = vadd.f32 %v715, %v743
      %v750 = vadd.f32 %v716, %v744
      %v751 = vlaneseq
      %v752 = vshrl.u32 %v751, 7
      %v753 = vsub.s32 5, %v752
      %v754 = vrot.slane %v429, %v753
      %v755 = vlaneseq
      %v756 = vshrl.u32 %v755, 7
      %v757 = vsub.s32 5, %v756
      %v758 = vrot.slane %v430, %v757
      %vm759 = vcmp.eq.s32.totalorder %v438, %v754
      %vm760 = vcmp.eq.s32.totalorder %v438, %v758
      %vm761 = vcmp.eq.s32.totalorder %v439, %v754
      %vm762 = vcmp.eq.s32.totalorder %v439, %v758
      %vm763 = vcmp.eq.s32.totalorder %v440, %v754
      %vm764 = vcmp.eq.s32.totalorder %v440, %v758
      %v765 = vlaneseq
      %v766 = vshrl.u32 %v765, 7
      %v767 = vsub.s32 5, %v766
      %v768 = vrot.slane %v409, %v767
      %v769 = vlaneseq
      %v770 = vshrl.u32 %v769, 7
      %v771 = vsub.s32 5, %v770
      %v772 = vrot.slane %v410, %v771
      %v773 = vsel %vm759, %v768, 0.0
      %v774 = vsel %vm760, %v772, 0.0
      %v775 = vsel %vm761, %v768, 0.0
      %v776 = vsel %vm762, %v772, 0.0
      %v777 = vsel %vm763, %v768, 0.0
      %v778 = vsel %vm764, %v772, 0.0
      %v779 = vlaneseq
      %v780 = vshrl.u32 %v779, 7
      %v781 = vsub.s32 5, %v780
      %v782 = vrot.slane %v433, %v781
      %v783 = vlaneseq
      %v784 = vshrl.u32 %v783, 7
      %v785 = vsub.s32 5, %v784
      %v786 = vrot.slane %v434, %v785
      %vm787 = vcmp.eq.s32.totalorder %v438, %v782
      %vm788 = vcmp.eq.s32.totalorder %v438, %v786
      %vm789 = vcmp.eq.s32.totalorder %v439, %v782
      %vm790 = vcmp.eq.s32.totalorder %v439, %v786
      %vm791 = vcmp.eq.s32.totalorder %v440, %v782
      %vm792 = vcmp.eq.s32.totalorder %v440, %v786
      %v793 = vlaneseq
      %v794 = vshrl.u32 %v793, 7
      %v795 = vsub.s32 5, %v794
      %v796 = vrot.slane %v417, %v795
      %v797 = vlaneseq
      %v798 = vshrl.u32 %v797, 7
      %v799 = vsub.s32 5, %v798
      %v800 = vrot.slane %v418, %v799
      %v801 = vsel %vm787, %v796, 0.0
      %v802 = vsel %vm788, %v800, 0.0
      %v803 = vsel %vm789, %v796, 0.0
      %v804 = vsel %vm790, %v800, 0.0
      %v805 = vsel %vm791, %v796, 0.0
      %v806 = vsel %vm792, %v800, 0.0
      %v807 = vadd.f32 %v773, %v801
      %v808 = vadd.f32 %v774, %v802
      %v809 = vadd.f32 %v775, %v803
      %v810 = vadd.f32 %v776, %v804
      %v811 = vadd.f32 %v777, %v805
      %v812 = vadd.f32 %v778, %v806
      %v813 = vlaneseq
      %v814 = vshrl.u32 %v813, 7
      %v815 = vsub.s32 6, %v814
      %v816 = vrot.slane %v429, %v815
      %v817 = vlaneseq
      %v818 = vshrl.u32 %v817, 7
      %v819 = vsub.s32 6, %v818
      %v820 = vrot.slane %v430, %v819
      %vm821 = vcmp.eq.s32.totalorder %v438, %v816
      %vm822 = vcmp.eq.s32.totalorder %v438, %v820
      %vm823 = vcmp.eq.s32.totalorder %v439, %v816
      %vm824 = vcmp.eq.s32.totalorder %v439, %v820
      %vm825 = vcmp.eq.s32.totalorder %v440, %v816
      %vm826 = vcmp.eq.s32.totalorder %v440, %v820
      %v827 = vlaneseq
      %v828 = vshrl.u32 %v827, 7
      %v829 = vsub.s32 6, %v828
      %v830 = vrot.slane %v409, %v829
      %v831 = vlaneseq
      %v832 = vshrl.u32 %v831, 7
      %v833 = vsub.s32 6, %v832
      %v834 = vrot.slane %v410, %v833
      %v835 = vsel %vm821, %v830, 0.0
      %v836 = vsel %vm822, %v834, 0.0
      %v837 = vsel %vm823, %v830, 0.0
      %v838 = vsel %vm824, %v834, 0.0
      %v839 = vsel %vm825, %v830, 0.0
      %v840 = vsel %vm826, %v834, 0.0
      %v841 = vlaneseq
      %v842 = vshrl.u32 %v841, 7
      %v843 = vsub.s32 6, %v842
      %v844 = vrot.slane %v433, %v843
      %v845 = vlaneseq
      %v846 = vshrl.u32 %v845, 7
      %v847 = vsub.s32 6, %v846
      %v848 = vrot.slane %v434, %v847
      %vm849 = vcmp.eq.s32.totalorder %v438, %v844
      %vm850 = vcmp.eq.s32.totalorder %v438, %v848
      %vm851 = vcmp.eq.s32.totalorder %v439, %v844
      %vm852 = vcmp.eq.s32.totalorder %v439, %v848
      %vm853 = vcmp.eq.s32.totalorder %v440, %v844
      %vm854 = vcmp.eq.s32.totalorder %v440, %v848
      %v855 = vlaneseq
      %v856 = vshrl.u32 %v855, 7
      %v857 = vsub.s32 6, %v856
      %v858 = vrot.slane %v417, %v857
      %v859 = vlaneseq
      %v860 = vshrl.u32 %v859, 7
      %v861 = vsub.s32 6, %v860
      %v862 = vrot.slane %v418, %v861
      %v863 = vsel %vm849, %v858, 0.0
      %v864 = vsel %vm850, %v862, 0.0
      %v865 = vsel %vm851, %v858, 0.0
      %v866 = vsel %vm852, %v862, 0.0
      %v867 = vsel %vm853, %v858, 0.0
      %v868 = vsel %vm854, %v862, 0.0
      %v869 = vadd.f32 %v835, %v863
      %v870 = vadd.f32 %v836, %v864
      %v871 = vadd.f32 %v837, %v865
      %v872 = vadd.f32 %v838, %v866
      %v873 = vadd.f32 %v839, %v867
      %v874 = vadd.f32 %v840, %v868
      %v875 = vlaneseq
      %v876 = vshrl.u32 %v875, 7
      %v877 = vsub.s32 7, %v876
      %v878 = vrot.slane %v429, %v877
      %v879 = vlaneseq
      %v880 = vshrl.u32 %v879, 7
      %v881 = vsub.s32 7, %v880
      %v882 = vrot.slane %v430, %v881
      %vm883 = vcmp.eq.s32.totalorder %v438, %v878
      %vm884 = vcmp.eq.s32.totalorder %v438, %v882
      %vm885 = vcmp.eq.s32.totalorder %v439, %v878
      %vm886 = vcmp.eq.s32.totalorder %v439, %v882
      %vm887 = vcmp.eq.s32.totalorder %v440, %v878
      %vm888 = vcmp.eq.s32.totalorder %v440, %v882
      %v889 = vlaneseq
      %v890 = vshrl.u32 %v889, 7
      %v891 = vsub.s32 7, %v890
      %v892 = vrot.slane %v409, %v891
      %v893 = vlaneseq
      %v894 = vshrl.u32 %v893, 7
      %v895 = vsub.s32 7, %v894
      %v896 = vrot.slane %v410, %v895
      %v897 = vsel %vm883, %v892, 0.0
      %v898 = vsel %vm884, %v896, 0.0
      %v899 = vsel %vm885, %v892, 0.0
      %v900 = vsel %vm886, %v896, 0.0
      %v901 = vsel %vm887, %v892, 0.0
      %v902 = vsel %vm888, %v896, 0.0
      %v903 = vlaneseq
      %v904 = vshrl.u32 %v903, 7
      %v905 = vsub.s32 7, %v904
      %v906 = vrot.slane %v433, %v905
      %v907 = vlaneseq
      %v908 = vshrl.u32 %v907, 7
      %v909 = vsub.s32 7, %v908
      %v910 = vrot.slane %v434, %v909
      %vm911 = vcmp.eq.s32.totalorder %v438, %v906
      %vm912 = vcmp.eq.s32.totalorder %v438, %v910
      %vm913 = vcmp.eq.s32.totalorder %v439, %v906
      %vm914 = vcmp.eq.s32.totalorder %v439, %v910
      %vm915 = vcmp.eq.s32.totalorder %v440, %v906
      %vm916 = vcmp.eq.s32.totalorder %v440, %v910
      %v917 = vlaneseq
      %v918 = vshrl.u32 %v917, 7
      %v919 = vsub.s32 7, %v918
      %v920 = vrot.slane %v417, %v919
      %v921 = vlaneseq
      %v922 = vshrl.u32 %v921, 7
      %v923 = vsub.s32 7, %v922
      %v924 = vrot.slane %v418, %v923
      %v925 = vsel %vm911, %v920, 0.0
      %v926 = vsel %vm912, %v924, 0.0
      %v927 = vsel %vm913, %v920, 0.0
      %v928 = vsel %vm914, %v924, 0.0
      %v929 = vsel %vm915, %v920, 0.0
      %v930 = vsel %vm916, %v924, 0.0
      %v931 = vadd.f32 %v897, %v925
      %v932 = vadd.f32 %v898, %v926
      %v933 = vadd.f32 %v899, %v927
      %v934 = vadd.f32 %v900, %v928
      %v935 = vadd.f32 %v901, %v929
      %v936 = vadd.f32 %v902, %v930
      %v937 = vlaneseq
      %v938 = vshrl.u32 %v937, 7
      %v939 = vsub.s32 0, %v938
      %v940 = vrot.slane %v431, %v939
      %v941 = vlaneseq
      %v942 = vshrl.u32 %v941, 7
      %v943 = vsub.s32 0, %v942
      %v944 = vrot.slane %v432, %v943
      %vm945 = vcmp.eq.s32.totalorder %v438, %v940
      %vm946 = vcmp.eq.s32.totalorder %v438, %v944
      %vm947 = vcmp.eq.s32.totalorder %v439, %v940
      %vm948 = vcmp.eq.s32.totalorder %v439, %v944
      %vm949 = vcmp.eq.s32.totalorder %v440, %v940
      %vm950 = vcmp.eq.s32.totalorder %v440, %v944
      %v951 = vlaneseq
      %v952 = vshrl.u32 %v951, 7
      %v953 = vsub.s32 0, %v952
      %v954 = vrot.slane %v411, %v953
      %v955 = vlaneseq
      %v956 = vshrl.u32 %v955, 7
      %v957 = vsub.s32 0, %v956
      %v958 = vrot.slane %v412, %v957
      %v959 = vsel %vm945, %v954, 0.0
      %v960 = vsel %vm946, %v958, 0.0
      %v961 = vsel %vm947, %v954, 0.0
      %v962 = vsel %vm948, %v958, 0.0
      %v963 = vsel %vm949, %v954, 0.0
      %v964 = vsel %vm950, %v958, 0.0
      %v965 = vlaneseq
      %v966 = vshrl.u32 %v965, 7
      %v967 = vsub.s32 0, %v966
      %v968 = vrot.slane %v435, %v967
      %v969 = vlaneseq
      %v970 = vshrl.u32 %v969, 7
      %v971 = vsub.s32 0, %v970
      %v972 = vrot.slane %v436, %v971
      %vm973 = vcmp.eq.s32.totalorder %v438, %v968
      %vm974 = vcmp.eq.s32.totalorder %v438, %v972
      %vm975 = vcmp.eq.s32.totalorder %v439, %v968
      %vm976 = vcmp.eq.s32.totalorder %v439, %v972
      %vm977 = vcmp.eq.s32.totalorder %v440, %v968
      %vm978 = vcmp.eq.s32.totalorder %v440, %v972
      %v979 = vlaneseq
      %v980 = vshrl.u32 %v979, 7
      %v981 = vsub.s32 0, %v980
      %v982 = vrot.slane %v419, %v981
      %v983 = vlaneseq
      %v984 = vshrl.u32 %v983, 7
      %v985 = vsub.s32 0, %v984
      %v986 = vrot.slane %v420, %v985
      %v987 = vsel %vm973, %v982, 0.0
      %v988 = vsel %vm974, %v986, 0.0
      %v989 = vsel %vm975, %v982, 0.0
      %v990 = vsel %vm976, %v986, 0.0
      %v991 = vsel %vm977, %v982, 0.0
      %v992 = vsel %vm978, %v986, 0.0
      %v993 = vadd.f32 %v959, %v987
      %v994 = vadd.f32 %v960, %v988
      %v995 = vadd.f32 %v961, %v989
      %v996 = vadd.f32 %v962, %v990
      %v997 = vadd.f32 %v963, %v991
      %v998 = vadd.f32 %v964, %v992
      %vm999 = vcmask 146432
      %v1001 = vsel %vm999, %v301, 0
      %v1004 = vsel %vm999, %v302, 0
      %v1007 = vsel %vm999, %v303, 0
      %v1010 = vsel %vm999, %v304, 0
      %v1013 = vsel %vm999, %v305, 0
      %v1016 = vsel %vm999, %v306, 0
      %v1019 = vsel %vm999, %v307, 0
      %v1022 = vsel %vm999, %v308, 0
      %v1025 = vsel %vm999, %v309, 0
      %v1028 = vsel %vm999, %v310, 0
      %v1031 = vsel %vm999, %v311, 0
      %v1034 = vsel %vm999, %v312, 0
      %v1037 = vsel %vm999, %v313, 0
      %v1040 = vsel %vm999, %v314, 0
      %v1043 = vsel %vm999, %v315, 0
      %v1046 = vsel %vm999, %v316, 0
      %v1049 = vsel %vm999, %v317, 0
      %v1052 = vsel %vm999, %v318, 0
      %v1055 = vsel %vm999, %v319, 0
      %v1058 = vsel %vm999, %v320, 0
      %v1061 = vsel %vm999, %v321, 0
      %v1064 = vsel %vm999, %v322, 0
      %v1067 = vsel %vm999, %v323, 0
      %v1070 = vsel %vm999, %v324, 0
      %vm1072 = vcmask 1041408
      %v1074 = vsel %vm1072, %v501, 0
      %v1077 = vsel %vm1072, %v502, 0
      %v1080 = vsel %vm1072, %v563, 0
      %v1083 = vsel %vm1072, %v564, 0
      %v1086 = vsel %vm1072, %v625, 0
      %v1089 = vsel %vm1072, %v626, 0
      %v1092 = vsel %vm1072, %v687, 0
      %v1095 = vsel %vm1072, %v688, 0
      %v1098 = vsel %vm1072, %v749, 0
      %v1101 = vsel %vm1072, %v750, 0
      %v1104 = vsel %vm1072, %v811, 0
      %v1107 = vsel %vm1072, %v812, 0
      %v1110 = vsel %vm1072, %v873, 0
      %v1113 = vsel %vm1072, %v874, 0
      %v1116 = vsel %vm1072, %v935, 0
      %v1119 = vsel %vm1072, %v936, 0
      %v1122 = vsel %vm1072, %v997, 0
      %v1125 = vsel %vm1072, %v998, 0
      %1127 = vmatprep.subr.mxu0 %v498
      %1128 = vmatpush1.msra.mxu0 %v497
      %1129 = vmatprep.subr.mxu0 %v500
      %1130 = vmatpush1.msra.mxu0 %v499
      %1131 = vmatprep.subr.mxu0 %v1077
      %1132 = vmatpush1.msra.mxu0 %v1074
      %1133 = vmatprep.subr.mxu0 0.0
      %1134 = vmatpush1.msra.mxu0 0.0
      %1135 = vmatprep.subr.mxu0 0.0
      %1136 = vmatpush1.msra.mxu0 0.0
      %1137 = vmatprep.subr.mxu0 0.0
      %1138 = vmatpush1.msra.mxu0 0.0
      %1139 = vmatprep.subr.mxu0 0.0
      %1140 = vmatpush1.msra.mxu0 0.0
      %1141 = vmatprep.subr.mxu0 0.0
      %1142 = vmatpush1.msra.mxu0 0.0
      %1143 = vmatprep.subr.mxu0 0.0
      %1144 = vmatpush1.msra.mxu0 0.0
      %1145 = vmatprep.subr.mxu0 0.0
      %1146 = vmatpush1.msra.mxu0 0.0
      %1147 = vmatprep.subr.mxu0 0.0
      %1148 = vmatpush1.msra.mxu0 0.0
      %1149 = vmatprep.subr.mxu0 0.0
      %1150 = vmatpush1.msra.mxu0 0.0
      %1151 = vmatprep.subr.mxu0 0.0
      %1152 = vmatpush1.msra.mxu0 0.0
      %1153 = vmatprep.subr.mxu0 0.0
      %1154 = vmatpush1.msra.mxu0 0.0
      %1155 = vmatprep.subr.mxu0 0.0
      %1156 = vmatpush1.msra.mxu0 0.0
      %1157 = vmatprep.subr.mxu0 0.0
      %1158 = vmatpush1.msra.mxu0 0.0
      %1159 = vmatprep.subr.mxu0 0.0
      %1160 = vmatpush1.msra.mxu0 0.0
      %1161 = vmatprep.subr.mxu0 0.0
      %1162 = vmatpush1.msra.mxu0 0.0
      %1163 = vmatprep.subr.mxu0 0.0
      %1164 = vmatpush1.msra.mxu0 0.0
      %1165 = vmatprep.subr.mxu0 0.0
      %1166 = vmatpush1.msra.mxu0 0.0
      %1167 = vmatprep.subr.mxu0 0.0
      %1168 = vmatpush1.msra.mxu0 0.0
      %1169 = vmatprep.subr.mxu0 0.0
      %1170 = vmatpush1.msra.mxu0 0.0
      %1171 = vmatprep.subr.mxu0 0.0
      %1172 = vmatpush1.msra.mxu0 0.0
      %1173 = vmatprep.subr.mxu0 0.0
      %1174 = vmatpush1.msra.mxu0 0.0
      %1175 = vmatprep.subr.mxu0 0.0
      %1176 = vmatpush1.msra.mxu0 0.0
      %1177 = vmatprep.subr.mxu0 0.0
      %1178 = vmatpush1.msra.mxu0 0.0
      %1179 = vmatprep.subr.mxu0 0.0
      %1180 = vmatpush1.msra.mxu0 0.0
      %1181 = vmatprep.subr.mxu0 0.0
      %1182 = vmatpush1.msra.mxu0 0.0
      %1183 = vmatprep.subr.mxu0 0.0
      %1184 = vmatpush1.msra.mxu0 0.0
      %1185 = vmatprep.subr.mxu0 0.0
      %1186 = vmatpush1.msra.mxu0 0.0
      %1187 = vmatprep.subr.mxu0 0.0
      %1188 = vmatpush1.msra.mxu0 0.0
      %1189 = vmatprep.subr.mxu0 0.0
      %1190 = vmatpush1.msra.mxu0 0.0
      %1191 = vmatprep.mubr.f32.mxu0 0.0
      %1192 = vmatmul.mubr.f32.gmra.mrb[0].mxu0 %v1001
      %v1193 = vpop.f32.mrb[0].mxu0
      %v1194 = vadd.f32 0.0, %v1193
      %v1195 = vpop.f32.mrb[0].mxu0
      %v1196 = vadd.f32 0.0, %v1195
      %1197 = vmatprep.mubr.f32.mxu0 0.0
      %1198 = vmatmul.mubr.f32.gmra.mrb[0].mxu0 %v1004
      %v1199 = vpop.f32.mrb[0].mxu0
      %v1200 = vadd.f32 0.0, %v1199
      %v1201 = vpop.f32.mrb[0].mxu0
      %v1202 = vadd.f32 0.0, %v1201
      %1203 = vmatprep.mubr.f32.mxu0 0.0
      %1204 = vmatmul.mubr.f32.gmra.mrb[0].mxu0 %v1007
      %v1205 = vpop.f32.mrb[0].mxu0
      %v1206 = vadd.f32 0.0, %v1205
      %v1207 = vpop.f32.mrb[0].mxu0
      %v1208 = vadd.f32 0.0, %v1207
      %1209 = vmatprep.mubr.f32.mxu0 0.0
      %1210 = vmatmul.mubr.f32.gmra.mrb[0].mxu0 %v1010
      %v1211 = vpop.f32.mrb[0].mxu0
      %v1212 = vadd.f32 0.0, %v1211
      %v1213 = vpop.f32.mrb[0].mxu0
      %v1214 = vadd.f32 0.0, %v1213
      %1215 = vmatprep.mubr.f32.mxu0 0.0
      %1216 = vmatmul.mubr.f32.gmra.mrb[0].mxu0 %v1013
      %v1217 = vpop.f32.mrb[0].mxu0
      %v1218 = vadd.f32 0.0, %v1217
      %v1219 = vpop.f32.mrb[0].mxu0
      %v1220 = vadd.f32 0.0, %v1219
      %1221 = vmatprep.mubr.f32.mxu0 0.0
      %1222 = vmatmul.mubr.f32.gmra.mrb[0].mxu0 %v1016
      %v1223 = vpop.f32.mrb[0].mxu0
      %v1224 = vadd.f32 0.0, %v1223
      %v1225 = vpop.f32.mrb[0].mxu0
      %v1226 = vadd.f32 0.0, %v1225
      %1227 = vmatprep.mubr.f32.mxu0 0.0
      %1228 = vmatmul.mubr.f32.gmra.mrb[0].mxu0 %v1019
      %v1229 = vpop.f32.mrb[0].mxu0
      %v1230 = vadd.f32 0.0, %v1229
      %v1231 = vpop.f32.mrb[0].mxu0
      %v1232 = vadd.f32 0.0, %v1231
      %1233 = vmatprep.mubr.f32.mxu0 0.0
      %1234 = vmatmul.mubr.f32.gmra.mrb[0].mxu0 %v1022
      %v1235 = vpop.f32.mrb[0].mxu0
      %v1236 = vadd.f32 0.0, %v1235
      %v1237 = vpop.f32.mrb[0].mxu0
      %v1238 = vadd.f32 0.0, %v1237
      %1239 = vmatprep.mubr.f32.mxu0 0.0
      %1240 = vmatmul.mubr.f32.gmra.mrb[0].mxu0 %v1025
      %v1241 = vpop.f32.mrb[0].mxu0
      %v1242 = vadd.f32 0.0, %v1241
      %v1243 = vpop.f32.mrb[0].mxu0
      %v1244 = vadd.f32 0.0, %v1243
      %1245 = vmatprep.mubr.f32.mxu0 0.0
      %1246 = vmatmul.mubr.f32.gmra.mrb[0].mxu0 %v1028
      %v1247 = vpop.f32.mrb[0].mxu0
      %v1248 = vadd.f32 0.0, %v1247
      %v1249 = vpop.f32.mrb[0].mxu0
      %v1250 = vadd.f32 0.0, %v1249
      %1251 = vmatprep.mubr.f32.mxu0 0.0
      %1252 = vmatmul.mubr.f32.gmra.mrb[0].mxu0 %v1031
      %v1253 = vpop.f32.mrb[0].mxu0
      %v1254 = vadd.f32 0.0, %v1253
      %v1255 = vpop.f32.mrb[0].mxu0
      %v1256 = vadd.f32 0.0, %v1255
      %1257 = vmatprep.mubr.f32.mxu0 0.0
      %1258 = vmatmul.mubr.f32.gmra.mrb[0].mxu0 %v1034
      %v1259 = vpop.f32.mrb[0].mxu0
      %v1260 = vadd.f32 0.0, %v1259
      %v1261 = vpop.f32.mrb[0].mxu0
      %v1262 = vadd.f32 0.0, %v1261
      %1263 = vmatprep.mubr.f32.mxu0 0.0
      %1264 = vmatmul.mubr.f32.gmra.mrb[0].mxu0 %v1037
      %v1265 = vpop.f32.mrb[0].mxu0
      %v1266 = vadd.f32 0.0, %v1265
      %v1267 = vpop.f32.mrb[0].mxu0
      %v1268 = vadd.f32 0.0, %v1267
      %1269 = vmatprep.mubr.f32.mxu0 0.0
      %1270 = vmatmul.mubr.f32.gmra.mrb[0].mxu0 %v1040
      %v1271 = vpop.f32.mrb[0].mxu0
      %v1272 = vadd.f32 0.0, %v1271
      %v1273 = vpop.f32.mrb[0].mxu0
      %v1274 = vadd.f32 0.0, %v1273
      %1275 = vmatprep.mubr.f32.mxu0 0.0
      %1276 = vmatmul.mubr.f32.gmra.mrb[0].mxu0 %v1043
      %v1277 = vpop.f32.mrb[0].mxu0
      %v1278 = vadd.f32 0.0, %v1277
      %v1279 = vpop.f32.mrb[0].mxu0
      %v1280 = vadd.f32 0.0, %v1279
      %1281 = vmatprep.mubr.f32.mxu0 0.0
      %1282 = vmatmul.mubr.f32.gmra.mrb[0].mxu0 %v1046
      %v1283 = vpop.f32.mrb[0].mxu0
      %v1284 = vadd.f32 0.0, %v1283
      %v1285 = vpop.f32.mrb[0].mxu0
      %v1286 = vadd.f32 0.0, %v1285
      %1287 = vmatprep.mubr.f32.mxu0 0.0
      %1288 = vmatmul.mubr.f32.gmra.mrb[0].mxu0 %v1049
      %v1289 = vpop.f32.mrb[0].mxu0
      %v1290 = vadd.f32 0.0, %v1289
      %v1291 = vpop.f32.mrb[0].mxu0
      %v1292 = vadd.f32 0.0, %v1291
      %1293 = vmatprep.mubr.f32.mxu0 0.0
      %1294 = vmatmul.mubr.f32.gmra.mrb[0].mxu0 %v1052
      %v1295 = vpop.f32.mrb[0].mxu0
      %v1296 = vadd.f32 0.0, %v1295
      %v1297 = vpop.f32.mrb[0].mxu0
      %v1298 = vadd.f32 0.0, %v1297
      %1299 = vmatprep.mubr.f32.mxu0 0.0
      %1300 = vmatmul.mubr.f32.gmra.mrb[0].mxu0 %v1055
      %v1301 = vpop.f32.mrb[0].mxu0
      %v1302 = vadd.f32 0.0, %v1301
      %v1303 = vpop.f32.mrb[0].mxu0
      %v1304 = vadd.f32 0.0, %v1303
      %1305 = vmatprep.mubr.f32.mxu0 0.0
      %1306 = vmatmul.mubr.f32.gmra.mrb[0].mxu0 %v1058
      %v1307 = vpop.f32.mrb[0].mxu0
      %v1308 = vadd.f32 0.0, %v1307
      %v1309 = vpop.f32.mrb[0].mxu0
      %v1310 = vadd.f32 0.0, %v1309
      %1311 = vmatprep.mubr.f32.mxu0 0.0
      %1312 = vmatmul.mubr.f32.gmra.mrb[0].mxu0 %v1061
      %v1313 = vpop.f32.mrb[0].mxu0
      %v1314 = vadd.f32 0.0, %v1313
      %v1315 = vpop.f32.mrb[0].mxu0
      %v1316 = vadd.f32 0.0, %v1315
      %1317 = vmatprep.mubr.f32.mxu0 0.0
      %1318 = vmatmul.mubr.f32.gmra.mrb[0].mxu0 %v1064
      %v1319 = vpop.f32.mrb[0].mxu0
      %v1320 = vadd.f32 0.0, %v1319
      %v1321 = vpop.f32.mrb[0].mxu0
      %v1322 = vadd.f32 0.0, %v1321
      %1323 = vmatprep.mubr.f32.mxu0 0.0
      %1324 = vmatmul.mubr.f32.gmra.mrb[0].mxu0 %v1067
      %v1325 = vpop.f32.mrb[0].mxu0
      %v1326 = vadd.f32 0.0, %v1325
      %v1327 = vpop.f32.mrb[0].mxu0
      %v1328 = vadd.f32 0.0, %v1327
      %1329 = vmatprep.mubr.f32.mxu0 0.0
      %1330 = vmatmul.mubr.f32.gmra.mrb[0].mxu0 %v1070
      %v1331 = vpop.f32.mrb[0].mxu0
      %v1332 = vadd.f32 0.0, %v1331
      %v1333 = vpop.f32.mrb[0].mxu0
      %v1334 = vadd.f32 0.0, %v1333
      %1335 = vdwg.mxu0
      %1336 = vmatprep.subr.mxu0 %v560
      %1337 = vmatpush1.msra.mxu0 %v559
      %1338 = vmatprep.subr.mxu0 %v562
      %1339 = vmatpush1.msra.mxu0 %v561
      %1340 = vmatprep.subr.mxu0 %v1083
      %1341 = vmatpush1.msra.mxu0 %v1080
      %1342 = vmatprep.subr.mxu0 0.0
      %1343 = vmatpush1.msra.mxu0 0.0
      %1344 = vmatprep.subr.mxu0 0.0
      %1345 = vmatpush1.msra.mxu0 0.0
      %1346 = vmatprep.subr.mxu0 0.0
      %1347 = vmatpush1.msra.mxu0 0.0
      %1348 = vmatprep.subr.mxu0 0.0
      %1349 = vmatpush1.msra.mxu0 0.0
      %1350 = vmatprep.subr.mxu0 0.0
      %1351 = vmatpush1.msra.mxu0 0.0
      %1352 = vmatprep.subr.mxu0 0.0
      %1353 = vmatpush1.msra.mxu0 0.0
      %1354 = vmatprep.subr.mxu0 0.0
      %1355 = vmatpush1.msra.mxu0 0.0
      %1356 = vmatprep.subr.mxu0 0.0
      %1357 = vmatpush1.msra.mxu0 0.0
      %1358 = vmatprep.subr.mxu0 0.0
      %1359 = vmatpush1.msra.mxu0 0.0
      %1360 = vmatprep.subr.mxu0 0.0
      %1361 = vmatpush1.msra.mxu0 0.0
      %1362 = vmatprep.subr.mxu0 0.0
      %1363 = vmatpush1.msra.mxu0 0.0
      %1364 = vmatprep.subr.mxu0 0.0
      %1365 = vmatpush1.msra.mxu0 0.0
      %1366 = vmatprep.subr.mxu0 0.0
      %1367 = vmatpush1.msra.mxu0 0.0
      %1368 = vmatprep.subr.mxu0 0.0
      %1369 = vmatpush1.msra.mxu0 0.0
      %1370 = vmatprep.subr.mxu0 0.0
      %1371 = vmatpush1.msra.mxu0 0.0
      %1372 = vmatprep.subr.mxu0 0.0
      %1373 = vmatpush1.msra.mxu0 0.0
      %1374 = vmatprep.subr.mxu0 0.0
      %1375 = vmatpush1.msra.mxu0 0.0
      %1376 = vmatprep.subr.mxu0 0.0
      %1377 = vmatpush1.msra.mxu0 0.0
      %1378 = vmatprep.subr.mxu0 0.0
      %1379 = vmatpush1.msra.mxu0 0.0
      %1380 = vmatprep.subr.mxu0 0.0
      %1381 = vmatpush1.msra.mxu0 0.0
      %1382 = vmatprep.subr.mxu0 0.0
      %1383 = vmatpush1.msra.mxu0 0.0
      %1384 = vmatprep.subr.mxu0 0.0
      %1385 = vmatpush1.msra.mxu0 0.0
      %1386 = vmatprep.subr.mxu0 0.0
      %1387 = vmatpush1.msra.mxu0 0.0
      %1388 = vmatprep.subr.mxu0 0.0
      %1389 = vmatpush1.msra.mxu0 0.0
      %1390 = vmatprep.subr.mxu0 0.0
      %1391 = vmatpush1.msra.mxu0 0.0
      %1392 = vmatprep.subr.mxu0 0.0
      %1393 = vmatpush1.msra.mxu0 0.0
      %1394 = vmatprep.subr.mxu0 0.0
      %1395 = vmatpush1.msra.mxu0 0.0
      %1396 = vmatprep.subr.mxu0 0.0
      %1397 = vmatpush1.msra.mxu0 0.0
      %1398 = vmatprep.subr.mxu0 0.0
      %1399 = vmatpush1.msra.mxu0 0.0
      %1400 = vmatprep.mubr.f32.mxu0 0.0
      %1401 = vmatmul.mubr.f32.gmra.mrb[0].mxu0 %v1001
      %v1402 = vpop.f32.mrb[0].mxu0
      %v1403 = vadd.f32 0.0, %v1402
      %v1404 = vpop.f32.mrb[0].mxu0
      %v1405 = vadd.f32 0.0, %v1404
      %1406 = vmatprep.mubr.f32.mxu0 0.0
      %1407 = vmatmul.mubr.f32.gmra.mrb[0].mxu0 %v1004
      %v1408 = vpop.f32.mrb[0].mxu0
      %v1409 = vadd.f32 0.0, %v1408
      %v1410 = vpop.f32.mrb[0].mxu0
      %v1411 = vadd.f32 0.0, %v1410
      %1412 = vmatprep.mubr.f32.mxu0 0.0
      %1413 = vmatmul.mubr.f32.gmra.mrb[0].mxu0 %v1007
      %v1414 = vpop.f32.mrb[0].mxu0
      %v1415 = vadd.f32 0.0, %v1414
      %v1416 = vpop.f32.mrb[0].mxu0
      %v1417 = vadd.f32 0.0, %v1416
      %1418 = vmatprep.mubr.f32.mxu0 0.0
      %1419 = vmatmul.mubr.f32.gmra.mrb[0].mxu0 %v1010
      %v1420 = vpop.f32.mrb[0].mxu0
      %v1421 = vadd.f32 0.0, %v1420
      %v1422 = vpop.f32.mrb[0].mxu0
      %v1423 = vadd.f32 0.0, %v1422
      %1424 = vmatprep.mubr.f32.mxu0 0.0
      %1425 = vmatmul.mubr.f32.gmra.mrb[0].mxu0 %v1013
      %v1426 = vpop.f32.mrb[0].mxu0
      %v1427 = vadd.f32 0.0, %v1426
      %v1428 = vpop.f32.mrb[0].mxu0
      %v1429 = vadd.f32 0.0, %v1428
      %1430 = vmatprep.mubr.f32.mxu0 0.0
      %1431 = vmatmul.mubr.f32.gmra.mrb[0].mxu0 %v1016
      %v1432 = vpop.f32.mrb[0].mxu0
      %v1433 = vadd.f32 0.0, %v1432
      %v1434 = vpop.f32.mrb[0].mxu0
      %v1435 = vadd.f32 0.0, %v1434
      %1436 = vmatprep.mubr.f32.mxu0 0.0
      %1437 = vmatmul.mubr.f32.gmra.mrb[0].mxu0 %v1019
      %v1438 = vpop.f32.mrb[0].mxu0
      %v1439 = vadd.f32 0.0, %v1438
      %v1440 = vpop.f32.mrb[0].mxu0
      %v1441 = vadd.f32 0.0, %v1440
      %1442 = vmatprep.mubr.f32.mxu0 0.0
      %1443 = vmatmul.mubr.f32.gmra.mrb[0].mxu0 %v1022
      %v1444 = vpop.f32.mrb[0].mxu0
      %v1445 = vadd.f32 0.0, %v1444
      %v1446 = vpop.f32.mrb[0].mxu0
      %v1447 = vadd.f32 0.0, %v1446
      %1448 = vmatprep.mubr.f32.mxu0 0.0
      %1449 = vmatmul.mubr.f32.gmra.mrb[0].mxu0 %v1025
      %v1450 = vpop.f32.mrb[0].mxu0
      %v1451 = vadd.f32 0.0, %v1450
      %v1452 = vpop.f32.mrb[0].mxu0
      %v1453 = vadd.f32 0.0, %v1452
      %1454 = vmatprep.mubr.f32.mxu0 0.0
      %1455 = vmatmul.mubr.f32.gmra.mrb[0].mxu0 %v1028
      %v1456 = vpop.f32.mrb[0].mxu0
      %v1457 = vadd.f32 0.0, %v1456
      %v1458 = vpop.f32.mrb[0].mxu0
      %v1459 = vadd.f32 0.0, %v1458
      %1460 = vmatprep.mubr.f32.mxu0 0.0
      %1461 = vmatmul.mubr.f32.gmra.mrb[0].mxu0 %v1031
      %v1462 = vpop.f32.mrb[0].mxu0
      %v1463 = vadd.f32 0.0, %v1462
      %v1464 = vpop.f32.mrb[0].mxu0
      %v1465 = vadd.f32 0.0, %v1464
      %1466 = vmatprep.mubr.f32.mxu0 0.0
      %1467 = vmatmul.mubr.f32.gmra.mrb[0].mxu0 %v1034
      %v1468 = vpop.f32.mrb[0].mxu0
      %v1469 = vadd.f32 0.0, %v1468
      %v1470 = vpop.f32.mrb[0].mxu0
      %v1471 = vadd.f32 0.0, %v1470
      %1472 = vmatprep.mubr.f32.mxu0 0.0
      %1473 = vmatmul.mubr.f32.gmra.mrb[0].mxu0 %v1037
      %v1474 = vpop.f32.mrb[0].mxu0
      %v1475 = vadd.f32 0.0, %v1474
      %v1476 = vpop.f32.mrb[0].mxu0
      %v1477 = vadd.f32 0.0, %v1476
      %1478 = vmatprep.mubr.f32.mxu0 0.0
      %1479 = vmatmul.mubr.f32.gmra.mrb[0].mxu0 %v1040
      %v1480 = vpop.f32.mrb[0].mxu0
      %v1481 = vadd.f32 0.0, %v1480
      %v1482 = vpop.f32.mrb[0].mxu0
      %v1483 = vadd.f32 0.0, %v1482
      %1484 = vmatprep.mubr.f32.mxu0 0.0
      %1485 = vmatmul.mubr.f32.gmra.mrb[0].mxu0 %v1043
      %v1486 = vpop.f32.mrb[0].mxu0
      %v1487 = vadd.f32 0.0, %v1486
      %v1488 = vpop.f32.mrb[0].mxu0
      %v1489 = vadd.f32 0.0, %v1488
      %1490 = vmatprep.mubr.f32.mxu0 0.0
      %1491 = vmatmul.mubr.f32.gmra.mrb[0].mxu0 %v1046
      %v1492 = vpop.f32.mrb[0].mxu0
      %v1493 = vadd.f32 0.0, %v1492
      %v1494 = vpop.f32.mrb[0].mxu0
      %v1495 = vadd.f32 0.0, %v1494
      %1496 = vmatprep.mubr.f32.mxu0 0.0
      %1497 = vmatmul.mubr.f32.gmra.mrb[0].mxu0 %v1049
      %v1498 = vpop.f32.mrb[0].mxu0
      %v1499 = vadd.f32 0.0, %v1498
      %v1500 = vpop.f32.mrb[0].mxu0
      %v1501 = vadd.f32 0.0, %v1500
      %1502 = vmatprep.mubr.f32.mxu0 0.0
      %1503 = vmatmul.mubr.f32.gmra.mrb[0].mxu0 %v1052
      %v1504 = vpop.f32.mrb[0].mxu0
      %v1505 = vadd.f32 0.0, %v1504
      %v1506 = vpop.f32.mrb[0].mxu0
      %v1507 = vadd.f32 0.0, %v1506
      %1508 = vmatprep.mubr.f32.mxu0 0.0
      %1509 = vmatmul.mubr.f32.gmra.mrb[0].mxu0 %v1055
      %v1510 = vpop.f32.mrb[0].mxu0
      %v1511 = vadd.f32 0.0, %v1510
      %v1512 = vpop.f32.mrb[0].mxu0
      %v1513 = vadd.f32 0.0, %v1512
      %1514 = vmatprep.mubr.f32.mxu0 0.0
      %1515 = vmatmul.mubr.f32.gmra.mrb[0].mxu0 %v1058
      %v1516 = vpop.f32.mrb[0].mxu0
      %v1517 = vadd.f32 0.0, %v1516
      %v1518 = vpop.f32.mrb[0].mxu0
      %v1519 = vadd.f32 0.0, %v1518
      %1520 = vmatprep.mubr.f32.mxu0 0.0
      %1521 = vmatmul.mubr.f32.gmra.mrb[0].mxu0 %v1061
      %v1522 = vpop.f32.mrb[0].mxu0
      %v1523 = vadd.f32 0.0, %v1522
      %v1524 = vpop.f32.mrb[0].mxu0
      %v1525 = vadd.f32 0.0, %v1524
      %1526 = vmatprep.mubr.f32.mxu0 0.0
      %1527 = vmatmul.mubr.f32.gmra.mrb[0].mxu0 %v1064
      %v1528 = vpop.f32.mrb[0].mxu0
      %v1529 = vadd.f32 0.0, %v1528
      %v1530 = vpop.f32.mrb[0].mxu0
      %v1531 = vadd.f32 0.0, %v1530
      %1532 = vmatprep.mubr.f32.mxu0 0.0
      %1533 = vmatmul.mubr.f32.gmra.mrb[0].mxu0 %v1067
      %v1534 = vpop.f32.mrb[0].mxu0
      %v1535 = vadd.f32 0.0, %v1534
      %v1536 = vpop.f32.mrb[0].mxu0
      %v1537 = vadd.f32 0.0, %v1536
      %1538 = vmatprep.mubr.f32.mxu0 0.0
      %1539 = vmatmul.mubr.f32.gmra.mrb[0].mxu0 %v1070
      %v1540 = vpop.f32.mrb[0].mxu0
      %v1541 = vadd.f32 0.0, %v1540
      %v1542 = vpop.f32.mrb[0].mxu0
      %v1543 = vadd.f32 0.0, %v1542
      %1544 = vdwg.mxu0
      %1545 = vmatprep.subr.mxu0 %v622
      %1546 = vmatpush1.msra.mxu0 %v621
      %1547 = vmatprep.subr.mxu0 %v624
      %1548 = vmatpush1.msra.mxu0 %v623
      %1549 = vmatprep.subr.mxu0 %v1089
      %1550 = vmatpush1.msra.mxu0 %v1086
      %1551 = vmatprep.subr.mxu0 0.0
      %1552 = vmatpush1.msra.mxu0 0.0
      %1553 = vmatprep.subr.mxu0 0.0
      %1554 = vmatpush1.msra.mxu0 0.0
      %1555 = vmatprep.subr.mxu0 0.0
      %1556 = vmatpush1.msra.mxu0 0.0
      %1557 = vmatprep.subr.mxu0 0.0
      %1558 = vmatpush1.msra.mxu0 0.0
      %1559 = vmatprep.subr.mxu0 0.0
      %1560 = vmatpush1.msra.mxu0 0.0
      %1561 = vmatprep.subr.mxu0 0.0
      %1562 = vmatpush1.msra.mxu0 0.0
      %1563 = vmatprep.subr.mxu0 0.0
      %1564 = vmatpush1.msra.mxu0 0.0
      %1565 = vmatprep.subr.mxu0 0.0
      %1566 = vmatpush1.msra.mxu0 0.0
      %1567 = vmatprep.subr.mxu0 0.0
      %1568 = vmatpush1.msra.mxu0 0.0
      %1569 = vmatprep.subr.mxu0 0.0
      %1570 = vmatpush1.msra.mxu0 0.0
      %1571 = vmatprep.subr.mxu0 0.0
      %1572 = vmatpush1.msra.mxu0 0.0
      %1573 = vmatprep.subr.mxu0 0.0
      %1574 = vmatpush1.msra.mxu0 0.0
      %1575 = vmatprep.subr.mxu0 0.0
      %1576 = vmatpush1.msra.mxu0 0.0
      %1577 = vmatprep.subr.mxu0 0.0
      %1578 = vmatpush1.msra.mxu0 0.0
      %1579 = vmatprep.subr.mxu0 0.0
      %1580 = vmatpush1.msra.mxu0 0.0
      %1581 = vmatprep.subr.mxu0 0.0
      %1582 = vmatpush1.msra.mxu0 0.0
      %1583 = vmatprep.subr.mxu0 0.0
      %1584 = vmatpush1.msra.mxu0 0.0
      %1585 = vmatprep.subr.mxu0 0.0
      %1586 = vmatpush1.msra.mxu0 0.0
      %1587 = vmatprep.subr.mxu0 0.0
      %1588 = vmatpush1.msra.mxu0 0.0
      %1589 = vmatprep.subr.mxu0 0.0
      %1590 = vmatpush1.msra.mxu0 0.0
      %1591 = vmatprep.subr.mxu0 0.0
      %1592 = vmatpush1.msra.mxu0 0.0
      %1593 = vmatprep.subr.mxu0 0.0
      %1594 = vmatpush1.msra.mxu0 0.0
      %1595 = vmatprep.subr.mxu0 0.0
      %1596 = vmatpush1.msra.mxu0 0.0
      %1597 = vmatprep.subr.mxu0 0.0
      %1598 = vmatpush1.msra.mxu0 0.0
      %1599 = vmatprep.subr.mxu0 0.0
      %1600 = vmatpush1.msra.mxu0 0.0
      %1601 = vmatprep.subr.mxu0 0.0
      %1602 = vmatpush1.msra.mxu0 0.0
      %1603 = vmatprep.subr.mxu0 0.0
      %1604 = vmatpush1.msra.mxu0 0.0
      %1605 = vmatprep.subr.mxu0 0.0
      %1606 = vmatpush1.msra.mxu0 0.0
      %1607 = vmatprep.subr.mxu0 0.0
      %1608 = vmatpush1.msra.mxu0 0.0
      %1609 = vmatprep.mubr.f32.mxu0 0.0
      %1610 = vmatmul.mubr.f32.gmra.mrb[0].mxu0 %v1001
      %v1611 = vpop.f32.mrb[0].mxu0
      %v1612 = vadd.f32 0.0, %v1611
      %v1613 = vpop.f32.mrb[0].mxu0
      %v1614 = vadd.f32 0.0, %v1613
      %1615 = vmatprep.mubr.f32.mxu0 0.0
      %1616 = vmatmul.mubr.f32.gmra.mrb[0].mxu0 %v1004
      %v1617 = vpop.f32.mrb[0].mxu0
      %v1618 = vadd.f32 0.0, %v1617
      %v1619 = vpop.f32.mrb[0].mxu0
      %v1620 = vadd.f32 0.0, %v1619
      %1621 = vmatprep.mubr.f32.mxu0 0.0
      %1622 = vmatmul.mubr.f32.gmra.mrb[0].mxu0 %v1007
      %v1623 = vpop.f32.mrb[0].mxu0
      %v1624 = vadd.f32 0.0, %v1623
      %v1625 = vpop.f32.mrb[0].mxu0
      %v1626 = vadd.f32 0.0, %v1625
      %1627 = vmatprep.mubr.f32.mxu0 0.0
      %1628 = vmatmul.mubr.f32.gmra.mrb[0].mxu0 %v1010
      %v1629 = vpop.f32.mrb[0].mxu0
      %v1630 = vadd.f32 0.0, %v1629
      %v1631 = vpop.f32.mrb[0].mxu0
      %v1632 = vadd.f32 0.0, %v1631
      %1633 = vmatprep.mubr.f32.mxu0 0.0
      %1634 = vmatmul.mubr.f32.gmra.mrb[0].mxu0 %v1013
      %v1635 = vpop.f32.mrb[0].mxu0
      %v1636 = vadd.f32 0.0, %v1635
      %v1637 = vpop.f32.mrb[0].mxu0
      %v1638 = vadd.f32 0.0, %v1637
      %1639 = vmatprep.mubr.f32.mxu0 0.0
      %1640 = vmatmul.mubr.f32.gmra.mrb[0].mxu0 %v1016
      %v1641 = vpop.f32.mrb[0].mxu0
      %v1642 = vadd.f32 0.0, %v1641
      %v1643 = vpop.f32.mrb[0].mxu0
      %v1644 = vadd.f32 0.0, %v1643
      %1645 = vmatprep.mubr.f32.mxu0 0.0
      %1646 = vmatmul.mubr.f32.gmra.mrb[0].mxu0 %v1019
      %v1647 = vpop.f32.mrb[0].mxu0
      %v1648 = vadd.f32 0.0, %v1647
      %v1649 = vpop.f32.mrb[0].mxu0
      %v1650 = vadd.f32 0.0, %v1649
      %1651 = vmatprep.mubr.f32.mxu0 0.0
      %1652 = vmatmul.mubr.f32.gmra.mrb[0].mxu0 %v1022
      %v1653 = vpop.f32.mrb[0].mxu0
      %v1654 = vadd.f32 0.0, %v1653
      %v1655 = vpop.f32.mrb[0].mxu0
      %v1656 = vadd.f32 0.0, %v1655
      %1657 = vmatprep.mubr.f32.mxu0 0.0
      %1658 = vmatmul.mubr.f32.gmra.mrb[0].mxu0 %v1025
      %v1659 = vpop.f32.mrb[0].mxu0
      %v1660 = vadd.f32 0.0, %v1659
      %v1661 = vpop.f32.mrb[0].mxu0
      %v1662 = vadd.f32 0.0, %v1661
      %1663 = vmatprep.mubr.f32.mxu0 0.0
      %1664 = vmatmul.mubr.f32.gmra.mrb[0].mxu0 %v1028
      %v1665 = vpop.f32.mrb[0].mxu0
      %v1666 = vadd.f32 0.0, %v1665
      %v1667 = vpop.f32.mrb[0].mxu0
      %v1668 = vadd.f32 0.0, %v1667
      %1669 = vmatprep.mubr.f32.mxu0 0.0
      %1670 = vmatmul.mubr.f32.gmra.mrb[0].mxu0 %v1031
      %v1671 = vpop.f32.mrb[0].mxu0
      %v1672 = vadd.f32 0.0, %v1671
      %v1673 = vpop.f32.mrb[0].mxu0
      %v1674 = vadd.f32 0.0, %v1673
      %1675 = vmatprep.mubr.f32.mxu0 0.0
      %1676 = vmatmul.mubr.f32.gmra.mrb[0].mxu0 %v1034
      %v1677 = vpop.f32.mrb[0].mxu0
      %v1678 = vadd.f32 0.0, %v1677
      %v1679 = vpop.f32.mrb[0].mxu0
      %v1680 = vadd.f32 0.0, %v1679
      %1681 = vmatprep.mubr.f32.mxu0 0.0
      %1682 = vmatmul.mubr.f32.gmra.mrb[0].mxu0 %v1037
      %v1683 = vpop.f32.mrb[0].mxu0
      %v1684 = vadd.f32 0.0, %v1683
      %v1685 = vpop.f32.mrb[0].mxu0
      %v1686 = vadd.f32 0.0, %v1685
      %1687 = vmatprep.mubr.f32.mxu0 0.0
      %1688 = vmatmul.mubr.f32.gmra.mrb[0].mxu0 %v1040
      %v1689 = vpop.f32.mrb[0].mxu0
      %v1690 = vadd.f32 0.0, %v1689
      %v1691 = vpop.f32.mrb[0].mxu0
      %v1692 = vadd.f32 0.0, %v1691
      %1693 = vmatprep.mubr.f32.mxu0 0.0
      %1694 = vmatmul.mubr.f32.gmra.mrb[0].mxu0 %v1043
      %v1695 = vpop.f32.mrb[0].mxu0
      %v1696 = vadd.f32 0.0, %v1695
      %v1697 = vpop.f32.mrb[0].mxu0
      %v1698 = vadd.f32 0.0, %v1697
      %1699 = vmatprep.mubr.f32.mxu0 0.0
      %1700 = vmatmul.mubr.f32.gmra.mrb[0].mxu0 %v1046
      %v1701 = vpop.f32.mrb[0].mxu0
      %v1702 = vadd.f32 0.0, %v1701
      %v1703 = vpop.f32.mrb[0].mxu0
      %v1704 = vadd.f32 0.0, %v1703
      %1705 = vmatprep.mubr.f32.mxu0 0.0
      %1706 = vmatmul.mubr.f32.gmra.mrb[0].mxu0 %v1049
      %v1707 = vpop.f32.mrb[0].mxu0
      %v1708 = vadd.f32 0.0, %v1707
      %v1709 = vpop.f32.mrb[0].mxu0
      %v1710 = vadd.f32 0.0, %v1709
      %1711 = vmatprep.mubr.f32.mxu0 0.0
      %1712 = vmatmul.mubr.f32.gmra.mrb[0].mxu0 %v1052
      %v1713 = vpop.f32.mrb[0].mxu0
      %v1714 = vadd.f32 0.0, %v1713
      %v1715 = vpop.f32.mrb[0].mxu0
      %v1716 = vadd.f32 0.0, %v1715
      %1717 = vmatprep.mubr.f32.mxu0 0.0
      %1718 = vmatmul.mubr.f32.gmra.mrb[0].mxu0 %v1055
      %v1719 = vpop.f32.mrb[0].mxu0
      %v1720 = vadd.f32 0.0, %v1719
      %v1721 = vpop.f32.mrb[0].mxu0
      %v1722 = vadd.f32 0.0, %v1721
      %1723 = vmatprep.mubr.f32.mxu0 0.0
      %1724 = vmatmul.mubr.f32.gmra.mrb[0].mxu0 %v1058
      %v1725 = vpop.f32.mrb[0].mxu0
      %v1726 = vadd.f32 0.0, %v1725
      %v1727 = vpop.f32.mrb[0].mxu0
      %v1728 = vadd.f32 0.0, %v1727
      %1729 = vmatprep.mubr.f32.mxu0 0.0
      %1730 = vmatmul.mubr.f32.gmra.mrb[0].mxu0 %v1061
      %v1731 = vpop.f32.mrb[0].mxu0
      %v1732 = vadd.f32 0.0, %v1731
      %v1733 = vpop.f32.mrb[0].mxu0
      %v1734 = vadd.f32 0.0, %v1733
      %1735 = vmatprep.mubr.f32.mxu0 0.0
      %1736 = vmatmul.mubr.f32.gmra.mrb[0].mxu0 %v1064
      %v1737 = vpop.f32.mrb[0].mxu0
      %v1738 = vadd.f32 0.0, %v1737
      %v1739 = vpop.f32.mrb[0].mxu0
      %v1740 = vadd.f32 0.0, %v1739
      %1741 = vmatprep.mubr.f32.mxu0 0.0
      %1742 = vmatmul.mubr.f32.gmra.mrb[0].mxu0 %v1067
      %v1743 = vpop.f32.mrb[0].mxu0
      %v1744 = vadd.f32 0.0, %v1743
      %v1745 = vpop.f32.mrb[0].mxu0
      %v1746 = vadd.f32 0.0, %v1745
      %1747 = vmatprep.mubr.f32.mxu0 0.0
      %1748 = vmatmul.mubr.f32.gmra.mrb[0].mxu0 %v1070
      %v1749 = vpop.f32.mrb[0].mxu0
      %v1750 = vadd.f32 0.0, %v1749
      %v1751 = vpop.f32.mrb[0].mxu0
      %v1752 = vadd.f32 0.0, %v1751
      %1753 = vdwg.mxu0
      %1754 = vmatprep.subr.mxu0 %v684
      %1755 = vmatpush1.msra.mxu0 %v683
      %1756 = vmatprep.subr.mxu0 %v686
      %1757 = vmatpush1.msra.mxu0 %v685
      %1758 = vmatprep.subr.mxu0 %v1095
      %1759 = vmatpush1.msra.mxu0 %v1092
      %1760 = vmatprep.subr.mxu0 0.0
      %1761 = vmatpush1.msra.mxu0 0.0
      %1762 = vmatprep.subr.mxu0 0.0
      %1763 = vmatpush1.msra.mxu0 0.0
      %1764 = vmatprep.subr.mxu0 0.0
      %1765 = vmatpush1.msra.mxu0 0.0
      %1766 = vmatprep.subr.mxu0 0.0
      %1767 = vmatpush1.msra.mxu0 0.0
      %1768 = vmatprep.subr.mxu0 0.0
      %1769 = vmatpush1.msra.mxu0 0.0
      %1770 = vmatprep.subr.mxu0 0.0
      %1771 = vmatpush1.msra.mxu0 0.0
      %1772 = vmatprep.subr.mxu0 0.0
      %1773 = vmatpush1.msra.mxu0 0.0
      %1774 = vmatprep.subr.mxu0 0.0
      %1775 = vmatpush1.msra.mxu0 0.0
      %1776 = vmatprep.subr.mxu0 0.0
      %1777 = vmatpush1.msra.mxu0 0.0
      %1778 = vmatprep.subr.mxu0 0.0
      %1779 = vmatpush1.msra.mxu0 0.0
      %1780 = vmatprep.subr.mxu0 0.0
      %1781 = vmatpush1.msra.mxu0 0.0
      %1782 = vmatprep.subr.mxu0 0.0
      %1783 = vmatpush1.msra.mxu0 0.0
      %1784 = vmatprep.subr.mxu0 0.0
      %1785 = vmatpush1.msra.mxu0 0.0
      %1786 = vmatprep.subr.mxu0 0.0
      %1787 = vmatpush1.msra.mxu0 0.0
      %1788 = vmatprep.subr.mxu0 0.0
      %1789 = vmatpush1.msra.mxu0 0.0
      %1790 = vmatprep.subr.mxu0 0.0
      %1791 = vmatpush1.msra.mxu0 0.0
      %1792 = vmatprep.subr.mxu0 0.0
      %1793 = vmatpush1.msra.mxu0 0.0
      %1794 = vmatprep.subr.mxu0 0.0
      %1795 = vmatpush1.msra.mxu0 0.0
      %1796 = vmatprep.subr.mxu0 0.0
      %1797 = vmatpush1.msra.mxu0 0.0
      %1798 = vmatprep.subr.mxu0 0.0
      %1799 = vmatpush1.msra.mxu0 0.0
      %1800 = vmatprep.subr.mxu0 0.0
      %1801 = vmatpush1.msra.mxu0 0.0
      %1802 = vmatprep.subr.mxu0 0.0
      %1803 = vmatpush1.msra.mxu0 0.0
      %1804 = vmatprep.subr.mxu0 0.0
      %1805 = vmatpush1.msra.mxu0 0.0
      %1806 = vmatprep.subr.mxu0 0.0
      %1807 = vmatpush1.msra.mxu0 0.0
      %1808 = vmatprep.subr.mxu0 0.0
      %1809 = vmatpush1.msra.mxu0 0.0
      %1810 = vmatprep.subr.mxu0 0.0
      %1811 = vmatpush1.msra.mxu0 0.0
      %1812 = vmatprep.subr.mxu0 0.0
      %1813 = vmatpush1.msra.mxu0 0.0
      %1814 = vmatprep.subr.mxu0 0.0
      %1815 = vmatpush1.msra.mxu0 0.0
      %1816 = vmatprep.subr.mxu0 0.0
      %1817 = vmatpush1.msra.mxu0 0.0
      %1818 = vmatprep.mubr.f32.mxu0 0.0
      %1819 = vmatmul.mubr.f32.gmra.mrb[0].mxu0 %v1001
      %v1820 = vpop.f32.mrb[0].mxu0
      %v1821 = vadd.f32 0.0, %v1820
      %v1822 = vpop.f32.mrb[0].mxu0
      %v1823 = vadd.f32 0.0, %v1822
      %1824 = vmatprep.mubr.f32.mxu0 0.0
      %1825 = vmatmul.mubr.f32.gmra.mrb[0].mxu0 %v1004
      %v1826 = vpop.f32.mrb[0].mxu0
      %v1827 = vadd.f32 0.0, %v1826
      %v1828 = vpop.f32.mrb[0].mxu0
      %v1829 = vadd.f32 0.0, %v1828
      %1830 = vmatprep.mubr.f32.mxu0 0.0
      %1831 = vmatmul.mubr.f32.gmra.mrb[0].mxu0 %v1007
      %v1832 = vpop.f32.mrb[0].mxu0
      %v1833 = vadd.f32 0.0, %v1832
      %v1834 = vpop.f32.mrb[0].mxu0
      %v1835 = vadd.f32 0.0, %v1834
      %1836 = vmatprep.mubr.f32.mxu0 0.0
      %1837 = vmatmul.mubr.f32.gmra.mrb[0].mxu0 %v1010
      %v1838 = vpop.f32.mrb[0].mxu0
      %v1839 = vadd.f32 0.0, %v1838
      %v1840 = vpop.f32.mrb[0].mxu0
      %v1841 = vadd.f32 0.0, %v1840
      %1842 = vmatprep.mubr.f32.mxu0 0.0
      %1843 = vmatmul.mubr.f32.gmra.mrb[0].mxu0 %v1013
      %v1844 = vpop.f32.mrb[0].mxu0
      %v1845 = vadd.f32 0.0, %v1844
      %v1846 = vpop.f32.mrb[0].mxu0
      %v1847 = vadd.f32 0.0, %v1846
      %1848 = vmatprep.mubr.f32.mxu0 0.0
      %1849 = vmatmul.mubr.f32.gmra.mrb[0].mxu0 %v1016
      %v1850 = vpop.f32.mrb[0].mxu0
      %v1851 = vadd.f32 0.0, %v1850
      %v1852 = vpop.f32.mrb[0].mxu0
      %v1853 = vadd.f32 0.0, %v1852
      %1854 = vmatprep.mubr.f32.mxu0 0.0
      %1855 = vmatmul.mubr.f32.gmra.mrb[0].mxu0 %v1019
      %v1856 = vpop.f32.mrb[0].mxu0
      %v1857 = vadd.f32 0.0, %v1856
      %v1858 = vpop.f32.mrb[0].mxu0
      %v1859 = vadd.f32 0.0, %v1858
      %1860 = vmatprep.mubr.f32.mxu0 0.0
      %1861 = vmatmul.mubr.f32.gmra.mrb[0].mxu0 %v1022
      %v1862 = vpop.f32.mrb[0].mxu0
      %v1863 = vadd.f32 0.0, %v1862
      %v1864 = vpop.f32.mrb[0].mxu0
      %v1865 = vadd.f32 0.0, %v1864
      %1866 = vmatprep.mubr.f32.mxu0 0.0
      %1867 = vmatmul.mubr.f32.gmra.mrb[0].mxu0 %v1025
      %v1868 = vpop.f32.mrb[0].mxu0
      %v1869 = vadd.f32 0.0, %v1868
      %v1870 = vpop.f32.mrb[0].mxu0
      %v1871 = vadd.f32 0.0, %v1870
      %1872 = vmatprep.mubr.f32.mxu0 0.0
      %1873 = vmatmul.mubr.f32.gmra.mrb[0].mxu0 %v1028
      %v1874 = vpop.f32.mrb[0].mxu0
      %v1875 = vadd.f32 0.0, %v1874
      %v1876 = vpop.f32.mrb[0].mxu0
      %v1877 = vadd.f32 0.0, %v1876
      %1878 = vmatprep.mubr.f32.mxu0 0.0
      %1879 = vmatmul.mubr.f32.gmra.mrb[0].mxu0 %v1031
      %v1880 = vpop.f32.mrb[0].mxu0
      %v1881 = vadd.f32 0.0, %v1880
      %v1882 = vpop.f32.mrb[0].mxu0
      %v1883 = vadd.f32 0.0, %v1882
      %1884 = vmatprep.mubr.f32.mxu0 0.0
      %1885 = vmatmul.mubr.f32.gmra.mrb[0].mxu0 %v1034
      %v1886 = vpop.f32.mrb[0].mxu0
      %v1887 = vadd.f32 0.0, %v1886
      %v1888 = vpop.f32.mrb[0].mxu0
      %v1889 = vadd.f32 0.0, %v1888
      %1890 = vmatprep.mubr.f32.mxu0 0.0
      %1891 = vmatmul.mubr.f32.gmra.mrb[0].mxu0 %v1037
      %v1892 = vpop.f32.mrb[0].mxu0
      %v1893 = vadd.f32 0.0, %v1892
      %v1894 = vpop.f32.mrb[0].mxu0
      %v1895 = vadd.f32 0.0, %v1894
      %1896 = vmatprep.mubr.f32.mxu0 0.0
      %1897 = vmatmul.mubr.f32.gmra.mrb[0].mxu0 %v1040
      %v1898 = vpop.f32.mrb[0].mxu0
      %v1899 = vadd.f32 0.0, %v1898
      %v1900 = vpop.f32.mrb[0].mxu0
      %v1901 = vadd.f32 0.0, %v1900
      %1902 = vmatprep.mubr.f32.mxu0 0.0
      %1903 = vmatmul.mubr.f32.gmra.mrb[0].mxu0 %v1043
      %v1904 = vpop.f32.mrb[0].mxu0
      %v1905 = vadd.f32 0.0, %v1904
      %v1906 = vpop.f32.mrb[0].mxu0
      %v1907 = vadd.f32 0.0, %v1906
      %1908 = vmatprep.mubr.f32.mxu0 0.0
      %1909 = vmatmul.mubr.f32.gmra.mrb[0].mxu0 %v1046
      %v1910 = vpop.f32.mrb[0].mxu0
      %v1911 = vadd.f32 0.0, %v1910
      %v1912 = vpop.f32.mrb[0].mxu0
      %v1913 = vadd.f32 0.0, %v1912
      %1914 = vmatprep.mubr.f32.mxu0 0.0
      %1915 = vmatmul.mubr.f32.gmra.mrb[0].mxu0 %v1049
      %v1916 = vpop.f32.mrb[0].mxu0
      %v1917 = vadd.f32 0.0, %v1916
      %v1918 = vpop.f32.mrb[0].mxu0
      %v1919 = vadd.f32 0.0, %v1918
      %1920 = vmatprep.mubr.f32.mxu0 0.0
      %1921 = vmatmul.mubr.f32.gmra.mrb[0].mxu0 %v1052
      %v1922 = vpop.f32.mrb[0].mxu0
      %v1923 = vadd.f32 0.0, %v1922
      %v1924 = vpop.f32.mrb[0].mxu0
      %v1925 = vadd.f32 0.0, %v1924
      %1926 = vmatprep.mubr.f32.mxu0 0.0
      %1927 = vmatmul.mubr.f32.gmra.mrb[0].mxu0 %v1055
      %v1928 = vpop.f32.mrb[0].mxu0
      %v1929 = vadd.f32 0.0, %v1928
      %v1930 = vpop.f32.mrb[0].mxu0
      %v1931 = vadd.f32 0.0, %v1930
      %1932 = vmatprep.mubr.f32.mxu0 0.0
      %1933 = vmatmul.mubr.f32.gmra.mrb[0].mxu0 %v1058
      %v1934 = vpop.f32.mrb[0].mxu0
      %v1935 = vadd.f32 0.0, %v1934
      %v1936 = vpop.f32.mrb[0].mxu0
      %v1937 = vadd.f32 0.0, %v1936
      %1938 = vmatprep.mubr.f32.mxu0 0.0
      %1939 = vmatmul.mubr.f32.gmra.mrb[0].mxu0 %v1061
      %v1940 = vpop.f32.mrb[0].mxu0
      %v1941 = vadd.f32 0.0, %v1940
      %v1942 = vpop.f32.mrb[0].mxu0
      %v1943 = vadd.f32 0.0, %v1942
      %1944 = vmatprep.mubr.f32.mxu0 0.0
      %1945 = vmatmul.mubr.f32.gmra.mrb[0].mxu0 %v1064
      %v1946 = vpop.f32.mrb[0].mxu0
      %v1947 = vadd.f32 0.0, %v1946
      %v1948 = vpop.f32.mrb[0].mxu0
      %v1949 = vadd.f32 0.0, %v1948
      %1950 = vmatprep.mubr.f32.mxu0 0.0
      %1951 = vmatmul.mubr.f32.gmra.mrb[0].mxu0 %v1067
      %v1952 = vpop.f32.mrb[0].mxu0
      %v1953 = vadd.f32 0.0, %v1952
      %v1954 = vpop.f32.mrb[0].mxu0
      %v1955 = vadd.f32 0.0, %v1954
      %1956 = vmatprep.mubr.f32.mxu0 0.0
      %1957 = vmatmul.mubr.f32.gmra.mrb[0].mxu0 %v1070
      %v1958 = vpop.f32.mrb[0].mxu0
      %v1959 = vadd.f32 0.0, %v1958
      %v1960 = vpop.f32.mrb[0].mxu0
      %v1961 = vadd.f32 0.0, %v1960
      %1962 = vdwg.mxu0
      %1963 = vmatprep.subr.mxu0 %v746
      %1964 = vmatpush1.msra.mxu0 %v745
      %1965 = vmatprep.subr.mxu0 %v748
      %1966 = vmatpush1.msra.mxu0 %v747
      %1967 = vmatprep.subr.mxu0 %v1101
      %1968 = vmatpush1.msra.mxu0 %v1098
      %1969 = vmatprep.subr.mxu0 0.0
      %1970 = vmatpush1.msra.mxu0 0.0
      %1971 = vmatprep.subr.mxu0 0.0
      %1972 = vmatpush1.msra.mxu0 0.0
      %1973 = vmatprep.subr.mxu0 0.0
      %1974 = vmatpush1.msra.mxu0 0.0
      %1975 = vmatprep.subr.mxu0 0.0
      %1976 = vmatpush1.msra.mxu0 0.0
      %1977 = vmatprep.subr.mxu0 0.0
      %1978 = vmatpush1.msra.mxu0 0.0
      %1979 = vmatprep.subr.mxu0 0.0
      %1980 = vmatpush1.msra.mxu0 0.0
      %1981 = vmatprep.subr.mxu0 0.0
      %1982 = vmatpush1.msra.mxu0 0.0
      %1983 = vmatprep.subr.mxu0 0.0
      %1984 = vmatpush1.msra.mxu0 0.0
      %1985 = vmatprep.subr.mxu0 0.0
      %1986 = vmatpush1.msra.mxu0 0.0
      %1987 = vmatprep.subr.mxu0 0.0
      %1988 = vmatpush1.msra.mxu0 0.0
      %1989 = vmatprep.subr.mxu0 0.0
      %1990 = vmatpush1.msra.mxu0 0.0
      %1991 = vmatprep.subr.mxu0 0.0
      %1992 = vmatpush1.msra.mxu0 0.0
      %1993 = vmatprep.subr.mxu0 0.0
      %1994 = vmatpush1.msra.mxu0 0.0
      %1995 = vmatprep.subr.mxu0 0.0
      %1996 = vmatpush1.msra.mxu0 0.0
      %1997 = vmatprep.subr.mxu0 0.0
      %1998 = vmatpush1.msra.mxu0 0.0
      %1999 = vmatprep.subr.mxu0 0.0
      %2000 = vmatpush1.msra.mxu0 0.0
      %2001 = vmatprep.subr.mxu0 0.0
      %2002 = vmatpush1.msra.mxu0 0.0
      %2003 = vmatprep.subr.mxu0 0.0
      %2004 = vmatpush1.msra.mxu0 0.0
      %2005 = vmatprep.subr.mxu0 0.0
      %2006 = vmatpush1.msra.mxu0 0.0
      %2007 = vmatprep.subr.mxu0 0.0
      %2008 = vmatpush1.msra.mxu0 0.0
      %2009 = vmatprep.subr.mxu0 0.0
      %2010 = vmatpush1.msra.mxu0 0.0
      %2011 = vmatprep.subr.mxu0 0.0
      %2012 = vmatpush1.msra.mxu0 0.0
      %2013 = vmatprep.subr.mxu0 0.0
      %2014 = vmatpush1.msra.mxu0 0.0
      %2015 = vmatprep.subr.mxu0 0.0
      %2016 = vmatpush1.msra.mxu0 0.0
      %2017 = vmatprep.subr.mxu0 0.0
      %2018 = vmatpush1.msra.mxu0 0.0
      %2019 = vmatprep.subr.mxu0 0.0
      %2020 = vmatpush1.msra.mxu0 0.0
      %2021 = vmatprep.subr.mxu0 0.0
      %2022 = vmatpush1.msra.mxu0 0.0
      %2023 = vmatprep.subr.mxu0 0.0
      %2024 = vmatpush1.msra.mxu0 0.0
      %2025 = vmatprep.subr.mxu0 0.0
      %2026 = vmatpush1.msra.mxu0 0.0
      %2027 = vmatprep.mubr.f32.mxu0 0.0
      %2028 = vmatmul.mubr.f32.gmra.mrb[0].mxu0 %v1001
      %v2029 = vpop.f32.mrb[0].mxu0
      %v2030 = vadd.f32 0.0, %v2029
      %v2031 = vpop.f32.mrb[0].mxu0
      %v2032 = vadd.f32 0.0, %v2031
      %2033 = vmatprep.mubr.f32.mxu0 0.0
      %2034 = vmatmul.mubr.f32.gmra.mrb[0].mxu0 %v1004
      %v2035 = vpop.f32.mrb[0].mxu0
      %v2036 = vadd.f32 0.0, %v2035
      %v2037 = vpop.f32.mrb[0].mxu0
      %v2038 = vadd.f32 0.0, %v2037
      %2039 = vmatprep.mubr.f32.mxu0 0.0
      %2040 = vmatmul.mubr.f32.gmra.mrb[0].mxu0 %v1007
      %v2041 = vpop.f32.mrb[0].mxu0
      %v2042 = vadd.f32 0.0, %v2041
      %v2043 = vpop.f32.mrb[0].mxu0
      %v2044 = vadd.f32 0.0, %v2043
      %2045 = vmatprep.mubr.f32.mxu0 0.0
      %2046 = vmatmul.mubr.f32.gmra.mrb[0].mxu0 %v1010
      %v2047 = vpop.f32.mrb[0].mxu0
      %v2048 = vadd.f32 0.0, %v2047
      %v2049 = vpop.f32.mrb[0].mxu0
      %v2050 = vadd.f32 0.0, %v2049
      %2051 = vmatprep.mubr.f32.mxu0 0.0
      %2052 = vmatmul.mubr.f32.gmra.mrb[0].mxu0 %v1013
      %v2053 = vpop.f32.mrb[0].mxu0
      %v2054 = vadd.f32 0.0, %v2053
      %v2055 = vpop.f32.mrb[0].mxu0
      %v2056 = vadd.f32 0.0, %v2055
      %2057 = vmatprep.mubr.f32.mxu0 0.0
      %2058 = vmatmul.mubr.f32.gmra.mrb[0].mxu0 %v1016
      %v2059 = vpop.f32.mrb[0].mxu0
      %v2060 = vadd.f32 0.0, %v2059
      %v2061 = vpop.f32.mrb[0].mxu0
      %v2062 = vadd.f32 0.0, %v2061
      %2063 = vmatprep.mubr.f32.mxu0 0.0
      %2064 = vmatmul.mubr.f32.gmra.mrb[0].mxu0 %v1019
      %v2065 = vpop.f32.mrb[0].mxu0
      %v2066 = vadd.f32 0.0, %v2065
      %v2067 = vpop.f32.mrb[0].mxu0
      %v2068 = vadd.f32 0.0, %v2067
      %2069 = vmatprep.mubr.f32.mxu0 0.0
      %2070 = vmatmul.mubr.f32.gmra.mrb[0].mxu0 %v1022
      %v2071 = vpop.f32.mrb[0].mxu0
      %v2072 = vadd.f32 0.0, %v2071
      %v2073 = vpop.f32.mrb[0].mxu0
      %v2074 = vadd.f32 0.0, %v2073
      %2075 = vmatprep.mubr.f32.mxu0 0.0
      %2076 = vmatmul.mubr.f32.gmra.mrb[0].mxu0 %v1025
      %v2077 = vpop.f32.mrb[0].mxu0
      %v2078 = vadd.f32 0.0, %v2077
      %v2079 = vpop.f32.mrb[0].mxu0
      %v2080 = vadd.f32 0.0, %v2079
      %2081 = vmatprep.mubr.f32.mxu0 0.0
      %2082 = vmatmul.mubr.f32.gmra.mrb[0].mxu0 %v1028
      %v2083 = vpop.f32.mrb[0].mxu0
      %v2084 = vadd.f32 0.0, %v2083
      %v2085 = vpop.f32.mrb[0].mxu0
      %v2086 = vadd.f32 0.0, %v2085
      %2087 = vmatprep.mubr.f32.mxu0 0.0
      %2088 = vmatmul.mubr.f32.gmra.mrb[0].mxu0 %v1031
      %v2089 = vpop.f32.mrb[0].mxu0
      %v2090 = vadd.f32 0.0, %v2089
      %v2091 = vpop.f32.mrb[0].mxu0
      %v2092 = vadd.f32 0.0, %v2091
      %2093 = vmatprep.mubr.f32.mxu0 0.0
      %2094 = vmatmul.mubr.f32.gmra.mrb[0].mxu0 %v1034
      %v2095 = vpop.f32.mrb[0].mxu0
      %v2096 = vadd.f32 0.0, %v2095
      %v2097 = vpop.f32.mrb[0].mxu0
      %v2098 = vadd.f32 0.0, %v2097
      %2099 = vmatprep.mubr.f32.mxu0 0.0
      %2100 = vmatmul.mubr.f32.gmra.mrb[0].mxu0 %v1037
      %v2101 = vpop.f32.mrb[0].mxu0
      %v2102 = vadd.f32 0.0, %v2101
      %v2103 = vpop.f32.mrb[0].mxu0
      %v2104 = vadd.f32 0.0, %v2103
      %2105 = vmatprep.mubr.f32.mxu0 0.0
      %2106 = vmatmul.mubr.f32.gmra.mrb[0].mxu0 %v1040
      %v2107 = vpop.f32.mrb[0].mxu0
      %v2108 = vadd.f32 0.0, %v2107
      %v2109 = vpop.f32.mrb[0].mxu0
      %v2110 = vadd.f32 0.0, %v2109
      %2111 = vmatprep.mubr.f32.mxu0 0.0
      %2112 = vmatmul.mubr.f32.gmra.mrb[0].mxu0 %v1043
      %v2113 = vpop.f32.mrb[0].mxu0
      %v2114 = vadd.f32 0.0, %v2113
      %v2115 = vpop.f32.mrb[0].mxu0
      %v2116 = vadd.f32 0.0, %v2115
      %2117 = vmatprep.mubr.f32.mxu0 0.0
      %2118 = vmatmul.mubr.f32.gmra.mrb[0].mxu0 %v1046
      %v2119 = vpop.f32.mrb[0].mxu0
      %v2120 = vadd.f32 0.0, %v2119
      %v2121 = vpop.f32.mrb[0].mxu0
      %v2122 = vadd.f32 0.0, %v2121
      %2123 = vmatprep.mubr.f32.mxu0 0.0
      %2124 = vmatmul.mubr.f32.gmra.mrb[0].mxu0 %v1049
      %v2125 = vpop.f32.mrb[0].mxu0
      %v2126 = vadd.f32 0.0, %v2125
      %v2127 = vpop.f32.mrb[0].mxu0
      %v2128 = vadd.f32 0.0, %v2127
      %2129 = vmatprep.mubr.f32.mxu0 0.0
      %2130 = vmatmul.mubr.f32.gmra.mrb[0].mxu0 %v1052
      %v2131 = vpop.f32.mrb[0].mxu0
      %v2132 = vadd.f32 0.0, %v2131
      %v2133 = vpop.f32.mrb[0].mxu0
      %v2134 = vadd.f32 0.0, %v2133
      %2135 = vmatprep.mubr.f32.mxu0 0.0
      %2136 = vmatmul.mubr.f32.gmra.mrb[0].mxu0 %v1055
      %v2137 = vpop.f32.mrb[0].mxu0
      %v2138 = vadd.f32 0.0, %v2137
      %v2139 = vpop.f32.mrb[0].mxu0
      %v2140 = vadd.f32 0.0, %v2139
      %2141 = vmatprep.mubr.f32.mxu0 0.0
      %2142 = vmatmul.mubr.f32.gmra.mrb[0].mxu0 %v1058
      %v2143 = vpop.f32.mrb[0].mxu0
      %v2144 = vadd.f32 0.0, %v2143
      %v2145 = vpop.f32.mrb[0].mxu0
      %v2146 = vadd.f32 0.0, %v2145
      %2147 = vmatprep.mubr.f32.mxu0 0.0
      %2148 = vmatmul.mubr.f32.gmra.mrb[0].mxu0 %v1061
      %v2149 = vpop.f32.mrb[0].mxu0
      %v2150 = vadd.f32 0.0, %v2149
      %v2151 = vpop.f32.mrb[0].mxu0
      %v2152 = vadd.f32 0.0, %v2151
      %2153 = vmatprep.mubr.f32.mxu0 0.0
      %2154 = vmatmul.mubr.f32.gmra.mrb[0].mxu0 %v1064
      %v2155 = vpop.f32.mrb[0].mxu0
      %v2156 = vadd.f32 0.0, %v2155
      %v2157 = vpop.f32.mrb[0].mxu0
      %v2158 = vadd.f32 0.0, %v2157
      %2159 = vmatprep.mubr.f32.mxu0 0.0
      %2160 = vmatmul.mubr.f32.gmra.mrb[0].mxu0 %v1067
      %v2161 = vpop.f32.mrb[0].mxu0
      %v2162 = vadd.f32 0.0, %v2161
      %v2163 = vpop.f32.mrb[0].mxu0
      %v2164 = vadd.f32 0.0, %v2163
      %2165 = vmatprep.mubr.f32.mxu0 0.0
      %2166 = vmatmul.mubr.f32.gmra.mrb[0].mxu0 %v1070
      %v2167 = vpop.f32.mrb[0].mxu0
      %v2168 = vadd.f32 0.0, %v2167
      %v2169 = vpop.f32.mrb[0].mxu0
      %v2170 = vadd.f32 0.0, %v2169
      %2171 = vdwg.mxu0
      %2172 = vmatprep.subr.mxu0 %v808
      %2173 = vmatpush1.msra.mxu0 %v807
      %2174 = vmatprep.subr.mxu0 %v810
      %2175 = vmatpush1.msra.mxu0 %v809
      %2176 = vmatprep.subr.mxu0 %v1107
      %2177 = vmatpush1.msra.mxu0 %v1104
      %2178 = vmatprep.subr.mxu0 0.0
      %2179 = vmatpush1.msra.mxu0 0.0
      %2180 = vmatprep.subr.mxu0 0.0
      %2181 = vmatpush1.msra.mxu0 0.0
      %2182 = vmatprep.subr.mxu0 0.0
      %2183 = vmatpush1.msra.mxu0 0.0
      %2184 = vmatprep.subr.mxu0 0.0
      %2185 = vmatpush1.msra.mxu0 0.0
      %2186 = vmatprep.subr.mxu0 0.0
      %2187 = vmatpush1.msra.mxu0 0.0
      %2188 = vmatprep.subr.mxu0 0.0
      %2189 = vmatpush1.msra.mxu0 0.0
      %2190 = vmatprep.subr.mxu0 0.0
      %2191 = vmatpush1.msra.mxu0 0.0
      %2192 = vmatprep.subr.mxu0 0.0
      %2193 = vmatpush1.msra.mxu0 0.0
      %2194 = vmatprep.subr.mxu0 0.0
      %2195 = vmatpush1.msra.mxu0 0.0
      %2196 = vmatprep.subr.mxu0 0.0
      %2197 = vmatpush1.msra.mxu0 0.0
      %2198 = vmatprep.subr.mxu0 0.0
      %2199 = vmatpush1.msra.mxu0 0.0
      %2200 = vmatprep.subr.mxu0 0.0
      %2201 = vmatpush1.msra.mxu0 0.0
      %2202 = vmatprep.subr.mxu0 0.0
      %2203 = vmatpush1.msra.mxu0 0.0
      %2204 = vmatprep.subr.mxu0 0.0
      %2205 = vmatpush1.msra.mxu0 0.0
      %2206 = vmatprep.subr.mxu0 0.0
      %2207 = vmatpush1.msra.mxu0 0.0
      %2208 = vmatprep.subr.mxu0 0.0
      %2209 = vmatpush1.msra.mxu0 0.0
      %2210 = vmatprep.subr.mxu0 0.0
      %2211 = vmatpush1.msra.mxu0 0.0
      %2212 = vmatprep.subr.mxu0 0.0
      %2213 = vmatpush1.msra.mxu0 0.0
      %2214 = vmatprep.subr.mxu0 0.0
      %2215 = vmatpush1.msra.mxu0 0.0
      %2216 = vmatprep.subr.mxu0 0.0
      %2217 = vmatpush1.msra.mxu0 0.0
      %2218 = vmatprep.subr.mxu0 0.0
      %2219 = vmatpush1.msra.mxu0 0.0
      %2220 = vmatprep.subr.mxu0 0.0
      %2221 = vmatpush1.msra.mxu0 0.0
      %2222 = vmatprep.subr.mxu0 0.0
      %2223 = vmatpush1.msra.mxu0 0.0
      %2224 = vmatprep.subr.mxu0 0.0
      %2225 = vmatpush1.msra.mxu0 0.0
      %2226 = vmatprep.subr.mxu0 0.0
      %2227 = vmatpush1.msra.mxu0 0.0
      %2228 = vmatprep.subr.mxu0 0.0
      %2229 = vmatpush1.msra.mxu0 0.0
      %2230 = vmatprep.subr.mxu0 0.0
      %2231 = vmatpush1.msra.mxu0 0.0
      %2232 = vmatprep.subr.mxu0 0.0
      %2233 = vmatpush1.msra.mxu0 0.0
      %2234 = vmatprep.subr.mxu0 0.0
      %2235 = vmatpush1.msra.mxu0 0.0
      %2236 = vmatprep.mubr.f32.mxu0 0.0
      %2237 = vmatmul.mubr.f32.gmra.mrb[0].mxu0 %v1001
      %v2238 = vpop.f32.mrb[0].mxu0
      %v2239 = vadd.f32 0.0, %v2238
      %v2240 = vpop.f32.mrb[0].mxu0
      %v2241 = vadd.f32 0.0, %v2240
      %2242 = vmatprep.mubr.f32.mxu0 0.0
      %2243 = vmatmul.mubr.f32.gmra.mrb[0].mxu0 %v1004
      %v2244 = vpop.f32.mrb[0].mxu0
      %v2245 = vadd.f32 0.0, %v2244
      %v2246 = vpop.f32.mrb[0].mxu0
      %v2247 = vadd.f32 0.0, %v2246
      %2248 = vmatprep.mubr.f32.mxu0 0.0
      %2249 = vmatmul.mubr.f32.gmra.mrb[0].mxu0 %v1007
      %v2250 = vpop.f32.mrb[0].mxu0
      %v2251 = vadd.f32 0.0, %v2250
      %v2252 = vpop.f32.mrb[0].mxu0
      %v2253 = vadd.f32 0.0, %v2252
      %2254 = vmatprep.mubr.f32.mxu0 0.0
      %2255 = vmatmul.mubr.f32.gmra.mrb[0].mxu0 %v1010
      %v2256 = vpop.f32.mrb[0].mxu0
      %v2257 = vadd.f32 0.0, %v2256
      %v2258 = vpop.f32.mrb[0].mxu0
      %v2259 = vadd.f32 0.0, %v2258
      %2260 = vmatprep.mubr.f32.mxu0 0.0
      %2261 = vmatmul.mubr.f32.gmra.mrb[0].mxu0 %v1013
      %v2262 = vpop.f32.mrb[0].mxu0
      %v2263 = vadd.f32 0.0, %v2262
      %v2264 = vpop.f32.mrb[0].mxu0
      %v2265 = vadd.f32 0.0, %v2264
      %2266 = vmatprep.mubr.f32.mxu0 0.0
      %2267 = vmatmul.mubr.f32.gmra.mrb[0].mxu0 %v1016
      %v2268 = vpop.f32.mrb[0].mxu0
      %v2269 = vadd.f32 0.0, %v2268
      %v2270 = vpop.f32.mrb[0].mxu0
      %v2271 = vadd.f32 0.0, %v2270
      %2272 = vmatprep.mubr.f32.mxu0 0.0
      %2273 = vmatmul.mubr.f32.gmra.mrb[0].mxu0 %v1019
      %v2274 = vpop.f32.mrb[0].mxu0
      %v2275 = vadd.f32 0.0, %v2274
      %v2276 = vpop.f32.mrb[0].mxu0
      %v2277 = vadd.f32 0.0, %v2276
      %2278 = vmatprep.mubr.f32.mxu0 0.0
      %2279 = vmatmul.mubr.f32.gmra.mrb[0].mxu0 %v1022
      %v2280 = vpop.f32.mrb[0].mxu0
      %v2281 = vadd.f32 0.0, %v2280
      %v2282 = vpop.f32.mrb[0].mxu0
      %v2283 = vadd.f32 0.0, %v2282
      %2284 = vmatprep.mubr.f32.mxu0 0.0
      %2285 = vmatmul.mubr.f32.gmra.mrb[0].mxu0 %v1025
      %v2286 = vpop.f32.mrb[0].mxu0
      %v2287 = vadd.f32 0.0, %v2286
      %v2288 = vpop.f32.mrb[0].mxu0
      %v2289 = vadd.f32 0.0, %v2288
      %2290 = vmatprep.mubr.f32.mxu0 0.0
      %2291 = vmatmul.mubr.f32.gmra.mrb[0].mxu0 %v1028
      %v2292 = vpop.f32.mrb[0].mxu0
      %v2293 = vadd.f32 0.0, %v2292
      %v2294 = vpop.f32.mrb[0].mxu0
      %v2295 = vadd.f32 0.0, %v2294
      %2296 = vmatprep.mubr.f32.mxu0 0.0
      %2297 = vmatmul.mubr.f32.gmra.mrb[0].mxu0 %v1031
      %v2298 = vpop.f32.mrb[0].mxu0
      %v2299 = vadd.f32 0.0, %v2298
      %v2300 = vpop.f32.mrb[0].mxu0
      %v2301 = vadd.f32 0.0, %v2300
      %2302 = vmatprep.mubr.f32.mxu0 0.0
      %2303 = vmatmul.mubr.f32.gmra.mrb[0].mxu0 %v1034
      %v2304 = vpop.f32.mrb[0].mxu0
      %v2305 = vadd.f32 0.0, %v2304
      %v2306 = vpop.f32.mrb[0].mxu0
      %v2307 = vadd.f32 0.0, %v2306
      %2308 = vmatprep.mubr.f32.mxu0 0.0
      %2309 = vmatmul.mubr.f32.gmra.mrb[0].mxu0 %v1037
      %v2310 = vpop.f32.mrb[0].mxu0
      %v2311 = vadd.f32 0.0, %v2310
      %v2312 = vpop.f32.mrb[0].mxu0
      %v2313 = vadd.f32 0.0, %v2312
      %2314 = vmatprep.mubr.f32.mxu0 0.0
      %2315 = vmatmul.mubr.f32.gmra.mrb[0].mxu0 %v1040
      %v2316 = vpop.f32.mrb[0].mxu0
      %v2317 = vadd.f32 0.0, %v2316
      %v2318 = vpop.f32.mrb[0].mxu0
      %v2319 = vadd.f32 0.0, %v2318
      %2320 = vmatprep.mubr.f32.mxu0 0.0
      %2321 = vmatmul.mubr.f32.gmra.mrb[0].mxu0 %v1043
      %v2322 = vpop.f32.mrb[0].mxu0
      %v2323 = vadd.f32 0.0, %v2322
      %v2324 = vpop.f32.mrb[0].mxu0
      %v2325 = vadd.f32 0.0, %v2324
      %2326 = vmatprep.mubr.f32.mxu0 0.0
      %2327 = vmatmul.mubr.f32.gmra.mrb[0].mxu0 %v1046
      %v2328 = vpop.f32.mrb[0].mxu0
      %v2329 = vadd.f32 0.0, %v2328
      %v2330 = vpop.f32.mrb[0].mxu0
      %v2331 = vadd.f32 0.0, %v2330
      %2332 = vmatprep.mubr.f32.mxu0 0.0
      %2333 = vmatmul.mubr.f32.gmra.mrb[0].mxu0 %v1049
      %v2334 = vpop.f32.mrb[0].mxu0
      %v2335 = vadd.f32 0.0, %v2334
      %v2336 = vpop.f32.mrb[0].mxu0
      %v2337 = vadd.f32 0.0, %v2336
      %2338 = vmatprep.mubr.f32.mxu0 0.0
      %2339 = vmatmul.mubr.f32.gmra.mrb[0].mxu0 %v1052
      %v2340 = vpop.f32.mrb[0].mxu0
      %v2341 = vadd.f32 0.0, %v2340
      %v2342 = vpop.f32.mrb[0].mxu0
      %v2343 = vadd.f32 0.0, %v2342
      %2344 = vmatprep.mubr.f32.mxu0 0.0
      %2345 = vmatmul.mubr.f32.gmra.mrb[0].mxu0 %v1055
      %v2346 = vpop.f32.mrb[0].mxu0
      %v2347 = vadd.f32 0.0, %v2346
      %v2348 = vpop.f32.mrb[0].mxu0
      %v2349 = vadd.f32 0.0, %v2348
      %2350 = vmatprep.mubr.f32.mxu0 0.0
      %2351 = vmatmul.mubr.f32.gmra.mrb[0].mxu0 %v1058
      %v2352 = vpop.f32.mrb[0].mxu0
      %v2353 = vadd.f32 0.0, %v2352
      %v2354 = vpop.f32.mrb[0].mxu0
      %v2355 = vadd.f32 0.0, %v2354
      %2356 = vmatprep.mubr.f32.mxu0 0.0
      %2357 = vmatmul.mubr.f32.gmra.mrb[0].mxu0 %v1061
      %v2358 = vpop.f32.mrb[0].mxu0
      %v2359 = vadd.f32 0.0, %v2358
      %v2360 = vpop.f32.mrb[0].mxu0
      %v2361 = vadd.f32 0.0, %v2360
      %2362 = vmatprep.mubr.f32.mxu0 0.0
      %2363 = vmatmul.mubr.f32.gmra.mrb[0].mxu0 %v1064
      %v2364 = vpop.f32.mrb[0].mxu0
      %v2365 = vadd.f32 0.0, %v2364
      %v2366 = vpop.f32.mrb[0].mxu0
      %v2367 = vadd.f32 0.0, %v2366
      %2368 = vmatprep.mubr.f32.mxu0 0.0
      %2369 = vmatmul.mubr.f32.gmra.mrb[0].mxu0 %v1067
      %v2370 = vpop.f32.mrb[0].mxu0
      %v2371 = vadd.f32 0.0, %v2370
      %v2372 = vpop.f32.mrb[0].mxu0
      %v2373 = vadd.f32 0.0, %v2372
      %2374 = vmatprep.mubr.f32.mxu0 0.0
      %2375 = vmatmul.mubr.f32.gmra.mrb[0].mxu0 %v1070
      %v2376 = vpop.f32.mrb[0].mxu0
      %v2377 = vadd.f32 0.0, %v2376
      %v2378 = vpop.f32.mrb[0].mxu0
      %v2379 = vadd.f32 0.0, %v2378
      %2380 = vdwg.mxu0
      %2381 = vmatprep.subr.mxu0 %v870
      %2382 = vmatpush1.msra.mxu0 %v869
      %2383 = vmatprep.subr.mxu0 %v872
      %2384 = vmatpush1.msra.mxu0 %v871
      %2385 = vmatprep.subr.mxu0 %v1113
      %2386 = vmatpush1.msra.mxu0 %v1110
      %2387 = vmatprep.subr.mxu0 0.0
      %2388 = vmatpush1.msra.mxu0 0.0
      %2389 = vmatprep.subr.mxu0 0.0
      %2390 = vmatpush1.msra.mxu0 0.0
      %2391 = vmatprep.subr.mxu0 0.0
      %2392 = vmatpush1.msra.mxu0 0.0
      %2393 = vmatprep.subr.mxu0 0.0
      %2394 = vmatpush1.msra.mxu0 0.0
      %2395 = vmatprep.subr.mxu0 0.0
      %2396 = vmatpush1.msra.mxu0 0.0
      %2397 = vmatprep.subr.mxu0 0.0
      %2398 = vmatpush1.msra.mxu0 0.0
      %2399 = vmatprep.subr.mxu0 0.0
      %2400 = vmatpush1.msra.mxu0 0.0
      %2401 = vmatprep.subr.mxu0 0.0
      %2402 = vmatpush1.msra.mxu0 0.0
      %2403 = vmatprep.subr.mxu0 0.0
      %2404 = vmatpush1.msra.mxu0 0.0
      %2405 = vmatprep.subr.mxu0 0.0
      %2406 = vmatpush1.msra.mxu0 0.0
      %2407 = vmatprep.subr.mxu0 0.0
      %2408 = vmatpush1.msra.mxu0 0.0
      %2409 = vmatprep.subr.mxu0 0.0
      %2410 = vmatpush1.msra.mxu0 0.0
      %2411 = vmatprep.subr.mxu0 0.0
      %2412 = vmatpush1.msra.mxu0 0.0
      %2413 = vmatprep.subr.mxu0 0.0
      %2414 = vmatpush1.msra.mxu0 0.0
      %2415 = vmatprep.subr.mxu0 0.0
      %2416 = vmatpush1.msra.mxu0 0.0
      %2417 = vmatprep.subr.mxu0 0.0
      %2418 = vmatpush1.msra.mxu0 0.0
      %2419 = vmatprep.subr.mxu0 0.0
      %2420 = vmatpush1.msra.mxu0 0.0
      %2421 = vmatprep.subr.mxu0 0.0
      %2422 = vmatpush1.msra.mxu0 0.0
      %2423 = vmatprep.subr.mxu0 0.0
      %2424 = vmatpush1.msra.mxu0 0.0
      %2425 = vmatprep.subr.mxu0 0.0
      %2426 = vmatpush1.msra.mxu0 0.0
      %2427 = vmatprep.subr.mxu0 0.0
      %2428 = vmatpush1.msra.mxu0 0.0
      %2429 = vmatprep.subr.mxu0 0.0
      %2430 = vmatpush1.msra.mxu0 0.0
      %2431 = vmatprep.subr.mxu0 0.0
      %2432 = vmatpush1.msra.mxu0 0.0
      %2433 = vmatprep.subr.mxu0 0.0
      %2434 = vmatpush1.msra.mxu0 0.0
      %2435 = vmatprep.subr.mxu0 0.0
      %2436 = vmatpush1.msra.mxu0 0.0
      %2437 = vmatprep.subr.mxu0 0.0
      %2438 = vmatpush1.msra.mxu0 0.0
      %2439 = vmatprep.subr.mxu0 0.0
      %2440 = vmatpush1.msra.mxu0 0.0
      %2441 = vmatprep.subr.mxu0 0.0
      %2442 = vmatpush1.msra.mxu0 0.0
      %2443 = vmatprep.subr.mxu0 0.0
      %2444 = vmatpush1.msra.mxu0 0.0
      %2445 = vmatprep.mubr.f32.mxu0 0.0
      %2446 = vmatmul.mubr.f32.gmra.mrb[0].mxu0 %v1001
      %v2447 = vpop.f32.mrb[0].mxu0
      %v2448 = vadd.f32 0.0, %v2447
      %v2449 = vpop.f32.mrb[0].mxu0
      %v2450 = vadd.f32 0.0, %v2449
      %2451 = vmatprep.mubr.f32.mxu0 0.0
      %2452 = vmatmul.mubr.f32.gmra.mrb[0].mxu0 %v1004
      %v2453 = vpop.f32.mrb[0].mxu0
      %v2454 = vadd.f32 0.0, %v2453
      %v2455 = vpop.f32.mrb[0].mxu0
      %v2456 = vadd.f32 0.0, %v2455
      %2457 = vmatprep.mubr.f32.mxu0 0.0
      %2458 = vmatmul.mubr.f32.gmra.mrb[0].mxu0 %v1007
      %v2459 = vpop.f32.mrb[0].mxu0
      %v2460 = vadd.f32 0.0, %v2459
      %v2461 = vpop.f32.mrb[0].mxu0
      %v2462 = vadd.f32 0.0, %v2461
      %2463 = vmatprep.mubr.f32.mxu0 0.0
      %2464 = vmatmul.mubr.f32.gmra.mrb[0].mxu0 %v1010
      %v2465 = vpop.f32.mrb[0].mxu0
      %v2466 = vadd.f32 0.0, %v2465
      %v2467 = vpop.f32.mrb[0].mxu0
      %v2468 = vadd.f32 0.0, %v2467
      %2469 = vmatprep.mubr.f32.mxu0 0.0
      %2470 = vmatmul.mubr.f32.gmra.mrb[0].mxu0 %v1013
      %v2471 = vpop.f32.mrb[0].mxu0
      %v2472 = vadd.f32 0.0, %v2471
      %v2473 = vpop.f32.mrb[0].mxu0
      %v2474 = vadd.f32 0.0, %v2473
      %2475 = vmatprep.mubr.f32.mxu0 0.0
      %2476 = vmatmul.mubr.f32.gmra.mrb[0].mxu0 %v1016
      %v2477 = vpop.f32.mrb[0].mxu0
      %v2478 = vadd.f32 0.0, %v2477
      %v2479 = vpop.f32.mrb[0].mxu0
      %v2480 = vadd.f32 0.0, %v2479
      %2481 = vmatprep.mubr.f32.mxu0 0.0
      %2482 = vmatmul.mubr.f32.gmra.mrb[0].mxu0 %v1019
      %v2483 = vpop.f32.mrb[0].mxu0
      %v2484 = vadd.f32 0.0, %v2483
      %v2485 = vpop.f32.mrb[0].mxu0
      %v2486 = vadd.f32 0.0, %v2485
      %2487 = vmatprep.mubr.f32.mxu0 0.0
      %2488 = vmatmul.mubr.f32.gmra.mrb[0].mxu0 %v1022
      %v2489 = vpop.f32.mrb[0].mxu0
      %v2490 = vadd.f32 0.0, %v2489
      %v2491 = vpop.f32.mrb[0].mxu0
      %v2492 = vadd.f32 0.0, %v2491
      %2493 = vmatprep.mubr.f32.mxu0 0.0
      %2494 = vmatmul.mubr.f32.gmra.mrb[0].mxu0 %v1025
      %v2495 = vpop.f32.mrb[0].mxu0
      %v2496 = vadd.f32 0.0, %v2495
      %v2497 = vpop.f32.mrb[0].mxu0
      %v2498 = vadd.f32 0.0, %v2497
      %2499 = vmatprep.mubr.f32.mxu0 0.0
      %2500 = vmatmul.mubr.f32.gmra.mrb[0].mxu0 %v1028
      %v2501 = vpop.f32.mrb[0].mxu0
      %v2502 = vadd.f32 0.0, %v2501
      %v2503 = vpop.f32.mrb[0].mxu0
      %v2504 = vadd.f32 0.0, %v2503
      %2505 = vmatprep.mubr.f32.mxu0 0.0
      %2506 = vmatmul.mubr.f32.gmra.mrb[0].mxu0 %v1031
      %v2507 = vpop.f32.mrb[0].mxu0
      %v2508 = vadd.f32 0.0, %v2507
      %v2509 = vpop.f32.mrb[0].mxu0
      %v2510 = vadd.f32 0.0, %v2509
      %2511 = vmatprep.mubr.f32.mxu0 0.0
      %2512 = vmatmul.mubr.f32.gmra.mrb[0].mxu0 %v1034
      %v2513 = vpop.f32.mrb[0].mxu0
      %v2514 = vadd.f32 0.0, %v2513
      %v2515 = vpop.f32.mrb[0].mxu0
      %v2516 = vadd.f32 0.0, %v2515
      %2517 = vmatprep.mubr.f32.mxu0 0.0
      %2518 = vmatmul.mubr.f32.gmra.mrb[0].mxu0 %v1037
      %v2519 = vpop.f32.mrb[0].mxu0
      %v2520 = vadd.f32 0.0, %v2519
      %v2521 = vpop.f32.mrb[0].mxu0
      %v2522 = vadd.f32 0.0, %v2521
      %2523 = vmatprep.mubr.f32.mxu0 0.0
      %2524 = vmatmul.mubr.f32.gmra.mrb[0].mxu0 %v1040
      %v2525 = vpop.f32.mrb[0].mxu0
      %v2526 = vadd.f32 0.0, %v2525
      %v2527 = vpop.f32.mrb[0].mxu0
      %v2528 = vadd.f32 0.0, %v2527
      %2529 = vmatprep.mubr.f32.mxu0 0.0
      %2530 = vmatmul.mubr.f32.gmra.mrb[0].mxu0 %v1043
      %v2531 = vpop.f32.mrb[0].mxu0
      %v2532 = vadd.f32 0.0, %v2531
      %v2533 = vpop.f32.mrb[0].mxu0
      %v2534 = vadd.f32 0.0, %v2533
      %2535 = vmatprep.mubr.f32.mxu0 0.0
      %2536 = vmatmul.mubr.f32.gmra.mrb[0].mxu0 %v1046
      %v2537 = vpop.f32.mrb[0].mxu0
      %v2538 = vadd.f32 0.0, %v2537
      %v2539 = vpop.f32.mrb[0].mxu0
      %v2540 = vadd.f32 0.0, %v2539
      %2541 = vmatprep.mubr.f32.mxu0 0.0
      %2542 = vmatmul.mubr.f32.gmra.mrb[0].mxu0 %v1049
      %v2543 = vpop.f32.mrb[0].mxu0
      %v2544 = vadd.f32 0.0, %v2543
      %v2545 = vpop.f32.mrb[0].mxu0
      %v2546 = vadd.f32 0.0, %v2545
      %2547 = vmatprep.mubr.f32.mxu0 0.0
      %2548 = vmatmul.mubr.f32.gmra.mrb[0].mxu0 %v1052
      %v2549 = vpop.f32.mrb[0].mxu0
      %v2550 = vadd.f32 0.0, %v2549
      %v2551 = vpop.f32.mrb[0].mxu0
      %v2552 = vadd.f32 0.0, %v2551
      %2553 = vmatprep.mubr.f32.mxu0 0.0
      %2554 = vmatmul.mubr.f32.gmra.mrb[0].mxu0 %v1055
      %v2555 = vpop.f32.mrb[0].mxu0
      %v2556 = vadd.f32 0.0, %v2555
      %v2557 = vpop.f32.mrb[0].mxu0
      %v2558 = vadd.f32 0.0, %v2557
      %2559 = vmatprep.mubr.f32.mxu0 0.0
      %2560 = vmatmul.mubr.f32.gmra.mrb[0].mxu0 %v1058
      %v2561 = vpop.f32.mrb[0].mxu0
      %v2562 = vadd.f32 0.0, %v2561
      %v2563 = vpop.f32.mrb[0].mxu0
      %v2564 = vadd.f32 0.0, %v2563
      %2565 = vmatprep.mubr.f32.mxu0 0.0
      %2566 = vmatmul.mubr.f32.gmra.mrb[0].mxu0 %v1061
      %v2567 = vpop.f32.mrb[0].mxu0
      %v2568 = vadd.f32 0.0, %v2567
      %v2569 = vpop.f32.mrb[0].mxu0
      %v2570 = vadd.f32 0.0, %v2569
      %2571 = vmatprep.mubr.f32.mxu0 0.0
      %2572 = vmatmul.mubr.f32.gmra.mrb[0].mxu0 %v1064
      %v2573 = vpop.f32.mrb[0].mxu0
      %v2574 = vadd.f32 0.0, %v2573
      %v2575 = vpop.f32.mrb[0].mxu0
      %v2576 = vadd.f32 0.0, %v2575
      %2577 = vmatprep.mubr.f32.mxu0 0.0
      %2578 = vmatmul.mubr.f32.gmra.mrb[0].mxu0 %v1067
      %v2579 = vpop.f32.mrb[0].mxu0
      %v2580 = vadd.f32 0.0, %v2579
      %v2581 = vpop.f32.mrb[0].mxu0
      %v2582 = vadd.f32 0.0, %v2581
      %2583 = vmatprep.mubr.f32.mxu0 0.0
      %2584 = vmatmul.mubr.f32.gmra.mrb[0].mxu0 %v1070
      %v2585 = vpop.f32.mrb[0].mxu0
      %v2586 = vadd.f32 0.0, %v2585
      %v2587 = vpop.f32.mrb[0].mxu0
      %v2588 = vadd.f32 0.0, %v2587
      %2589 = vdwg.mxu0
      %2590 = vmatprep.subr.mxu0 %v932
      %2591 = vmatpush1.msra.mxu0 %v931
      %2592 = vmatprep.subr.mxu0 %v934
      %2593 = vmatpush1.msra.mxu0 %v933
      %2594 = vmatprep.subr.mxu0 %v1119
      %2595 = vmatpush1.msra.mxu0 %v1116
      %2596 = vmatprep.subr.mxu0 0.0
      %2597 = vmatpush1.msra.mxu0 0.0
      %2598 = vmatprep.subr.mxu0 0.0
      %2599 = vmatpush1.msra.mxu0 0.0
      %2600 = vmatprep.subr.mxu0 0.0
      %2601 = vmatpush1.msra.mxu0 0.0
      %2602 = vmatprep.subr.mxu0 0.0
      %2603 = vmatpush1.msra.mxu0 0.0
      %2604 = vmatprep.subr.mxu0 0.0
      %2605 = vmatpush1.msra.mxu0 0.0
      %2606 = vmatprep.subr.mxu0 0.0
      %2607 = vmatpush1.msra.mxu0 0.0
      %2608 = vmatprep.subr.mxu0 0.0
      %2609 = vmatpush1.msra.mxu0 0.0
      %2610 = vmatprep.subr.mxu0 0.0
      %2611 = vmatpush1.msra.mxu0 0.0
      %2612 = vmatprep.subr.mxu0 0.0
      %2613 = vmatpush1.msra.mxu0 0.0
      %2614 = vmatprep.subr.mxu0 0.0
      %2615 = vmatpush1.msra.mxu0 0.0
      %2616 = vmatprep.subr.mxu0 0.0
      %2617 = vmatpush1.msra.mxu0 0.0
      %2618 = vmatprep.subr.mxu0 0.0
      %2619 = vmatpush1.msra.mxu0 0.0
      %2620 = vmatprep.subr.mxu0 0.0
      %2621 = vmatpush1.msra.mxu0 0.0
      %2622 = vmatprep.subr.mxu0 0.0
      %2623 = vmatpush1.msra.mxu0 0.0
      %2624 = vmatprep.subr.mxu0 0.0
      %2625 = vmatpush1.msra.mxu0 0.0
      %2626 = vmatprep.subr.mxu0 0.0
      %2627 = vmatpush1.msra.mxu0 0.0
      %2628 = vmatprep.subr.mxu0 0.0
      %2629 = vmatpush1.msra.mxu0 0.0
      %2630 = vmatprep.subr.mxu0 0.0
      %2631 = vmatpush1.msra.mxu0 0.0
      %2632 = vmatprep.subr.mxu0 0.0
      %2633 = vmatpush1.msra.mxu0 0.0
      %2634 = vmatprep.subr.mxu0 0.0
      %2635 = vmatpush1.msra.mxu0 0.0
      %2636 = vmatprep.subr.mxu0 0.0
      %2637 = vmatpush1.msra.mxu0 0.0
      %2638 = vmatprep.subr.mxu0 0.0
      %2639 = vmatpush1.msra.mxu0 0.0
      %2640 = vmatprep.subr.mxu0 0.0
      %2641 = vmatpush1.msra.mxu0 0.0
      %2642 = vmatprep.subr.mxu0 0.0
      %2643 = vmatpush1.msra.mxu0 0.0
      %2644 = vmatprep.subr.mxu0 0.0
      %2645 = vmatpush1.msra.mxu0 0.0
      %2646 = vmatprep.subr.mxu0 0.0
      %2647 = vmatpush1.msra.mxu0 0.0
      %2648 = vmatprep.subr.mxu0 0.0
      %2649 = vmatpush1.msra.mxu0 0.0
      %2650 = vmatprep.subr.mxu0 0.0
      %2651 = vmatpush1.msra.mxu0 0.0
      %2652 = vmatprep.subr.mxu0 0.0
      %2653 = vmatpush1.msra.mxu0 0.0
      %2654 = vmatprep.mubr.f32.mxu0 0.0
      %2655 = vmatmul.mubr.f32.gmra.mrb[0].mxu0 %v1001
      %v2656 = vpop.f32.mrb[0].mxu0
      %v2657 = vadd.f32 0.0, %v2656
      %v2658 = vpop.f32.mrb[0].mxu0
      %v2659 = vadd.f32 0.0, %v2658
      %2660 = vmatprep.mubr.f32.mxu0 0.0
      %2661 = vmatmul.mubr.f32.gmra.mrb[0].mxu0 %v1004
      %v2662 = vpop.f32.mrb[0].mxu0
      %v2663 = vadd.f32 0.0, %v2662
      %v2664 = vpop.f32.mrb[0].mxu0
      %v2665 = vadd.f32 0.0, %v2664
      %2666 = vmatprep.mubr.f32.mxu0 0.0
      %2667 = vmatmul.mubr.f32.gmra.mrb[0].mxu0 %v1007
      %v2668 = vpop.f32.mrb[0].mxu0
      %v2669 = vadd.f32 0.0, %v2668
      %v2670 = vpop.f32.mrb[0].mxu0
      %v2671 = vadd.f32 0.0, %v2670
      %2672 = vmatprep.mubr.f32.mxu0 0.0
      %2673 = vmatmul.mubr.f32.gmra.mrb[0].mxu0 %v1010
      %v2674 = vpop.f32.mrb[0].mxu0
      %v2675 = vadd.f32 0.0, %v2674
      %v2676 = vpop.f32.mrb[0].mxu0
      %v2677 = vadd.f32 0.0, %v2676
      %2678 = vmatprep.mubr.f32.mxu0 0.0
      %2679 = vmatmul.mubr.f32.gmra.mrb[0].mxu0 %v1013
      %v2680 = vpop.f32.mrb[0].mxu0
      %v2681 = vadd.f32 0.0, %v2680
      %v2682 = vpop.f32.mrb[0].mxu0
      %v2683 = vadd.f32 0.0, %v2682
      %2684 = vmatprep.mubr.f32.mxu0 0.0
      %2685 = vmatmul.mubr.f32.gmra.mrb[0].mxu0 %v1016
      %v2686 = vpop.f32.mrb[0].mxu0
      %v2687 = vadd.f32 0.0, %v2686
      %v2688 = vpop.f32.mrb[0].mxu0
      %v2689 = vadd.f32 0.0, %v2688
      %2690 = vmatprep.mubr.f32.mxu0 0.0
      %2691 = vmatmul.mubr.f32.gmra.mrb[0].mxu0 %v1019
      %v2692 = vpop.f32.mrb[0].mxu0
      %v2693 = vadd.f32 0.0, %v2692
      %v2694 = vpop.f32.mrb[0].mxu0
      %v2695 = vadd.f32 0.0, %v2694
      %2696 = vmatprep.mubr.f32.mxu0 0.0
      %2697 = vmatmul.mubr.f32.gmra.mrb[0].mxu0 %v1022
      %v2698 = vpop.f32.mrb[0].mxu0
      %v2699 = vadd.f32 0.0, %v2698
      %v2700 = vpop.f32.mrb[0].mxu0
      %v2701 = vadd.f32 0.0, %v2700
      %2702 = vmatprep.mubr.f32.mxu0 0.0
      %2703 = vmatmul.mubr.f32.gmra.mrb[0].mxu0 %v1025
      %v2704 = vpop.f32.mrb[0].mxu0
      %v2705 = vadd.f32 0.0, %v2704
      %v2706 = vpop.f32.mrb[0].mxu0
      %v2707 = vadd.f32 0.0, %v2706
      %2708 = vmatprep.mubr.f32.mxu0 0.0
      %2709 = vmatmul.mubr.f32.gmra.mrb[0].mxu0 %v1028
      %v2710 = vpop.f32.mrb[0].mxu0
      %v2711 = vadd.f32 0.0, %v2710
      %v2712 = vpop.f32.mrb[0].mxu0
      %v2713 = vadd.f32 0.0, %v2712
      %2714 = vmatprep.mubr.f32.mxu0 0.0
      %2715 = vmatmul.mubr.f32.gmra.mrb[0].mxu0 %v1031
      %v2716 = vpop.f32.mrb[0].mxu0
      %v2717 = vadd.f32 0.0, %v2716
      %v2718 = vpop.f32.mrb[0].mxu0
      %v2719 = vadd.f32 0.0, %v2718
      %2720 = vmatprep.mubr.f32.mxu0 0.0
      %2721 = vmatmul.mubr.f32.gmra.mrb[0].mxu0 %v1034
      %v2722 = vpop.f32.mrb[0].mxu0
      %v2723 = vadd.f32 0.0, %v2722
      %v2724 = vpop.f32.mrb[0].mxu0
      %v2725 = vadd.f32 0.0, %v2724
      %2726 = vmatprep.mubr.f32.mxu0 0.0
      %2727 = vmatmul.mubr.f32.gmra.mrb[0].mxu0 %v1037
      %v2728 = vpop.f32.mrb[0].mxu0
      %v2729 = vadd.f32 0.0, %v2728
      %v2730 = vpop.f32.mrb[0].mxu0
      %v2731 = vadd.f32 0.0, %v2730
      %2732 = vmatprep.mubr.f32.mxu0 0.0
      %2733 = vmatmul.mubr.f32.gmra.mrb[0].mxu0 %v1040
      %v2734 = vpop.f32.mrb[0].mxu0
      %v2735 = vadd.f32 0.0, %v2734
      %v2736 = vpop.f32.mrb[0].mxu0
      %v2737 = vadd.f32 0.0, %v2736
      %2738 = vmatprep.mubr.f32.mxu0 0.0
      %2739 = vmatmul.mubr.f32.gmra.mrb[0].mxu0 %v1043
      %v2740 = vpop.f32.mrb[0].mxu0
      %v2741 = vadd.f32 0.0, %v2740
      %v2742 = vpop.f32.mrb[0].mxu0
      %v2743 = vadd.f32 0.0, %v2742
      %2744 = vmatprep.mubr.f32.mxu0 0.0
      %2745 = vmatmul.mubr.f32.gmra.mrb[0].mxu0 %v1046
      %v2746 = vpop.f32.mrb[0].mxu0
      %v2747 = vadd.f32 0.0, %v2746
      %v2748 = vpop.f32.mrb[0].mxu0
      %v2749 = vadd.f32 0.0, %v2748
      %2750 = vmatprep.mubr.f32.mxu0 0.0
      %2751 = vmatmul.mubr.f32.gmra.mrb[0].mxu0 %v1049
      %v2752 = vpop.f32.mrb[0].mxu0
      %v2753 = vadd.f32 0.0, %v2752
      %v2754 = vpop.f32.mrb[0].mxu0
      %v2755 = vadd.f32 0.0, %v2754
      %2756 = vmatprep.mubr.f32.mxu0 0.0
      %2757 = vmatmul.mubr.f32.gmra.mrb[0].mxu0 %v1052
      %v2758 = vpop.f32.mrb[0].mxu0
      %v2759 = vadd.f32 0.0, %v2758
      %v2760 = vpop.f32.mrb[0].mxu0
      %v2761 = vadd.f32 0.0, %v2760
      %2762 = vmatprep.mubr.f32.mxu0 0.0
      %2763 = vmatmul.mubr.f32.gmra.mrb[0].mxu0 %v1055
      %v2764 = vpop.f32.mrb[0].mxu0
      %v2765 = vadd.f32 0.0, %v2764
      %v2766 = vpop.f32.mrb[0].mxu0
      %v2767 = vadd.f32 0.0, %v2766
      %2768 = vmatprep.mubr.f32.mxu0 0.0
      %2769 = vmatmul.mubr.f32.gmra.mrb[0].mxu0 %v1058
      %v2770 = vpop.f32.mrb[0].mxu0
      %v2771 = vadd.f32 0.0, %v2770
      %v2772 = vpop.f32.mrb[0].mxu0
      %v2773 = vadd.f32 0.0, %v2772
      %2774 = vmatprep.mubr.f32.mxu0 0.0
      %2775 = vmatmul.mubr.f32.gmra.mrb[0].mxu0 %v1061
      %v2776 = vpop.f32.mrb[0].mxu0
      %v2777 = vadd.f32 0.0, %v2776
      %v2778 = vpop.f32.mrb[0].mxu0
      %v2779 = vadd.f32 0.0, %v2778
      %2780 = vmatprep.mubr.f32.mxu0 0.0
      %2781 = vmatmul.mubr.f32.gmra.mrb[0].mxu0 %v1064
      %v2782 = vpop.f32.mrb[0].mxu0
      %v2783 = vadd.f32 0.0, %v2782
      %v2784 = vpop.f32.mrb[0].mxu0
      %v2785 = vadd.f32 0.0, %v2784
      %2786 = vmatprep.mubr.f32.mxu0 0.0
      %2787 = vmatmul.mubr.f32.gmra.mrb[0].mxu0 %v1067
      %v2788 = vpop.f32.mrb[0].mxu0
      %v2789 = vadd.f32 0.0, %v2788
      %v2790 = vpop.f32.mrb[0].mxu0
      %v2791 = vadd.f32 0.0, %v2790
      %2792 = vmatprep.mubr.f32.mxu0 0.0
      %2793 = vmatmul.mubr.f32.gmra.mrb[0].mxu0 %v1070
      %v2794 = vpop.f32.mrb[0].mxu0
      %v2795 = vadd.f32 0.0, %v2794
      %v2796 = vpop.f32.mrb[0].mxu0
      %v2797 = vadd.f32 0.0, %v2796
      %2798 = vdwg.mxu0
      %2799 = vmatprep.subr.mxu0 %v994
      %2800 = vmatpush1.msra.mxu0 %v993
      %2801 = vmatprep.subr.mxu0 %v996
      %2802 = vmatpush1.msra.mxu0 %v995
      %2803 = vmatprep.subr.mxu0 %v1125
      %2804 = vmatpush1.msra.mxu0 %v1122
      %2805 = vmatprep.subr.mxu0 0.0
      %2806 = vmatpush1.msra.mxu0 0.0
      %2807 = vmatprep.subr.mxu0 0.0
      %2808 = vmatpush1.msra.mxu0 0.0
      %2809 = vmatprep.subr.mxu0 0.0
      %2810 = vmatpush1.msra.mxu0 0.0
      %2811 = vmatprep.subr.mxu0 0.0
      %2812 = vmatpush1.msra.mxu0 0.0
      %2813 = vmatprep.subr.mxu0 0.0
      %2814 = vmatpush1.msra.mxu0 0.0
      %2815 = vmatprep.subr.mxu0 0.0
      %2816 = vmatpush1.msra.mxu0 0.0
      %2817 = vmatprep.subr.mxu0 0.0
      %2818 = vmatpush1.msra.mxu0 0.0
      %2819 = vmatprep.subr.mxu0 0.0
      %2820 = vmatpush1.msra.mxu0 0.0
      %2821 = vmatprep.subr.mxu0 0.0
      %2822 = vmatpush1.msra.mxu0 0.0
      %2823 = vmatprep.subr.mxu0 0.0
      %2824 = vmatpush1.msra.mxu0 0.0
      %2825 = vmatprep.subr.mxu0 0.0
      %2826 = vmatpush1.msra.mxu0 0.0
      %2827 = vmatprep.subr.mxu0 0.0
      %2828 = vmatpush1.msra.mxu0 0.0
      %2829 = vmatprep.subr.mxu0 0.0
      %2830 = vmatpush1.msra.mxu0 0.0
      %2831 = vmatprep.subr.mxu0 0.0
      %2832 = vmatpush1.msra.mxu0 0.0
      %2833 = vmatprep.subr.mxu0 0.0
      %2834 = vmatpush1.msra.mxu0 0.0
      %2835 = vmatprep.subr.mxu0 0.0
      %2836 = vmatpush1.msra.mxu0 0.0
      %2837 = vmatprep.subr.mxu0 0.0
      %2838 = vmatpush1.msra.mxu0 0.0
      %2839 = vmatprep.subr.mxu0 0.0
      %2840 = vmatpush1.msra.mxu0 0.0
      %2841 = vmatprep.subr.mxu0 0.0
      %2842 = vmatpush1.msra.mxu0 0.0
      %2843 = vmatprep.subr.mxu0 0.0
      %2844 = vmatpush1.msra.mxu0 0.0
      %2845 = vmatprep.subr.mxu0 0.0
      %2846 = vmatpush1.msra.mxu0 0.0
      %2847 = vmatprep.subr.mxu0 0.0
      %2848 = vmatpush1.msra.mxu0 0.0
      %2849 = vmatprep.subr.mxu0 0.0
      %2850 = vmatpush1.msra.mxu0 0.0
      %2851 = vmatprep.subr.mxu0 0.0
      %2852 = vmatpush1.msra.mxu0 0.0
      %2853 = vmatprep.subr.mxu0 0.0
      %2854 = vmatpush1.msra.mxu0 0.0
      %2855 = vmatprep.subr.mxu0 0.0
      %2856 = vmatpush1.msra.mxu0 0.0
      %2857 = vmatprep.subr.mxu0 0.0
      %2858 = vmatpush1.msra.mxu0 0.0
      %2859 = vmatprep.subr.mxu0 0.0
      %2860 = vmatpush1.msra.mxu0 0.0
      %2861 = vmatprep.subr.mxu0 0.0
      %2862 = vmatpush1.msra.mxu0 0.0
      %2863 = vmatprep.mubr.f32.mxu0 0.0
      %2864 = vmatmul.mubr.f32.gmra.mrb[0].mxu0 %v1001
      %v2865 = vpop.f32.mrb[0].mxu0
      %v2866 = vadd.f32 0.0, %v2865
      %v2867 = vpop.f32.mrb[0].mxu0
      %v2868 = vadd.f32 0.0, %v2867
      %2869 = vmatprep.mubr.f32.mxu0 0.0
      %2870 = vmatmul.mubr.f32.gmra.mrb[0].mxu0 %v1004
      %v2871 = vpop.f32.mrb[0].mxu0
      %v2872 = vadd.f32 0.0, %v2871
      %v2873 = vpop.f32.mrb[0].mxu0
      %v2874 = vadd.f32 0.0, %v2873
      %2875 = vmatprep.mubr.f32.mxu0 0.0
      %2876 = vmatmul.mubr.f32.gmra.mrb[0].mxu0 %v1007
      %v2877 = vpop.f32.mrb[0].mxu0
      %v2878 = vadd.f32 0.0, %v2877
      %v2879 = vpop.f32.mrb[0].mxu0
      %v2880 = vadd.f32 0.0, %v2879
      %2881 = vmatprep.mubr.f32.mxu0 0.0
      %2882 = vmatmul.mubr.f32.gmra.mrb[0].mxu0 %v1010
      %v2883 = vpop.f32.mrb[0].mxu0
      %v2884 = vadd.f32 0.0, %v2883
      %v2885 = vpop.f32.mrb[0].mxu0
      %v2886 = vadd.f32 0.0, %v2885
      %2887 = vmatprep.mubr.f32.mxu0 0.0
      %2888 = vmatmul.mubr.f32.gmra.mrb[0].mxu0 %v1013
      %v2889 = vpop.f32.mrb[0].mxu0
      %v2890 = vadd.f32 0.0, %v2889
      %v2891 = vpop.f32.mrb[0].mxu0
      %v2892 = vadd.f32 0.0, %v2891
      %2893 = vmatprep.mubr.f32.mxu0 0.0
      %2894 = vmatmul.mubr.f32.gmra.mrb[0].mxu0 %v1016
      %v2895 = vpop.f32.mrb[0].mxu0
      %v2896 = vadd.f32 0.0, %v2895
      %v2897 = vpop.f32.mrb[0].mxu0
      %v2898 = vadd.f32 0.0, %v2897
      %2899 = vmatprep.mubr.f32.mxu0 0.0
      %2900 = vmatmul.mubr.f32.gmra.mrb[0].mxu0 %v1019
      %v2901 = vpop.f32.mrb[0].mxu0
      %v2902 = vadd.f32 0.0, %v2901
      %v2903 = vpop.f32.mrb[0].mxu0
      %v2904 = vadd.f32 0.0, %v2903
      %2905 = vmatprep.mubr.f32.mxu0 0.0
      %2906 = vmatmul.mubr.f32.gmra.mrb[0].mxu0 %v1022
      %v2907 = vpop.f32.mrb[0].mxu0
      %v2908 = vadd.f32 0.0, %v2907
      %v2909 = vpop.f32.mrb[0].mxu0
      %v2910 = vadd.f32 0.0, %v2909
      %2911 = vmatprep.mubr.f32.mxu0 0.0
      %2912 = vmatmul.mubr.f32.gmra.mrb[0].mxu0 %v1025
      %v2913 = vpop.f32.mrb[0].mxu0
      %v2914 = vadd.f32 0.0, %v2913
      %v2915 = vpop.f32.mrb[0].mxu0
      %v2916 = vadd.f32 0.0, %v2915
      %2917 = vmatprep.mubr.f32.mxu0 0.0
      %2918 = vmatmul.mubr.f32.gmra.mrb[0].mxu0 %v1028
      %v2919 = vpop.f32.mrb[0].mxu0
      %v2920 = vadd.f32 0.0, %v2919
      %v2921 = vpop.f32.mrb[0].mxu0
      %v2922 = vadd.f32 0.0, %v2921
      %2923 = vmatprep.mubr.f32.mxu0 0.0
      %2924 = vmatmul.mubr.f32.gmra.mrb[0].mxu0 %v1031
      %v2925 = vpop.f32.mrb[0].mxu0
      %v2926 = vadd.f32 0.0, %v2925
      %v2927 = vpop.f32.mrb[0].mxu0
      %v2928 = vadd.f32 0.0, %v2927
      %2929 = vmatprep.mubr.f32.mxu0 0.0
      %2930 = vmatmul.mubr.f32.gmra.mrb[0].mxu0 %v1034
      %v2931 = vpop.f32.mrb[0].mxu0
      %v2932 = vadd.f32 0.0, %v2931
      %v2933 = vpop.f32.mrb[0].mxu0
      %v2934 = vadd.f32 0.0, %v2933
      %2935 = vmatprep.mubr.f32.mxu0 0.0
      %2936 = vmatmul.mubr.f32.gmra.mrb[0].mxu0 %v1037
      %v2937 = vpop.f32.mrb[0].mxu0
      %v2938 = vadd.f32 0.0, %v2937
      %v2939 = vpop.f32.mrb[0].mxu0
      %v2940 = vadd.f32 0.0, %v2939
      %2941 = vmatprep.mubr.f32.mxu0 0.0
      %2942 = vmatmul.mubr.f32.gmra.mrb[0].mxu0 %v1040
      %v2943 = vpop.f32.mrb[0].mxu0
      %v2944 = vadd.f32 0.0, %v2943
      %v2945 = vpop.f32.mrb[0].mxu0
      %v2946 = vadd.f32 0.0, %v2945
      %2947 = vmatprep.mubr.f32.mxu0 0.0
      %2948 = vmatmul.mubr.f32.gmra.mrb[0].mxu0 %v1043
      %v2949 = vpop.f32.mrb[0].mxu0
      %v2950 = vadd.f32 0.0, %v2949
      %v2951 = vpop.f32.mrb[0].mxu0
      %v2952 = vadd.f32 0.0, %v2951
      %2953 = vmatprep.mubr.f32.mxu0 0.0
      %2954 = vmatmul.mubr.f32.gmra.mrb[0].mxu0 %v1046
      %v2955 = vpop.f32.mrb[0].mxu0
      %v2956 = vadd.f32 0.0, %v2955
      %v2957 = vpop.f32.mrb[0].mxu0
      %v2958 = vadd.f32 0.0, %v2957
      %2959 = vmatprep.mubr.f32.mxu0 0.0
      %2960 = vmatmul.mubr.f32.gmra.mrb[0].mxu0 %v1049
      %v2961 = vpop.f32.mrb[0].mxu0
      %v2962 = vadd.f32 0.0, %v2961
      %v2963 = vpop.f32.mrb[0].mxu0
      %v2964 = vadd.f32 0.0, %v2963
      %2965 = vmatprep.mubr.f32.mxu0 0.0
      %2966 = vmatmul.mubr.f32.gmra.mrb[0].mxu0 %v1052
      %v2967 = vpop.f32.mrb[0].mxu0
      %v2968 = vadd.f32 0.0, %v2967
      %v2969 = vpop.f32.mrb[0].mxu0
      %v2970 = vadd.f32 0.0, %v2969
      %2971 = vmatprep.mubr.f32.mxu0 0.0
      %2972 = vmatmul.mubr.f32.gmra.mrb[0].mxu0 %v1055
      %v2973 = vpop.f32.mrb[0].mxu0
      %v2974 = vadd.f32 0.0, %v2973
      %v2975 = vpop.f32.mrb[0].mxu0
      %v2976 = vadd.f32 0.0, %v2975
      %2977 = vmatprep.mubr.f32.mxu0 0.0
      %2978 = vmatmul.mubr.f32.gmra.mrb[0].mxu0 %v1058
      %v2979 = vpop.f32.mrb[0].mxu0
      %v2980 = vadd.f32 0.0, %v2979
      %v2981 = vpop.f32.mrb[0].mxu0
      %v2982 = vadd.f32 0.0, %v2981
      %2983 = vmatprep.mubr.f32.mxu0 0.0
      %2984 = vmatmul.mubr.f32.gmra.mrb[0].mxu0 %v1061
      %v2985 = vpop.f32.mrb[0].mxu0
      %v2986 = vadd.f32 0.0, %v2985
      %v2987 = vpop.f32.mrb[0].mxu0
      %v2988 = vadd.f32 0.0, %v2987
      %2989 = vmatprep.mubr.f32.mxu0 0.0
      %2990 = vmatmul.mubr.f32.gmra.mrb[0].mxu0 %v1064
      %v2991 = vpop.f32.mrb[0].mxu0
      %v2992 = vadd.f32 0.0, %v2991
      %v2993 = vpop.f32.mrb[0].mxu0
      %v2994 = vadd.f32 0.0, %v2993
      %2995 = vmatprep.mubr.f32.mxu0 0.0
      %2996 = vmatmul.mubr.f32.gmra.mrb[0].mxu0 %v1067
      %v2997 = vpop.f32.mrb[0].mxu0
      %v2998 = vadd.f32 0.0, %v2997
      %v2999 = vpop.f32.mrb[0].mxu0
      %v3000 = vadd.f32 0.0, %v2999
      %3001 = vmatprep.mubr.f32.mxu0 0.0
      %3002 = vmatmul.mubr.f32.gmra.mrb[0].mxu0 %v1070
      %v3003 = vpop.f32.mrb[0].mxu0
      %v3004 = vadd.f32 0.0, %v3003
      %v3005 = vpop.f32.mrb[0].mxu0
      %v3006 = vadd.f32 0.0, %v3005
      %3007 = vdwg.mxu0
      %v3008 = vlaneseq
      %v3009 = vshrl.u32 %v3008, 7
      %v3010 = vsub.s32 0, %v3009
      %v3011 = vrot.slane %v421, %v3010
      %v3012 = vlaneseq
      %v3013 = vshrl.u32 %v3012, 7
      %v3014 = vsub.s32 0, %v3013
      %v3015 = vrot.slane %v422, %v3014
      %vm3016 = vcmp.eq.s32.totalorder %v438, %v3011
      %vm3017 = vcmp.eq.s32.totalorder %v438, %v3015
      %vm3018 = vcmp.eq.s32.totalorder %v439, %v3011
      %vm3019 = vcmp.eq.s32.totalorder %v439, %v3015
      %vm3020 = vcmp.eq.s32.totalorder %v440, %v3011
      %vm3021 = vcmp.eq.s32.totalorder %v440, %v3015
      %v3022 = vlaneseq
      %v3023 = vshrl.u32 %v3022, 7
      %v3024 = vsub.s32 0, %v3023
      %v3025 = vrot.slane %v393, %v3024
      %v3026 = vlaneseq
      %v3027 = vshrl.u32 %v3026, 7
      %v3028 = vsub.s32 0, %v3027
      %v3029 = vrot.slane %v394, %v3028
      %v3030 = vsel %vm3016, %v3025, 0.0
      %v3031 = vsel %vm3017, %v3029, 0.0
      %v3032 = vsel %vm3018, %v3025, 0.0
      %v3033 = vsel %vm3019, %v3029, 0.0
      %v3034 = vsel %vm3020, %v3025, 0.0
      %v3035 = vsel %vm3021, %v3029, 0.0
      %v3036 = vlaneseq
      %v3037 = vshrl.u32 %v3036, 7
      %v3038 = vsub.s32 0, %v3037
      %v3039 = vrot.slane %v425, %v3038
      %v3040 = vlaneseq
      %v3041 = vshrl.u32 %v3040, 7
      %v3042 = vsub.s32 0, %v3041
      %v3043 = vrot.slane %v426, %v3042
      %vm3044 = vcmp.eq.s32.totalorder %v438, %v3039
      %vm3045 = vcmp.eq.s32.totalorder %v438, %v3043
      %vm3046 = vcmp.eq.s32.totalorder %v439, %v3039
      %vm3047 = vcmp.eq.s32.totalorder %v439, %v3043
      %vm3048 = vcmp.eq.s32.totalorder %v440, %v3039
      %vm3049 = vcmp.eq.s32.totalorder %v440, %v3043
      %v3050 = vlaneseq
      %v3051 = vshrl.u32 %v3050, 7
      %v3052 = vsub.s32 0, %v3051
      %v3053 = vrot.slane %v401, %v3052
      %v3054 = vlaneseq
      %v3055 = vshrl.u32 %v3054, 7
      %v3056 = vsub.s32 0, %v3055
      %v3057 = vrot.slane %v402, %v3056
      %v3058 = vsel %vm3044, %v3053, 0.0
      %v3059 = vsel %vm3045, %v3057, 0.0
      %v3060 = vsel %vm3046, %v3053, 0.0
      %v3061 = vsel %vm3047, %v3057, 0.0
      %v3062 = vsel %vm3048, %v3053, 0.0
      %v3063 = vsel %vm3049, %v3057, 0.0
      %v3064 = vadd.f32 %v3030, %v3058
      %v3065 = vadd.f32 %v3031, %v3059
      %v3066 = vadd.f32 %v3032, %v3060
      %v3067 = vadd.f32 %v3033, %v3061
      %v3068 = vadd.f32 %v3034, %v3062
      %v3069 = vadd.f32 %v3035, %v3063
      %v3070 = vmul.f32 %v1194, %v3064
      %v3071 = vmul.f32 %v1196, %v3065
      %v3072 = vmul.f32 %v1200, %v3066
      %v3073 = vmul.f32 %v1202, %v3067
      %v3074 = vmul.f32 %v1206, %v3068
      %v3075 = vmul.f32 %v1208, %v3069
      %v3076 = vmul.f32 %v1212, %v3064
      %v3077 = vmul.f32 %v1214, %v3065
      %v3078 = vmul.f32 %v1218, %v3066
      %v3079 = vmul.f32 %v1220, %v3067
      %v3080 = vmul.f32 %v1224, %v3068
      %v3081 = vmul.f32 %v1226, %v3069
      %v3082 = vmul.f32 %v1230, %v3064
      %v3083 = vmul.f32 %v1232, %v3065
      %v3084 = vmul.f32 %v1236, %v3066
      %v3085 = vmul.f32 %v1238, %v3067
      %v3086 = vmul.f32 %v1242, %v3068
      %v3087 = vmul.f32 %v1244, %v3069
      %v3088 = vmul.f32 %v1248, %v3064
      %v3089 = vmul.f32 %v1250, %v3065
      %v3090 = vmul.f32 %v1254, %v3066
      %v3091 = vmul.f32 %v1256, %v3067
      %v3092 = vmul.f32 %v1260, %v3068
      %v3093 = vmul.f32 %v1262, %v3069
      %v3094 = vmul.f32 %v1266, %v3064
      %v3095 = vmul.f32 %v1268, %v3065
      %v3096 = vmul.f32 %v1272, %v3066
      %v3097 = vmul.f32 %v1274, %v3067
      %v3098 = vmul.f32 %v1278, %v3068
      %v3099 = vmul.f32 %v1280, %v3069
      %v3100 = vmul.f32 %v1284, %v3064
      %v3101 = vmul.f32 %v1286, %v3065
      %v3102 = vmul.f32 %v1290, %v3066
      %v3103 = vmul.f32 %v1292, %v3067
      %v3104 = vmul.f32 %v1296, %v3068
      %v3105 = vmul.f32 %v1298, %v3069
      %v3106 = vmul.f32 %v1302, %v3064
      %v3107 = vmul.f32 %v1304, %v3065
      %v3108 = vmul.f32 %v1308, %v3066
      %v3109 = vmul.f32 %v1310, %v3067
      %v3110 = vmul.f32 %v1314, %v3068
      %v3111 = vmul.f32 %v1316, %v3069
      %v3112 = vmul.f32 %v1320, %v3064
      %v3113 = vmul.f32 %v1322, %v3065
      %v3114 = vmul.f32 %v1326, %v3066
      %v3115 = vmul.f32 %v1328, %v3067
      %v3116 = vmul.f32 %v1332, %v3068
      %v3117 = vmul.f32 %v1334, %v3069
      %v3118 = vadd.f32 %v3070, %v3072
      %v3119 = vadd.f32 %v3118, %v3074
      %v3120 = vrot.slane %v3119, 4
      %v3121 = vadd.f32 %v3119, %v3120
      %v3122 = vrot.slane %v3121, 2
      %v3123 = vadd.f32 %v3121, %v3122
      %v3124 = vrot.slane %v3123, 1
      %v3125 = vadd.f32 %v3123, %v3124
      %v3126 = vadd.f32 %v3071, %v3073
      %v3127 = vadd.f32 %v3126, %v3075
      %v3128 = vrot.slane %v3127, 4
      %v3129 = vadd.f32 %v3127, %v3128
      %v3130 = vrot.slane %v3129, 2
      %v3131 = vadd.f32 %v3129, %v3130
      %v3132 = vrot.slane %v3131, 1
      %v3133 = vadd.f32 %v3131, %v3132
      %v3134 = vadd.f32 %v3076, %v3078
      %v3135 = vadd.f32 %v3134, %v3080
      %v3136 = vrot.slane %v3135, 4
      %v3137 = vadd.f32 %v3135, %v3136
      %v3138 = vrot.slane %v3137, 2
      %v3139 = vadd.f32 %v3137, %v3138
      %v3140 = vrot.slane %v3139, 1
      %v3141 = vadd.f32 %v3139, %v3140
      %v3142 = vadd.f32 %v3077, %v3079
      %v3143 = vadd.f32 %v3142, %v3081
      %v3144 = vrot.slane %v3143, 4
      %v3145 = vadd.f32 %v3143, %v3144
      %v3146 = vrot.slane %v3145, 2
      %v3147 = vadd.f32 %v3145, %v3146
      %v3148 = vrot.slane %v3147, 1
      %v3149 = vadd.f32 %v3147, %v3148
      %v3150 = vadd.f32 %v3082, %v3084
      %v3151 = vadd.f32 %v3150, %v3086
      %v3152 = vrot.slane %v3151, 4
      %v3153 = vadd.f32 %v3151, %v3152
      %v3154 = vrot.slane %v3153, 2
      %v3155 = vadd.f32 %v3153, %v3154
      %v3156 = vrot.slane %v3155, 1
      %v3157 = vadd.f32 %v3155, %v3156
      %v3158 = vadd.f32 %v3083, %v3085
      %v3159 = vadd.f32 %v3158, %v3087
      %v3160 = vrot.slane %v3159, 4
      %v3161 = vadd.f32 %v3159, %v3160
      %v3162 = vrot.slane %v3161, 2
      %v3163 = vadd.f32 %v3161, %v3162
      %v3164 = vrot.slane %v3163, 1
      %v3165 = vadd.f32 %v3163, %v3164
      %v3166 = vadd.f32 %v3088, %v3090
      %v3167 = vadd.f32 %v3166, %v3092
      %v3168 = vrot.slane %v3167, 4
      %v3169 = vadd.f32 %v3167, %v3168
      %v3170 = vrot.slane %v3169, 2
      %v3171 = vadd.f32 %v3169, %v3170
      %v3172 = vrot.slane %v3171, 1
      %v3173 = vadd.f32 %v3171, %v3172
      %v3174 = vadd.f32 %v3089, %v3091
      %v3175 = vadd.f32 %v3174, %v3093
      %v3176 = vrot.slane %v3175, 4
      %v3177 = vadd.f32 %v3175, %v3176
      %v3178 = vrot.slane %v3177, 2
      %v3179 = vadd.f32 %v3177, %v3178
      %v3180 = vrot.slane %v3179, 1
      %v3181 = vadd.f32 %v3179, %v3180
      %v3182 = vadd.f32 %v3094, %v3096
      %v3183 = vadd.f32 %v3182, %v3098
      %v3184 = vrot.slane %v3183, 4
      %v3185 = vadd.f32 %v3183, %v3184
      %v3186 = vrot.slane %v3185, 2
      %v3187 = vadd.f32 %v3185, %v3186
      %v3188 = vrot.slane %v3187, 1
      %v3189 = vadd.f32 %v3187, %v3188
      %v3190 = vadd.f32 %v3095, %v3097
      %v3191 = vadd.f32 %v3190, %v3099
      %v3192 = vrot.slane %v3191, 4
      %v3193 = vadd.f32 %v3191, %v3192
      %v3194 = vrot.slane %v3193, 2
      %v3195 = vadd.f32 %v3193, %v3194
      %v3196 = vrot.slane %v3195, 1
      %v3197 = vadd.f32 %v3195, %v3196
      %v3198 = vadd.f32 %v3100, %v3102
      %v3199 = vadd.f32 %v3198, %v3104
      %v3200 = vrot.slane %v3199, 4
      %v3201 = vadd.f32 %v3199, %v3200
      %v3202 = vrot.slane %v3201, 2
      %v3203 = vadd.f32 %v3201, %v3202
      %v3204 = vrot.slane %v3203, 1
      %v3205 = vadd.f32 %v3203, %v3204
      %v3206 = vadd.f32 %v3101, %v3103
      %v3207 = vadd.f32 %v3206, %v3105
      %v3208 = vrot.slane %v3207, 4
      %v3209 = vadd.f32 %v3207, %v3208
      %v3210 = vrot.slane %v3209, 2
      %v3211 = vadd.f32 %v3209, %v3210
      %v3212 = vrot.slane %v3211, 1
      %v3213 = vadd.f32 %v3211, %v3212
      %v3214 = vadd.f32 %v3106, %v3108
      %v3215 = vadd.f32 %v3214, %v3110
      %v3216 = vrot.slane %v3215, 4
      %v3217 = vadd.f32 %v3215, %v3216
      %v3218 = vrot.slane %v3217, 2
      %v3219 = vadd.f32 %v3217, %v3218
      %v3220 = vrot.slane %v3219, 1
      %v3221 = vadd.f32 %v3219, %v3220
      %v3222 = vadd.f32 %v3107, %v3109
      %v3223 = vadd.f32 %v3222, %v3111
      %v3224 = vrot.slane %v3223, 4
      %v3225 = vadd.f32 %v3223, %v3224
      %v3226 = vrot.slane %v3225, 2
      %v3227 = vadd.f32 %v3225, %v3226
      %v3228 = vrot.slane %v3227, 1
      %v3229 = vadd.f32 %v3227, %v3228
      %v3230 = vadd.f32 %v3112, %v3114
      %v3231 = vadd.f32 %v3230, %v3116
      %v3232 = vrot.slane %v3231, 4
      %v3233 = vadd.f32 %v3231, %v3232
      %v3234 = vrot.slane %v3233, 2
      %v3235 = vadd.f32 %v3233, %v3234
      %v3236 = vrot.slane %v3235, 1
      %v3237 = vadd.f32 %v3235, %v3236
      %v3238 = vadd.f32 %v3113, %v3115
      %v3239 = vadd.f32 %v3238, %v3117
      %v3240 = vrot.slane %v3239, 4
      %v3241 = vadd.f32 %v3239, %v3240
      %v3242 = vrot.slane %v3241, 2
      %v3243 = vadd.f32 %v3241, %v3242
      %v3244 = vrot.slane %v3243, 1
      %v3245 = vadd.f32 %v3243, %v3244
      %vm3262 = vcmask 1041409
      %v3263 = vsel %vm3262, %v3141, %v3125
      %vm3264 = vcmask 1042434
      %v3265 = vsel %vm3264, %v3157, %v3263
      %vm3266 = vcmask 1043459
      %v3267 = vsel %vm3266, %v3173, %v3265
      %vm3268 = vcmask 1044484
      %v3269 = vsel %vm3268, %v3189, %v3267
      %vm3270 = vcmask 1045509
      %v3271 = vsel %vm3270, %v3205, %v3269
      %vm3272 = vcmask 1046534
      %v3273 = vsel %vm3272, %v3221, %v3271
      %vm3274 = vcmask 1047559
      %v3275 = vsel %vm3274, %v3237, %v3273
      %v3276 = vsel %vm3262, %v3149, %v3133
      %v3277 = vsel %vm3264, %v3165, %v3276
      %v3278 = vsel %vm3266, %v3181, %v3277
      %v3279 = vsel %vm3268, %v3197, %v3278
      %v3280 = vsel %vm3270, %v3213, %v3279
      %v3281 = vsel %vm3272, %v3229, %v3280
      %v3282 = vsel %vm3274, %v3245, %v3281
      %3285 = vst [vmem:[#allocation2] sm:$0xff] %v3275
      %3286 = vst [vmem:[#allocation2 + $0x8] sm:$0xff] %v3282
      %v3287 = vlaneseq
      %v3288 = vshrl.u32 %v3287, 7
      %v3289 = vsub.s32 1, %v3288
      %v3290 = vrot.slane %v421, %v3289
      %v3291 = vlaneseq
      %v3292 = vshrl.u32 %v3291, 7
      %v3293 = vsub.s32 1, %v3292
      %v3294 = vrot.slane %v422, %v3293
      %vm3295 = vcmp.eq.s32.totalorder %v438, %v3290
      %vm3296 = vcmp.eq.s32.totalorder %v438, %v3294
      %vm3297 = vcmp.eq.s32.totalorder %v439, %v3290
      %vm3298 = vcmp.eq.s32.totalorder %v439, %v3294
      %vm3299 = vcmp.eq.s32.totalorder %v440, %v3290
      %vm3300 = vcmp.eq.s32.totalorder %v440, %v3294
      %v3301 = vlaneseq
      %v3302 = vshrl.u32 %v3301, 7
      %v3303 = vsub.s32 1, %v3302
      %v3304 = vrot.slane %v393, %v3303
      %v3305 = vlaneseq
      %v3306 = vshrl.u32 %v3305, 7
      %v3307 = vsub.s32 1, %v3306
      %v3308 = vrot.slane %v394, %v3307
      %v3309 = vsel %vm3295, %v3304, 0.0
      %v3310 = vsel %vm3296, %v3308, 0.0
      %v3311 = vsel %vm3297, %v3304, 0.0
      %v3312 = vsel %vm3298, %v3308, 0.0
      %v3313 = vsel %vm3299, %v3304, 0.0
      %v3314 = vsel %vm3300, %v3308, 0.0
      %v3315 = vlaneseq
      %v3316 = vshrl.u32 %v3315, 7
      %v3317 = vsub.s32 1, %v3316
      %v3318 = vrot.slane %v425, %v3317
      %v3319 = vlaneseq
      %v3320 = vshrl.u32 %v3319, 7
      %v3321 = vsub.s32 1, %v3320
      %v3322 = vrot.slane %v426, %v3321
      %vm3323 = vcmp.eq.s32.totalorder %v438, %v3318
      %vm3324 = vcmp.eq.s32.totalorder %v438, %v3322
      %vm3325 = vcmp.eq.s32.totalorder %v439, %v3318
      %vm3326 = vcmp.eq.s32.totalorder %v439, %v3322
      %vm3327 = vcmp.eq.s32.totalorder %v440, %v3318
      %vm3328 = vcmp.eq.s32.totalorder %v440, %v3322
      %v3329 = vlaneseq
      %v3330 = vshrl.u32 %v3329, 7
      %v3331 = vsub.s32 1, %v3330
      %v3332 = vrot.slane %v401, %v3331
      %v3333 = vlaneseq
      %v3334 = vshrl.u32 %v3333, 7
      %v3335 = vsub.s32 1, %v3334
      %v3336 = vrot.slane %v402, %v3335
      %v3337 = vsel %vm3323, %v3332, 0.0
      %v3338 = vsel %vm3324, %v3336, 0.0
      %v3339 = vsel %vm3325, %v3332, 0.0
      %v3340 = vsel %vm3326, %v3336, 0.0
      %v3341 = vsel %vm3327, %v3332, 0.0
      %v3342 = vsel %vm3328, %v3336, 0.0
      %v3343 = vadd.f32 %v3309, %v3337
      %v3344 = vadd.f32 %v3310, %v3338
      %v3345 = vadd.f32 %v3311, %v3339
      %v3346 = vadd.f32 %v3312, %v3340
      %v3347 = vadd.f32 %v3313, %v3341
      %v3348 = vadd.f32 %v3314, %v3342
      %v3349 = vmul.f32 %v1403, %v3343
      %v3350 = vmul.f32 %v1405, %v3344
      %v3351 = vmul.f32 %v1409, %v3345
      %v3352 = vmul.f32 %v1411, %v3346
      %v3353 = vmul.f32 %v1415, %v3347
      %v3354 = vmul.f32 %v1417, %v3348
      %v3355 = vmul.f32 %v1421, %v3343
      %v3356 = vmul.f32 %v1423, %v3344
      %v3357 = vmul.f32 %v1427, %v3345
      %v3358 = vmul.f32 %v1429, %v3346
      %v3359 = vmul.f32 %v1433, %v3347
      %v3360 = vmul.f32 %v1435, %v3348
      %v3361 = vmul.f32 %v1439, %v3343
      %v3362 = vmul.f32 %v1441, %v3344
      %v3363 = vmul.f32 %v1445, %v3345
      %v3364 = vmul.f32 %v1447, %v3346
      %v3365 = vmul.f32 %v1451, %v3347
      %v3366 = vmul.f32 %v1453, %v3348
      %v3367 = vmul.f32 %v1457, %v3343
      %v3368 = vmul.f32 %v1459, %v3344
      %v3369 = vmul.f32 %v1463, %v3345
      %v3370 = vmul.f32 %v1465, %v3346
      %v3371 = vmul.f32 %v1469, %v3347
      %v3372 = vmul.f32 %v1471, %v3348
      %v3373 = vmul.f32 %v1475, %v3343
      %v3374 = vmul.f32 %v1477, %v3344
      %v3375 = vmul.f32 %v1481, %v3345
      %v3376 = vmul.f32 %v1483, %v3346
      %v3377 = vmul.f32 %v1487, %v3347
      %v3378 = vmul.f32 %v1489, %v3348
      %v3379 = vmul.f32 %v1493, %v3343
      %v3380 = vmul.f32 %v1495, %v3344
      %v3381 = vmul.f32 %v1499, %v3345
      %v3382 = vmul.f32 %v1501, %v3346
      %v3383 = vmul.f32 %v1505, %v3347
      %v3384 = vmul.f32 %v1507, %v3348
      %v3385 = vmul.f32 %v1511, %v3343
      %v3386 = vmul.f32 %v1513, %v3344
      %v3387 = vmul.f32 %v1517, %v3345
      %v3388 = vmul.f32 %v1519, %v3346
      %v3389 = vmul.f32 %v1523, %v3347
      %v3390 = vmul.f32 %v1525, %v3348
      %v3391 = vmul.f32 %v1529, %v3343
      %v3392 = vmul.f32 %v1531, %v3344
      %v3393 = vmul.f32 %v1535, %v3345
      %v3394 = vmul.f32 %v1537, %v3346
      %v3395 = vmul.f32 %v1541, %v3347
      %v3396 = vmul.f32 %v1543, %v3348
      %v3397 = vadd.f32 %v3349, %v3351
      %v3398 = vadd.f32 %v3397, %v3353
      %v3399 = vrot.slane %v3398, 4
      %v3400 = vadd.f32 %v3398, %v3399
      %v3401 = vrot.slane %v3400, 2
      %v3402 = vadd.f32 %v3400, %v3401
      %v3403 = vrot.slane %v3402, 1
      %v3404 = vadd.f32 %v3402, %v3403
      %v3405 = vadd.f32 %v3350, %v3352
      %v3406 = vadd.f32 %v3405, %v3354
      %v3407 = vrot.slane %v3406, 4
      %v3408 = vadd.f32 %v3406, %v3407
      %v3409 = vrot.slane %v3408, 2
      %v3410 = vadd.f32 %v3408, %v3409
      %v3411 = vrot.slane %v3410, 1
      %v3412 = vadd.f32 %v3410, %v3411
      %v3413 = vadd.f32 %v3355, %v3357
      %v3414 = vadd.f32 %v3413, %v3359
      %v3415 = vrot.slane %v3414, 4
      %v3416 = vadd.f32 %v3414, %v3415
      %v3417 = vrot.slane %v3416, 2
      %v3418 = vadd.f32 %v3416, %v3417
      %v3419 = vrot.slane %v3418, 1
      %v3420 = vadd.f32 %v3418, %v3419
      %v3421 = vadd.f32 %v3356, %v3358
      %v3422 = vadd.f32 %v3421, %v3360
      %v3423 = vrot.slane %v3422, 4
      %v3424 = vadd.f32 %v3422, %v3423
      %v3425 = vrot.slane %v3424, 2
      %v3426 = vadd.f32 %v3424, %v3425
      %v3427 = vrot.slane %v3426, 1
      %v3428 = vadd.f32 %v3426, %v3427
      %v3429 = vadd.f32 %v3361, %v3363
      %v3430 = vadd.f32 %v3429, %v3365
      %v3431 = vrot.slane %v3430, 4
      %v3432 = vadd.f32 %v3430, %v3431
      %v3433 = vrot.slane %v3432, 2
      %v3434 = vadd.f32 %v3432, %v3433
      %v3435 = vrot.slane %v3434, 1
      %v3436 = vadd.f32 %v3434, %v3435
      %v3437 = vadd.f32 %v3362, %v3364
      %v3438 = vadd.f32 %v3437, %v3366
      %v3439 = vrot.slane %v3438, 4
      %v3440 = vadd.f32 %v3438, %v3439
      %v3441 = vrot.slane %v3440, 2
      %v3442 = vadd.f32 %v3440, %v3441
      %v3443 = vrot.slane %v3442, 1
      %v3444 = vadd.f32 %v3442, %v3443
      %v3445 = vadd.f32 %v3367, %v3369
      %v3446 = vadd.f32 %v3445, %v3371
      %v3447 = vrot.slane %v3446, 4
      %v3448 = vadd.f32 %v3446, %v3447
      %v3449 = vrot.slane %v3448, 2
      %v3450 = vadd.f32 %v3448, %v3449
      %v3451 = vrot.slane %v3450, 1
      %v3452 = vadd.f32 %v3450, %v3451
      %v3453 = vadd.f32 %v3368, %v3370
      %v3454 = vadd.f32 %v3453, %v3372
      %v3455 = vrot.slane %v3454, 4
      %v3456 = vadd.f32 %v3454, %v3455
      %v3457 = vrot.slane %v3456, 2
      %v3458 = vadd.f32 %v3456, %v3457
      %v3459 = vrot.slane %v3458, 1
      %v3460 = vadd.f32 %v3458, %v3459
      %v3461 = vadd.f32 %v3373, %v3375
      %v3462 = vadd.f32 %v3461, %v3377
      %v3463 = vrot.slane %v3462, 4
      %v3464 = vadd.f32 %v3462, %v3463
      %v3465 = vrot.slane %v3464, 2
      %v3466 = vadd.f32 %v3464, %v3465
      %v3467 = vrot.slane %v3466, 1
      %v3468 = vadd.f32 %v3466, %v3467
      %v3469 = vadd.f32 %v3374, %v3376
      %v3470 = vadd.f32 %v3469, %v3378
      %v3471 = vrot.slane %v3470, 4
      %v3472 = vadd.f32 %v3470, %v3471
      %v3473 = vrot.slane %v3472, 2
      %v3474 = vadd.f32 %v3472, %v3473
      %v3475 = vrot.slane %v3474, 1
      %v3476 = vadd.f32 %v3474, %v3475
      %v3477 = vadd.f32 %v3379, %v3381
      %v3478 = vadd.f32 %v3477, %v3383
      %v3479 = vrot.slane %v3478, 4
      %v3480 = vadd.f32 %v3478, %v3479
      %v3481 = vrot.slane %v3480, 2
      %v3482 = vadd.f32 %v3480, %v3481
      %v3483 = vrot.slane %v3482, 1
      %v3484 = vadd.f32 %v3482, %v3483
      %v3485 = vadd.f32 %v3380, %v3382
      %v3486 = vadd.f32 %v3485, %v3384
      %v3487 = vrot.slane %v3486, 4
      %v3488 = vadd.f32 %v3486, %v3487
      %v3489 = vrot.slane %v3488, 2
      %v3490 = vadd.f32 %v3488, %v3489
      %v3491 = vrot.slane %v3490, 1
      %v3492 = vadd.f32 %v3490, %v3491
      %v3493 = vadd.f32 %v3385, %v3387
      %v3494 = vadd.f32 %v3493, %v3389
      %v3495 = vrot.slane %v3494, 4
      %v3496 = vadd.f32 %v3494, %v3495
      %v3497 = vrot.slane %v3496, 2
      %v3498 = vadd.f32 %v3496, %v3497
      %v3499 = vrot.slane %v3498, 1
      %v3500 = vadd.f32 %v3498, %v3499
      %v3501 = vadd.f32 %v3386, %v3388
      %v3502 = vadd.f32 %v3501, %v3390
      %v3503 = vrot.slane %v3502, 4
      %v3504 = vadd.f32 %v3502, %v3503
      %v3505 = vrot.slane %v3504, 2
      %v3506 = vadd.f32 %v3504, %v3505
      %v3507 = vrot.slane %v3506, 1
      %v3508 = vadd.f32 %v3506, %v3507
      %v3509 = vadd.f32 %v3391, %v3393
      %v3510 = vadd.f32 %v3509, %v3395
      %v3511 = vrot.slane %v3510, 4
      %v3512 = vadd.f32 %v3510, %v3511
      %v3513 = vrot.slane %v3512, 2
      %v3514 = vadd.f32 %v3512, %v3513
      %v3515 = vrot.slane %v3514, 1
      %v3516 = vadd.f32 %v3514, %v3515
      %v3517 = vadd.f32 %v3392, %v3394
      %v3518 = vadd.f32 %v3517, %v3396
      %v3519 = vrot.slane %v3518, 4
      %v3520 = vadd.f32 %v3518, %v3519
      %v3521 = vrot.slane %v3520, 2
      %v3522 = vadd.f32 %v3520, %v3521
      %v3523 = vrot.slane %v3522, 1
      %v3524 = vadd.f32 %v3522, %v3523
      %v3541 = vsel %vm3262, %v3420, %v3404
      %v3542 = vsel %vm3264, %v3436, %v3541
      %v3543 = vsel %vm3266, %v3452, %v3542
      %v3544 = vsel %vm3268, %v3468, %v3543
      %v3545 = vsel %vm3270, %v3484, %v3544
      %v3546 = vsel %vm3272, %v3500, %v3545
      %v3547 = vsel %vm3274, %v3516, %v3546
      %v3548 = vsel %vm3262, %v3428, %v3412
      %v3549 = vsel %vm3264, %v3444, %v3548
      %v3550 = vsel %vm3266, %v3460, %v3549
      %v3551 = vsel %vm3268, %v3476, %v3550
      %v3552 = vsel %vm3270, %v3492, %v3551
      %v3553 = vsel %vm3272, %v3508, %v3552
      %v3554 = vsel %vm3274, %v3524, %v3553
      %3557 = vst [vmem:[#allocation2 + $0x10] sm:$0xff] %v3547
      %3558 = vst [vmem:[#allocation2 + $0x18] sm:$0xff] %v3554
      %v3559 = vlaneseq
      %v3560 = vshrl.u32 %v3559, 7
      %v3561 = vsub.s32 2, %v3560
      %v3562 = vrot.slane %v421, %v3561
      %v3563 = vlaneseq
      %v3564 = vshrl.u32 %v3563, 7
      %v3565 = vsub.s32 2, %v3564
      %v3566 = vrot.slane %v422, %v3565
      %vm3567 = vcmp.eq.s32.totalorder %v438, %v3562
      %vm3568 = vcmp.eq.s32.totalorder %v438, %v3566
      %vm3569 = vcmp.eq.s32.totalorder %v439, %v3562
      %vm3570 = vcmp.eq.s32.totalorder %v439, %v3566
      %vm3571 = vcmp.eq.s32.totalorder %v440, %v3562
      %vm3572 = vcmp.eq.s32.totalorder %v440, %v3566
      %v3573 = vlaneseq
      %v3574 = vshrl.u32 %v3573, 7
      %v3575 = vsub.s32 2, %v3574
      %v3576 = vrot.slane %v393, %v3575
      %v3577 = vlaneseq
      %v3578 = vshrl.u32 %v3577, 7
      %v3579 = vsub.s32 2, %v3578
      %v3580 = vrot.slane %v394, %v3579
      %v3581 = vsel %vm3567, %v3576, 0.0
      %v3582 = vsel %vm3568, %v3580, 0.0
      %v3583 = vsel %vm3569, %v3576, 0.0
      %v3584 = vsel %vm3570, %v3580, 0.0
      %v3585 = vsel %vm3571, %v3576, 0.0
      %v3586 = vsel %vm3572, %v3580, 0.0
      %v3587 = vlaneseq
      %v3588 = vshrl.u32 %v3587, 7
      %v3589 = vsub.s32 2, %v3588
      %v3590 = vrot.slane %v425, %v3589
      %v3591 = vlaneseq
      %v3592 = vshrl.u32 %v3591, 7
      %v3593 = vsub.s32 2, %v3592
      %v3594 = vrot.slane %v426, %v3593
      %vm3595 = vcmp.eq.s32.totalorder %v438, %v3590
      %vm3596 = vcmp.eq.s32.totalorder %v438, %v3594
      %vm3597 = vcmp.eq.s32.totalorder %v439, %v3590
      %vm3598 = vcmp.eq.s32.totalorder %v439, %v3594
      %vm3599 = vcmp.eq.s32.totalorder %v440, %v3590
      %vm3600 = vcmp.eq.s32.totalorder %v440, %v3594
      %v3601 = vlaneseq
      %v3602 = vshrl.u32 %v3601, 7
      %v3603 = vsub.s32 2, %v3602
      %v3604 = vrot.slane %v401, %v3603
      %v3605 = vlaneseq
      %v3606 = vshrl.u32 %v3605, 7
      %v3607 = vsub.s32 2, %v3606
      %v3608 = vrot.slane %v402, %v3607
      %v3609 = vsel %vm3595, %v3604, 0.0
      %v3610 = vsel %vm3596, %v3608, 0.0
      %v3611 = vsel %vm3597, %v3604, 0.0
      %v3612 = vsel %vm3598, %v3608, 0.0
      %v3613 = vsel %vm3599, %v3604, 0.0
      %v3614 = vsel %vm3600, %v3608, 0.0
      %v3615 = vadd.f32 %v3581, %v3609
      %v3616 = vadd.f32 %v3582, %v3610
      %v3617 = vadd.f32 %v3583, %v3611
      %v3618 = vadd.f32 %v3584, %v3612
      %v3619 = vadd.f32 %v3585, %v3613
      %v3620 = vadd.f32 %v3586, %v3614
      %v3621 = vmul.f32 %v1612, %v3615
      %v3622 = vmul.f32 %v1614, %v3616
      %v3623 = vmul.f32 %v1618, %v3617
      %v3624 = vmul.f32 %v1620, %v3618
      %v3625 = vmul.f32 %v1624, %v3619
      %v3626 = vmul.f32 %v1626, %v3620
      %v3627 = vmul.f32 %v1630, %v3615
      %v3628 = vmul.f32 %v1632, %v3616
      %v3629 = vmul.f32 %v1636, %v3617
      %v3630 = vmul.f32 %v1638, %v3618
      %v3631 = vmul.f32 %v1642, %v3619
      %v3632 = vmul.f32 %v1644, %v3620
      %v3633 = vmul.f32 %v1648, %v3615
      %v3634 = vmul.f32 %v1650, %v3616
      %v3635 = vmul.f32 %v1654, %v3617
      %v3636 = vmul.f32 %v1656, %v3618
      %v3637 = vmul.f32 %v1660, %v3619
      %v3638 = vmul.f32 %v1662, %v3620
      %v3639 = vmul.f32 %v1666, %v3615
      %v3640 = vmul.f32 %v1668, %v3616
      %v3641 = vmul.f32 %v1672, %v3617
      %v3642 = vmul.f32 %v1674, %v3618
      %v3643 = vmul.f32 %v1678, %v3619
      %v3644 = vmul.f32 %v1680, %v3620
      %v3645 = vmul.f32 %v1684, %v3615
      %v3646 = vmul.f32 %v1686, %v3616
      %v3647 = vmul.f32 %v1690, %v3617
      %v3648 = vmul.f32 %v1692, %v3618
      %v3649 = vmul.f32 %v1696, %v3619
      %v3650 = vmul.f32 %v1698, %v3620
      %v3651 = vmul.f32 %v1702, %v3615
      %v3652 = vmul.f32 %v1704, %v3616
      %v3653 = vmul.f32 %v1708, %v3617
      %v3654 = vmul.f32 %v1710, %v3618
      %v3655 = vmul.f32 %v1714, %v3619
      %v3656 = vmul.f32 %v1716, %v3620
      %v3657 = vmul.f32 %v1720, %v3615
      %v3658 = vmul.f32 %v1722, %v3616
      %v3659 = vmul.f32 %v1726, %v3617
      %v3660 = vmul.f32 %v1728, %v3618
      %v3661 = vmul.f32 %v1732, %v3619
      %v3662 = vmul.f32 %v1734, %v3620
      %v3663 = vmul.f32 %v1738, %v3615
      %v3664 = vmul.f32 %v1740, %v3616
      %v3665 = vmul.f32 %v1744, %v3617
      %v3666 = vmul.f32 %v1746, %v3618
      %v3667 = vmul.f32 %v1750, %v3619
      %v3668 = vmul.f32 %v1752, %v3620
      %v3669 = vadd.f32 %v3621, %v3623
      %v3670 = vadd.f32 %v3669, %v3625
      %v3671 = vrot.slane %v3670, 4
      %v3672 = vadd.f32 %v3670, %v3671
      %v3673 = vrot.slane %v3672, 2
      %v3674 = vadd.f32 %v3672, %v3673
      %v3675 = vrot.slane %v3674, 1
      %v3676 = vadd.f32 %v3674, %v3675
      %v3677 = vadd.f32 %v3622, %v3624
      %v3678 = vadd.f32 %v3677, %v3626
      %v3679 = vrot.slane %v3678, 4
      %v3680 = vadd.f32 %v3678, %v3679
      %v3681 = vrot.slane %v3680, 2
      %v3682 = vadd.f32 %v3680, %v3681
      %v3683 = vrot.slane %v3682, 1
      %v3684 = vadd.f32 %v3682, %v3683
      %v3685 = vadd.f32 %v3627, %v3629
      %v3686 = vadd.f32 %v3685, %v3631
      %v3687 = vrot.slane %v3686, 4
      %v3688 = vadd.f32 %v3686, %v3687
      %v3689 = vrot.slane %v3688, 2
      %v3690 = vadd.f32 %v3688, %v3689
      %v3691 = vrot.slane %v3690, 1
      %v3692 = vadd.f32 %v3690, %v3691
      %v3693 = vadd.f32 %v3628, %v3630
      %v3694 = vadd.f32 %v3693, %v3632
      %v3695 = vrot.slane %v3694, 4
      %v3696 = vadd.f32 %v3694, %v3695
      %v3697 = vrot.slane %v3696, 2
      %v3698 = vadd.f32 %v3696, %v3697
      %v3699 = vrot.slane %v3698, 1
      %v3700 = vadd.f32 %v3698, %v3699
      %v3701 = vadd.f32 %v3633, %v3635
      %v3702 = vadd.f32 %v3701, %v3637
      %v3703 = vrot.slane %v3702, 4
      %v3704 = vadd.f32 %v3702, %v3703
      %v3705 = vrot.slane %v3704, 2
      %v3706 = vadd.f32 %v3704, %v3705
      %v3707 = vrot.slane %v3706, 1
      %v3708 = vadd.f32 %v3706, %v3707
      %v3709 = vadd.f32 %v3634, %v3636
      %v3710 = vadd.f32 %v3709, %v3638
      %v3711 = vrot.slane %v3710, 4
      %v3712 = vadd.f32 %v3710, %v3711
      %v3713 = vrot.slane %v3712, 2
      %v3714 = vadd.f32 %v3712, %v3713
      %v3715 = vrot.slane %v3714, 1
      %v3716 = vadd.f32 %v3714, %v3715
      %v3717 = vadd.f32 %v3639, %v3641
      %v3718 = vadd.f32 %v3717, %v3643
      %v3719 = vrot.slane %v3718, 4
      %v3720 = vadd.f32 %v3718, %v3719
      %v3721 = vrot.slane %v3720, 2
      %v3722 = vadd.f32 %v3720, %v3721
      %v3723 = vrot.slane %v3722, 1
      %v3724 = vadd.f32 %v3722, %v3723
      %v3725 = vadd.f32 %v3640, %v3642
      %v3726 = vadd.f32 %v3725, %v3644
      %v3727 = vrot.slane %v3726, 4
      %v3728 = vadd.f32 %v3726, %v3727
      %v3729 = vrot.slane %v3728, 2
      %v3730 = vadd.f32 %v3728, %v3729
      %v3731 = vrot.slane %v3730, 1
      %v3732 = vadd.f32 %v3730, %v3731
      %v3733 = vadd.f32 %v3645, %v3647
      %v3734 = vadd.f32 %v3733, %v3649
      %v3735 = vrot.slane %v3734, 4
      %v3736 = vadd.f32 %v3734, %v3735
      %v3737 = vrot.slane %v3736, 2
      %v3738 = vadd.f32 %v3736, %v3737
      %v3739 = vrot.slane %v3738, 1
      %v3740 = vadd.f32 %v3738, %v3739
      %v3741 = vadd.f32 %v3646, %v3648
      %v3742 = vadd.f32 %v3741, %v3650
      %v3743 = vrot.slane %v3742, 4
      %v3744 = vadd.f32 %v3742, %v3743
      %v3745 = vrot.slane %v3744, 2
      %v3746 = vadd.f32 %v3744, %v3745
      %v3747 = vrot.slane %v3746, 1
      %v3748 = vadd.f32 %v3746, %v3747
      %v3749 = vadd.f32 %v3651, %v3653
      %v3750 = vadd.f32 %v3749, %v3655
      %v3751 = vrot.slane %v3750, 4
      %v3752 = vadd.f32 %v3750, %v3751
      %v3753 = vrot.slane %v3752, 2
      %v3754 = vadd.f32 %v3752, %v3753
      %v3755 = vrot.slane %v3754, 1
      %v3756 = vadd.f32 %v3754, %v3755
      %v3757 = vadd.f32 %v3652, %v3654
      %v3758 = vadd.f32 %v3757, %v3656
      %v3759 = vrot.slane %v3758, 4
      %v3760 = vadd.f32 %v3758, %v3759
      %v3761 = vrot.slane %v3760, 2
      %v3762 = vadd.f32 %v3760, %v3761
      %v3763 = vrot.slane %v3762, 1
      %v3764 = vadd.f32 %v3762, %v3763
      %v3765 = vadd.f32 %v3657, %v3659
      %v3766 = vadd.f32 %v3765, %v3661
      %v3767 = vrot.slane %v3766, 4
      %v3768 = vadd.f32 %v3766, %v3767
      %v3769 = vrot.slane %v3768, 2
      %v3770 = vadd.f32 %v3768, %v3769
      %v3771 = vrot.slane %v3770, 1
      %v3772 = vadd.f32 %v3770, %v3771
      %v3773 = vadd.f32 %v3658, %v3660
      %v3774 = vadd.f32 %v3773, %v3662
      %v3775 = vrot.slane %v3774, 4
      %v3776 = vadd.f32 %v3774, %v3775
      %v3777 = vrot.slane %v3776, 2
      %v3778 = vadd.f32 %v3776, %v3777
      %v3779 = vrot.slane %v3778, 1
      %v3780 = vadd.f32 %v3778, %v3779
      %v3781 = vadd.f32 %v3663, %v3665
      %v3782 = vadd.f32 %v3781, %v3667
      %v3783 = vrot.slane %v3782, 4
      %v3784 = vadd.f32 %v3782, %v3783
      %v3785 = vrot.slane %v3784, 2
      %v3786 = vadd.f32 %v3784, %v3785
      %v3787 = vrot.slane %v3786, 1
      %v3788 = vadd.f32 %v3786, %v3787
      %v3789 = vadd.f32 %v3664, %v3666
      %v3790 = vadd.f32 %v3789, %v3668
      %v3791 = vrot.slane %v3790, 4
      %v3792 = vadd.f32 %v3790, %v3791
      %v3793 = vrot.slane %v3792, 2
      %v3794 = vadd.f32 %v3792, %v3793
      %v3795 = vrot.slane %v3794, 1
      %v3796 = vadd.f32 %v3794, %v3795
      %v3813 = vsel %vm3262, %v3692, %v3676
      %v3814 = vsel %vm3264, %v3708, %v3813
      %v3815 = vsel %vm3266, %v3724, %v3814
      %v3816 = vsel %vm3268, %v3740, %v3815
      %v3817 = vsel %vm3270, %v3756, %v3816
      %v3818 = vsel %vm3272, %v3772, %v3817
      %v3819 = vsel %vm3274, %v3788, %v3818
      %v3820 = vsel %vm3262, %v3700, %v3684
      %v3821 = vsel %vm3264, %v3716, %v3820
      %v3822 = vsel %vm3266, %v3732, %v3821
      %v3823 = vsel %vm3268, %v3748, %v3822
      %v3824 = vsel %vm3270, %v3764, %v3823
      %v3825 = vsel %vm3272, %v3780, %v3824
      %v3826 = vsel %vm3274, %v3796, %v3825
      %3829 = vst [vmem:[#allocation2 + $0x20] sm:$0xff] %v3819
      %3830 = vst [vmem:[#allocation2 + $0x28] sm:$0xff] %v3826
      %v3831 = vlaneseq
      %v3832 = vshrl.u32 %v3831, 7
      %v3833 = vsub.s32 3, %v3832
      %v3834 = vrot.slane %v421, %v3833
      %v3835 = vlaneseq
      %v3836 = vshrl.u32 %v3835, 7
      %v3837 = vsub.s32 3, %v3836
      %v3838 = vrot.slane %v422, %v3837
      %vm3839 = vcmp.eq.s32.totalorder %v438, %v3834
      %vm3840 = vcmp.eq.s32.totalorder %v438, %v3838
      %vm3841 = vcmp.eq.s32.totalorder %v439, %v3834
      %vm3842 = vcmp.eq.s32.totalorder %v439, %v3838
      %vm3843 = vcmp.eq.s32.totalorder %v440, %v3834
      %vm3844 = vcmp.eq.s32.totalorder %v440, %v3838
      %v3845 = vlaneseq
      %v3846 = vshrl.u32 %v3845, 7
      %v3847 = vsub.s32 3, %v3846
      %v3848 = vrot.slane %v393, %v3847
      %v3849 = vlaneseq
      %v3850 = vshrl.u32 %v3849, 7
      %v3851 = vsub.s32 3, %v3850
      %v3852 = vrot.slane %v394, %v3851
      %v3853 = vsel %vm3839, %v3848, 0.0
      %v3854 = vsel %vm3840, %v3852, 0.0
      %v3855 = vsel %vm3841, %v3848, 0.0
      %v3856 = vsel %vm3842, %v3852, 0.0
      %v3857 = vsel %vm3843, %v3848, 0.0
      %v3858 = vsel %vm3844, %v3852, 0.0
      %v3859 = vlaneseq
      %v3860 = vshrl.u32 %v3859, 7
      %v3861 = vsub.s32 3, %v3860
      %v3862 = vrot.slane %v425, %v3861
      %v3863 = vlaneseq
      %v3864 = vshrl.u32 %v3863, 7
      %v3865 = vsub.s32 3, %v3864
      %v3866 = vrot.slane %v426, %v3865
      %vm3867 = vcmp.eq.s32.totalorder %v438, %v3862
      %vm3868 = vcmp.eq.s32.totalorder %v438, %v3866
      %vm3869 = vcmp.eq.s32.totalorder %v439, %v3862
      %vm3870 = vcmp.eq.s32.totalorder %v439, %v3866
      %vm3871 = vcmp.eq.s32.totalorder %v440, %v3862
      %vm3872 = vcmp.eq.s32.totalorder %v440, %v3866
      %v3873 = vlaneseq
      %v3874 = vshrl.u32 %v3873, 7
      %v3875 = vsub.s32 3, %v3874
      %v3876 = vrot.slane %v401, %v3875
      %v3877 = vlaneseq
      %v3878 = vshrl.u32 %v3877, 7
      %v3879 = vsub.s32 3, %v3878
      %v3880 = vrot.slane %v402, %v3879
      %v3881 = vsel %vm3867, %v3876, 0.0
      %v3882 = vsel %vm3868, %v3880, 0.0
      %v3883 = vsel %vm3869, %v3876, 0.0
      %v3884 = vsel %vm3870, %v3880, 0.0
      %v3885 = vsel %vm3871, %v3876, 0.0
      %v3886 = vsel %vm3872, %v3880, 0.0
      %v3887 = vadd.f32 %v3853, %v3881
      %v3888 = vadd.f32 %v3854, %v3882
      %v3889 = vadd.f32 %v3855, %v3883
      %v3890 = vadd.f32 %v3856, %v3884
      %v3891 = vadd.f32 %v3857, %v3885
      %v3892 = vadd.f32 %v3858, %v3886
      %v3893 = vmul.f32 %v1821, %v3887
      %v3894 = vmul.f32 %v1823, %v3888
      %v3895 = vmul.f32 %v1827, %v3889
      %v3896 = vmul.f32 %v1829, %v3890
      %v3897 = vmul.f32 %v1833, %v3891
      %v3898 = vmul.f32 %v1835, %v3892
      %v3899 = vmul.f32 %v1839, %v3887
      %v3900 = vmul.f32 %v1841, %v3888
      %v3901 = vmul.f32 %v1845, %v3889
      %v3902 = vmul.f32 %v1847, %v3890
      %v3903 = vmul.f32 %v1851, %v3891
      %v3904 = vmul.f32 %v1853, %v3892
      %v3905 = vmul.f32 %v1857, %v3887
      %v3906 = vmul.f32 %v1859, %v3888
      %v3907 = vmul.f32 %v1863, %v3889
      %v3908 = vmul.f32 %v1865, %v3890
      %v3909 = vmul.f32 %v1869, %v3891
      %v3910 = vmul.f32 %v1871, %v3892
      %v3911 = vmul.f32 %v1875, %v3887
      %v3912 = vmul.f32 %v1877, %v3888
      %v3913 = vmul.f32 %v1881, %v3889
      %v3914 = vmul.f32 %v1883, %v3890
      %v3915 = vmul.f32 %v1887, %v3891
      %v3916 = vmul.f32 %v1889, %v3892
      %v3917 = vmul.f32 %v1893, %v3887
      %v3918 = vmul.f32 %v1895, %v3888
      %v3919 = vmul.f32 %v1899, %v3889
      %v3920 = vmul.f32 %v1901, %v3890
      %v3921 = vmul.f32 %v1905, %v3891
      %v3922 = vmul.f32 %v1907, %v3892
      %v3923 = vmul.f32 %v1911, %v3887
      %v3924 = vmul.f32 %v1913, %v3888
      %v3925 = vmul.f32 %v1917, %v3889
      %v3926 = vmul.f32 %v1919, %v3890
      %v3927 = vmul.f32 %v1923, %v3891
      %v3928 = vmul.f32 %v1925, %v3892
      %v3929 = vmul.f32 %v1929, %v3887
      %v3930 = vmul.f32 %v1931, %v3888
      %v3931 = vmul.f32 %v1935, %v3889
      %v3932 = vmul.f32 %v1937, %v3890
      %v3933 = vmul.f32 %v1941, %v3891
      %v3934 = vmul.f32 %v1943, %v3892
      %v3935 = vmul.f32 %v1947, %v3887
      %v3936 = vmul.f32 %v1949, %v3888
      %v3937 = vmul.f32 %v1953, %v3889
      %v3938 = vmul.f32 %v1955, %v3890
      %v3939 = vmul.f32 %v1959, %v3891
      %v3940 = vmul.f32 %v1961, %v3892
      %v3941 = vadd.f32 %v3893, %v3895
      %v3942 = vadd.f32 %v3941, %v3897
      %v3943 = vrot.slane %v3942, 4
      %v3944 = vadd.f32 %v3942, %v3943
      %v3945 = vrot.slane %v3944, 2
      %v3946 = vadd.f32 %v3944, %v3945
      %v3947 = vrot.slane %v3946, 1
      %v3948 = vadd.f32 %v3946, %v3947
      %v3949 = vadd.f32 %v3894, %v3896
      %v3950 = vadd.f32 %v3949, %v3898
      %v3951 = vrot.slane %v3950, 4
      %v3952 = vadd.f32 %v3950, %v3951
      %v3953 = vrot.slane %v3952, 2
      %v3954 = vadd.f32 %v3952, %v3953
      %v3955 = vrot.slane %v3954, 1
      %v3956 = vadd.f32 %v3954, %v3955
      %v3957 = vadd.f32 %v3899, %v3901
      %v3958 = vadd.f32 %v3957, %v3903
      %v3959 = vrot.slane %v3958, 4
      %v3960 = vadd.f32 %v3958, %v3959
      %v3961 = vrot.slane %v3960, 2
      %v3962 = vadd.f32 %v3960, %v3961
      %v3963 = vrot.slane %v3962, 1
      %v3964 = vadd.f32 %v3962, %v3963
      %v3965 = vadd.f32 %v3900, %v3902
      %v3966 = vadd.f32 %v3965, %v3904
      %v3967 = vrot.slane %v3966, 4
      %v3968 = vadd.f32 %v3966, %v3967
      %v3969 = vrot.slane %v3968, 2
      %v3970 = vadd.f32 %v3968, %v3969
      %v3971 = vrot.slane %v3970, 1
      %v3972 = vadd.f32 %v3970, %v3971
      %v3973 = vadd.f32 %v3905, %v3907
      %v3974 = vadd.f32 %v3973, %v3909
      %v3975 = vrot.slane %v3974, 4
      %v3976 = vadd.f32 %v3974, %v3975
      %v3977 = vrot.slane %v3976, 2
      %v3978 = vadd.f32 %v3976, %v3977
      %v3979 = vrot.slane %v3978, 1
      %v3980 = vadd.f32 %v3978, %v3979
      %v3981 = vadd.f32 %v3906, %v3908
      %v3982 = vadd.f32 %v3981, %v3910
      %v3983 = vrot.slane %v3982, 4
      %v3984 = vadd.f32 %v3982, %v3983
      %v3985 = vrot.slane %v3984, 2
      %v3986 = vadd.f32 %v3984, %v3985
      %v3987 = vrot.slane %v3986, 1
      %v3988 = vadd.f32 %v3986, %v3987
      %v3989 = vadd.f32 %v3911, %v3913
      %v3990 = vadd.f32 %v3989, %v3915
      %v3991 = vrot.slane %v3990, 4
      %v3992 = vadd.f32 %v3990, %v3991
      %v3993 = vrot.slane %v3992, 2
      %v3994 = vadd.f32 %v3992, %v3993
      %v3995 = vrot.slane %v3994, 1
      %v3996 = vadd.f32 %v3994, %v3995
      %v3997 = vadd.f32 %v3912, %v3914
      %v3998 = vadd.f32 %v3997, %v3916
      %v3999 = vrot.slane %v3998, 4
      %v4000 = vadd.f32 %v3998, %v3999
      %v4001 = vrot.slane %v4000, 2
      %v4002 = vadd.f32 %v4000, %v4001
      %v4003 = vrot.slane %v4002, 1
      %v4004 = vadd.f32 %v4002, %v4003
      %v4005 = vadd.f32 %v3917, %v3919
      %v4006 = vadd.f32 %v4005, %v3921
      %v4007 = vrot.slane %v4006, 4
      %v4008 = vadd.f32 %v4006, %v4007
      %v4009 = vrot.slane %v4008, 2
      %v4010 = vadd.f32 %v4008, %v4009
      %v4011 = vrot.slane %v4010, 1
      %v4012 = vadd.f32 %v4010, %v4011
      %v4013 = vadd.f32 %v3918, %v3920
      %v4014 = vadd.f32 %v4013, %v3922
      %v4015 = vrot.slane %v4014, 4
      %v4016 = vadd.f32 %v4014, %v4015
      %v4017 = vrot.slane %v4016, 2
      %v4018 = vadd.f32 %v4016, %v4017
      %v4019 = vrot.slane %v4018, 1
      %v4020 = vadd.f32 %v4018, %v4019
      %v4021 = vadd.f32 %v3923, %v3925
      %v4022 = vadd.f32 %v4021, %v3927
      %v4023 = vrot.slane %v4022, 4
      %v4024 = vadd.f32 %v4022, %v4023
      %v4025 = vrot.slane %v4024, 2
      %v4026 = vadd.f32 %v4024, %v4025
      %v4027 = vrot.slane %v4026, 1
      %v4028 = vadd.f32 %v4026, %v4027
      %v4029 = vadd.f32 %v3924, %v3926
      %v4030 = vadd.f32 %v4029, %v3928
      %v4031 = vrot.slane %v4030, 4
      %v4032 = vadd.f32 %v4030, %v4031
      %v4033 = vrot.slane %v4032, 2
      %v4034 = vadd.f32 %v4032, %v4033
      %v4035 = vrot.slane %v4034, 1
      %v4036 = vadd.f32 %v4034, %v4035
      %v4037 = vadd.f32 %v3929, %v3931
      %v4038 = vadd.f32 %v4037, %v3933
      %v4039 = vrot.slane %v4038, 4
      %v4040 = vadd.f32 %v4038, %v4039
      %v4041 = vrot.slane %v4040, 2
      %v4042 = vadd.f32 %v4040, %v4041
      %v4043 = vrot.slane %v4042, 1
      %v4044 = vadd.f32 %v4042, %v4043
      %v4045 = vadd.f32 %v3930, %v3932
      %v4046 = vadd.f32 %v4045, %v3934
      %v4047 = vrot.slane %v4046, 4
      %v4048 = vadd.f32 %v4046, %v4047
      %v4049 = vrot.slane %v4048, 2
      %v4050 = vadd.f32 %v4048, %v4049
      %v4051 = vrot.slane %v4050, 1
      %v4052 = vadd.f32 %v4050, %v4051
      %v4053 = vadd.f32 %v3935, %v3937
      %v4054 = vadd.f32 %v4053, %v3939
      %v4055 = vrot.slane %v4054, 4
      %v4056 = vadd.f32 %v4054, %v4055
      %v4057 = vrot.slane %v4056, 2
      %v4058 = vadd.f32 %v4056, %v4057
      %v4059 = vrot.slane %v4058, 1
      %v4060 = vadd.f32 %v4058, %v4059
      %v4061 = vadd.f32 %v3936, %v3938
      %v4062 = vadd.f32 %v4061, %v3940
      %v4063 = vrot.slane %v4062, 4
      %v4064 = vadd.f32 %v4062, %v4063
      %v4065 = vrot.slane %v4064, 2
      %v4066 = vadd.f32 %v4064, %v4065
      %v4067 = vrot.slane %v4066, 1
      %v4068 = vadd.f32 %v4066, %v4067
      %v4085 = vsel %vm3262, %v3964, %v3948
      %v4086 = vsel %vm3264, %v3980, %v4085
      %v4087 = vsel %vm3266, %v3996, %v4086
      %v4088 = vsel %vm3268, %v4012, %v4087
      %v4089 = vsel %vm3270, %v4028, %v4088
      %v4090 = vsel %vm3272, %v4044, %v4089
      %v4091 = vsel %vm3274, %v4060, %v4090
      %v4092 = vsel %vm3262, %v3972, %v3956
      %v4093 = vsel %vm3264, %v3988, %v4092
      %v4094 = vsel %vm3266, %v4004, %v4093
      %v4095 = vsel %vm3268, %v4020, %v4094
      %v4096 = vsel %vm3270, %v4036, %v4095
      %v4097 = vsel %vm3272, %v4052, %v4096
      %v4098 = vsel %vm3274, %v4068, %v4097
      %4101 = vst [vmem:[#allocation2 + $0x30] sm:$0xff] %v4091
      %4102 = vst [vmem:[#allocation2 + $0x38] sm:$0xff] %v4098
      %v4103 = vlaneseq
      %v4104 = vshrl.u32 %v4103, 7
      %v4105 = vsub.s32 4, %v4104
      %v4106 = vrot.slane %v421, %v4105
      %v4107 = vlaneseq
      %v4108 = vshrl.u32 %v4107, 7
      %v4109 = vsub.s32 4, %v4108
      %v4110 = vrot.slane %v422, %v4109
      %vm4111 = vcmp.eq.s32.totalorder %v438, %v4106
      %vm4112 = vcmp.eq.s32.totalorder %v438, %v4110
      %vm4113 = vcmp.eq.s32.totalorder %v439, %v4106
      %vm4114 = vcmp.eq.s32.totalorder %v439, %v4110
      %vm4115 = vcmp.eq.s32.totalorder %v440, %v4106
      %vm4116 = vcmp.eq.s32.totalorder %v440, %v4110
      %v4117 = vlaneseq
      %v4118 = vshrl.u32 %v4117, 7
      %v4119 = vsub.s32 4, %v4118
      %v4120 = vrot.slane %v393, %v4119
      %v4121 = vlaneseq
      %v4122 = vshrl.u32 %v4121, 7
      %v4123 = vsub.s32 4, %v4122
      %v4124 = vrot.slane %v394, %v4123
      %v4125 = vsel %vm4111, %v4120, 0.0
      %v4126 = vsel %vm4112, %v4124, 0.0
      %v4127 = vsel %vm4113, %v4120, 0.0
      %v4128 = vsel %vm4114, %v4124, 0.0
      %v4129 = vsel %vm4115, %v4120, 0.0
      %v4130 = vsel %vm4116, %v4124, 0.0
      %v4131 = vlaneseq
      %v4132 = vshrl.u32 %v4131, 7
      %v4133 = vsub.s32 4, %v4132
      %v4134 = vrot.slane %v425, %v4133
      %v4135 = vlaneseq
      %v4136 = vshrl.u32 %v4135, 7
      %v4137 = vsub.s32 4, %v4136
      %v4138 = vrot.slane %v426, %v4137
      %vm4139 = vcmp.eq.s32.totalorder %v438, %v4134
      %vm4140 = vcmp.eq.s32.totalorder %v438, %v4138
      %vm4141 = vcmp.eq.s32.totalorder %v439, %v4134
      %vm4142 = vcmp.eq.s32.totalorder %v439, %v4138
      %vm4143 = vcmp.eq.s32.totalorder %v440, %v4134
      %vm4144 = vcmp.eq.s32.totalorder %v440, %v4138
      %v4145 = vlaneseq
      %v4146 = vshrl.u32 %v4145, 7
      %v4147 = vsub.s32 4, %v4146
      %v4148 = vrot.slane %v401, %v4147
      %v4149 = vlaneseq
      %v4150 = vshrl.u32 %v4149, 7
      %v4151 = vsub.s32 4, %v4150
      %v4152 = vrot.slane %v402, %v4151
      %v4153 = vsel %vm4139, %v4148, 0.0
      %v4154 = vsel %vm4140, %v4152, 0.0
      %v4155 = vsel %vm4141, %v4148, 0.0
      %v4156 = vsel %vm4142, %v4152, 0.0
      %v4157 = vsel %vm4143, %v4148, 0.0
      %v4158 = vsel %vm4144, %v4152, 0.0
      %v4159 = vadd.f32 %v4125, %v4153
      %v4160 = vadd.f32 %v4126, %v4154
      %v4161 = vadd.f32 %v4127, %v4155
      %v4162 = vadd.f32 %v4128, %v4156
      %v4163 = vadd.f32 %v4129, %v4157
      %v4164 = vadd.f32 %v4130, %v4158
      %v4165 = vmul.f32 %v2030, %v4159
      %v4166 = vmul.f32 %v2032, %v4160
      %v4167 = vmul.f32 %v2036, %v4161
      %v4168 = vmul.f32 %v2038, %v4162
      %v4169 = vmul.f32 %v2042, %v4163
      %v4170 = vmul.f32 %v2044, %v4164
      %v4171 = vmul.f32 %v2048, %v4159
      %v4172 = vmul.f32 %v2050, %v4160
      %v4173 = vmul.f32 %v2054, %v4161
      %v4174 = vmul.f32 %v2056, %v4162
      %v4175 = vmul.f32 %v2060, %v4163
      %v4176 = vmul.f32 %v2062, %v4164
      %v4177 = vmul.f32 %v2066, %v4159
      %v4178 = vmul.f32 %v2068, %v4160
      %v4179 = vmul.f32 %v2072, %v4161
      %v4180 = vmul.f32 %v2074, %v4162
      %v4181 = vmul.f32 %v2078, %v4163
      %v4182 = vmul.f32 %v2080, %v4164
      %v4183 = vmul.f32 %v2084, %v4159
      %v4184 = vmul.f32 %v2086, %v4160
      %v4185 = vmul.f32 %v2090, %v4161
      %v4186 = vmul.f32 %v2092, %v4162
      %v4187 = vmul.f32 %v2096, %v4163
      %v4188 = vmul.f32 %v2098, %v4164
      %v4189 = vmul.f32 %v2102, %v4159
      %v4190 = vmul.f32 %v2104, %v4160
      %v4191 = vmul.f32 %v2108, %v4161
      %v4192 = vmul.f32 %v2110, %v4162
      %v4193 = vmul.f32 %v2114, %v4163
      %v4194 = vmul.f32 %v2116, %v4164
      %v4195 = vmul.f32 %v2120, %v4159
      %v4196 = vmul.f32 %v2122, %v4160
      %v4197 = vmul.f32 %v2126, %v4161
      %v4198 = vmul.f32 %v2128, %v4162
      %v4199 = vmul.f32 %v2132, %v4163
      %v4200 = vmul.f32 %v2134, %v4164
      %v4201 = vmul.f32 %v2138, %v4159
      %v4202 = vmul.f32 %v2140, %v4160
      %v4203 = vmul.f32 %v2144, %v4161
      %v4204 = vmul.f32 %v2146, %v4162
      %v4205 = vmul.f32 %v2150, %v4163
      %v4206 = vmul.f32 %v2152, %v4164
      %v4207 = vmul.f32 %v2156, %v4159
      %v4208 = vmul.f32 %v2158, %v4160
      %v4209 = vmul.f32 %v2162, %v4161
      %v4210 = vmul.f32 %v2164, %v4162
      %v4211 = vmul.f32 %v2168, %v4163
      %v4212 = vmul.f32 %v2170, %v4164
      %v4213 = vadd.f32 %v4165, %v4167
      %v4214 = vadd.f32 %v4213, %v4169
      %v4215 = vrot.slane %v4214, 4
      %v4216 = vadd.f32 %v4214, %v4215
      %v4217 = vrot.slane %v4216, 2
      %v4218 = vadd.f32 %v4216, %v4217
      %v4219 = vrot.slane %v4218, 1
      %v4220 = vadd.f32 %v4218, %v4219
      %v4221 = vadd.f32 %v4166, %v4168
      %v4222 = vadd.f32 %v4221, %v4170
      %v4223 = vrot.slane %v4222, 4
      %v4224 = vadd.f32 %v4222, %v4223
      %v4225 = vrot.slane %v4224, 2
      %v4226 = vadd.f32 %v4224, %v4225
      %v4227 = vrot.slane %v4226, 1
      %v4228 = vadd.f32 %v4226, %v4227
      %v4229 = vadd.f32 %v4171, %v4173
      %v4230 = vadd.f32 %v4229, %v4175
      %v4231 = vrot.slane %v4230, 4
      %v4232 = vadd.f32 %v4230, %v4231
      %v4233 = vrot.slane %v4232, 2
      %v4234 = vadd.f32 %v4232, %v4233
      %v4235 = vrot.slane %v4234, 1
      %v4236 = vadd.f32 %v4234, %v4235
      %v4237 = vadd.f32 %v4172, %v4174
      %v4238 = vadd.f32 %v4237, %v4176
      %v4239 = vrot.slane %v4238, 4
      %v4240 = vadd.f32 %v4238, %v4239
      %v4241 = vrot.slane %v4240, 2
      %v4242 = vadd.f32 %v4240, %v4241
      %v4243 = vrot.slane %v4242, 1
      %v4244 = vadd.f32 %v4242, %v4243
      %v4245 = vadd.f32 %v4177, %v4179
      %v4246 = vadd.f32 %v4245, %v4181
      %v4247 = vrot.slane %v4246, 4
      %v4248 = vadd.f32 %v4246, %v4247
      %v4249 = vrot.slane %v4248, 2
      %v4250 = vadd.f32 %v4248, %v4249
      %v4251 = vrot.slane %v4250, 1
      %v4252 = vadd.f32 %v4250, %v4251
      %v4253 = vadd.f32 %v4178, %v4180
      %v4254 = vadd.f32 %v4253, %v4182
      %v4255 = vrot.slane %v4254, 4
      %v4256 = vadd.f32 %v4254, %v4255
      %v4257 = vrot.slane %v4256, 2
      %v4258 = vadd.f32 %v4256, %v4257
      %v4259 = vrot.slane %v4258, 1
      %v4260 = vadd.f32 %v4258, %v4259
      %v4261 = vadd.f32 %v4183, %v4185
      %v4262 = vadd.f32 %v4261, %v4187
      %v4263 = vrot.slane %v4262, 4
      %v4264 = vadd.f32 %v4262, %v4263
      %v4265 = vrot.slane %v4264, 2
      %v4266 = vadd.f32 %v4264, %v4265
      %v4267 = vrot.slane %v4266, 1
      %v4268 = vadd.f32 %v4266, %v4267
      %v4269 = vadd.f32 %v4184, %v4186
      %v4270 = vadd.f32 %v4269, %v4188
      %v4271 = vrot.slane %v4270, 4
      %v4272 = vadd.f32 %v4270, %v4271
      %v4273 = vrot.slane %v4272, 2
      %v4274 = vadd.f32 %v4272, %v4273
      %v4275 = vrot.slane %v4274, 1
      %v4276 = vadd.f32 %v4274, %v4275
      %v4277 = vadd.f32 %v4189, %v4191
      %v4278 = vadd.f32 %v4277, %v4193
      %v4279 = vrot.slane %v4278, 4
      %v4280 = vadd.f32 %v4278, %v4279
      %v4281 = vrot.slane %v4280, 2
      %v4282 = vadd.f32 %v4280, %v4281
      %v4283 = vrot.slane %v4282, 1
      %v4284 = vadd.f32 %v4282, %v4283
      %v4285 = vadd.f32 %v4190, %v4192
      %v4286 = vadd.f32 %v4285, %v4194
      %v4287 = vrot.slane %v4286, 4
      %v4288 = vadd.f32 %v4286, %v4287
      %v4289 = vrot.slane %v4288, 2
      %v4290 = vadd.f32 %v4288, %v4289
      %v4291 = vrot.slane %v4290, 1
      %v4292 = vadd.f32 %v4290, %v4291
      %v4293 = vadd.f32 %v4195, %v4197
      %v4294 = vadd.f32 %v4293, %v4199
      %v4295 = vrot.slane %v4294, 4
      %v4296 = vadd.f32 %v4294, %v4295
      %v4297 = vrot.slane %v4296, 2
      %v4298 = vadd.f32 %v4296, %v4297
      %v4299 = vrot.slane %v4298, 1
      %v4300 = vadd.f32 %v4298, %v4299
      %v4301 = vadd.f32 %v4196, %v4198
      %v4302 = vadd.f32 %v4301, %v4200
      %v4303 = vrot.slane %v4302, 4
      %v4304 = vadd.f32 %v4302, %v4303
      %v4305 = vrot.slane %v4304, 2
      %v4306 = vadd.f32 %v4304, %v4305
      %v4307 = vrot.slane %v4306, 1
      %v4308 = vadd.f32 %v4306, %v4307
      %v4309 = vadd.f32 %v4201, %v4203
      %v4310 = vadd.f32 %v4309, %v4205
      %v4311 = vrot.slane %v4310, 4
      %v4312 = vadd.f32 %v4310, %v4311
      %v4313 = vrot.slane %v4312, 2
      %v4314 = vadd.f32 %v4312, %v4313
      %v4315 = vrot.slane %v4314, 1
      %v4316 = vadd.f32 %v4314, %v4315
      %v4317 = vadd.f32 %v4202, %v4204
      %v4318 = vadd.f32 %v4317, %v4206
      %v4319 = vrot.slane %v4318, 4
      %v4320 = vadd.f32 %v4318, %v4319
      %v4321 = vrot.slane %v4320, 2
      %v4322 = vadd.f32 %v4320, %v4321
      %v4323 = vrot.slane %v4322, 1
      %v4324 = vadd.f32 %v4322, %v4323
      %v4325 = vadd.f32 %v4207, %v4209
      %v4326 = vadd.f32 %v4325, %v4211
      %v4327 = vrot.slane %v4326, 4
      %v4328 = vadd.f32 %v4326, %v4327
      %v4329 = vrot.slane %v4328, 2
      %v4330 = vadd.f32 %v4328, %v4329
      %v4331 = vrot.slane %v4330, 1
      %v4332 = vadd.f32 %v4330, %v4331
      %v4333 = vadd.f32 %v4208, %v4210
      %v4334 = vadd.f32 %v4333, %v4212
      %v4335 = vrot.slane %v4334, 4
      %v4336 = vadd.f32 %v4334, %v4335
      %v4337 = vrot.slane %v4336, 2
      %v4338 = vadd.f32 %v4336, %v4337
      %v4339 = vrot.slane %v4338, 1
      %v4340 = vadd.f32 %v4338, %v4339
      %v4357 = vsel %vm3262, %v4236, %v4220
      %v4358 = vsel %vm3264, %v4252, %v4357
      %v4359 = vsel %vm3266, %v4268, %v4358
      %v4360 = vsel %vm3268, %v4284, %v4359
      %v4361 = vsel %vm3270, %v4300, %v4360
      %v4362 = vsel %vm3272, %v4316, %v4361
      %v4363 = vsel %vm3274, %v4332, %v4362
      %v4364 = vsel %vm3262, %v4244, %v4228
      %v4365 = vsel %vm3264, %v4260, %v4364
      %v4366 = vsel %vm3266, %v4276, %v4365
      %v4367 = vsel %vm3268, %v4292, %v4366
      %v4368 = vsel %vm3270, %v4308, %v4367
      %v4369 = vsel %vm3272, %v4324, %v4368
      %v4370 = vsel %vm3274, %v4340, %v4369
      %4373 = vst [vmem:[#allocation2 + $0x40] sm:$0xff] %v4363
      %4374 = vst [vmem:[#allocation2 + $0x48] sm:$0xff] %v4370
      %v4375 = vlaneseq
      %v4376 = vshrl.u32 %v4375, 7
      %v4377 = vsub.s32 5, %v4376
      %v4378 = vrot.slane %v421, %v4377
      %v4379 = vlaneseq
      %v4380 = vshrl.u32 %v4379, 7
      %v4381 = vsub.s32 5, %v4380
      %v4382 = vrot.slane %v422, %v4381
      %vm4383 = vcmp.eq.s32.totalorder %v438, %v4378
      %vm4384 = vcmp.eq.s32.totalorder %v438, %v4382
      %vm4385 = vcmp.eq.s32.totalorder %v439, %v4378
      %vm4386 = vcmp.eq.s32.totalorder %v439, %v4382
      %vm4387 = vcmp.eq.s32.totalorder %v440, %v4378
      %vm4388 = vcmp.eq.s32.totalorder %v440, %v4382
      %v4389 = vlaneseq
      %v4390 = vshrl.u32 %v4389, 7
      %v4391 = vsub.s32 5, %v4390
      %v4392 = vrot.slane %v393, %v4391
      %v4393 = vlaneseq
      %v4394 = vshrl.u32 %v4393, 7
      %v4395 = vsub.s32 5, %v4394
      %v4396 = vrot.slane %v394, %v4395
      %v4397 = vsel %vm4383, %v4392, 0.0
      %v4398 = vsel %vm4384, %v4396, 0.0
      %v4399 = vsel %vm4385, %v4392, 0.0
      %v4400 = vsel %vm4386, %v4396, 0.0
      %v4401 = vsel %vm4387, %v4392, 0.0
      %v4402 = vsel %vm4388, %v4396, 0.0
      %v4403 = vlaneseq
      %v4404 = vshrl.u32 %v4403, 7
      %v4405 = vsub.s32 5, %v4404
      %v4406 = vrot.slane %v425, %v4405
      %v4407 = vlaneseq
      %v4408 = vshrl.u32 %v4407, 7
      %v4409 = vsub.s32 5, %v4408
      %v4410 = vrot.slane %v426, %v4409
      %vm4411 = vcmp.eq.s32.totalorder %v438, %v4406
      %vm4412 = vcmp.eq.s32.totalorder %v438, %v4410
      %vm4413 = vcmp.eq.s32.totalorder %v439, %v4406
      %vm4414 = vcmp.eq.s32.totalorder %v439, %v4410
      %vm4415 = vcmp.eq.s32.totalorder %v440, %v4406
      %vm4416 = vcmp.eq.s32.totalorder %v440, %v4410
      %v4417 = vlaneseq
      %v4418 = vshrl.u32 %v4417, 7
      %v4419 = vsub.s32 5, %v4418
      %v4420 = vrot.slane %v401, %v4419
      %v4421 = vlaneseq
      %v4422 = vshrl.u32 %v4421, 7
      %v4423 = vsub.s32 5, %v4422
      %v4424 = vrot.slane %v402, %v4423
      %v4425 = vsel %vm4411, %v4420, 0.0
      %v4426 = vsel %vm4412, %v4424, 0.0
      %v4427 = vsel %vm4413, %v4420, 0.0
      %v4428 = vsel %vm4414, %v4424, 0.0
      %v4429 = vsel %vm4415, %v4420, 0.0
      %v4430 = vsel %vm4416, %v4424, 0.0
      %v4431 = vadd.f32 %v4397, %v4425
      %v4432 = vadd.f32 %v4398, %v4426
      %v4433 = vadd.f32 %v4399, %v4427
      %v4434 = vadd.f32 %v4400, %v4428
      %v4435 = vadd.f32 %v4401, %v4429
      %v4436 = vadd.f32 %v4402, %v4430
      %v4437 = vmul.f32 %v2239, %v4431
      %v4438 = vmul.f32 %v2241, %v4432
      %v4439 = vmul.f32 %v2245, %v4433
      %v4440 = vmul.f32 %v2247, %v4434
      %v4441 = vmul.f32 %v2251, %v4435
      %v4442 = vmul.f32 %v2253, %v4436
      %v4443 = vmul.f32 %v2257, %v4431
      %v4444 = vmul.f32 %v2259, %v4432
      %v4445 = vmul.f32 %v2263, %v4433
      %v4446 = vmul.f32 %v2265, %v4434
      %v4447 = vmul.f32 %v2269, %v4435
      %v4448 = vmul.f32 %v2271, %v4436
      %v4449 = vmul.f32 %v2275, %v4431
      %v4450 = vmul.f32 %v2277, %v4432
      %v4451 = vmul.f32 %v2281, %v4433
      %v4452 = vmul.f32 %v2283, %v4434
      %v4453 = vmul.f32 %v2287, %v4435
      %v4454 = vmul.f32 %v2289, %v4436
      %v4455 = vmul.f32 %v2293, %v4431
      %v4456 = vmul.f32 %v2295, %v4432
      %v4457 = vmul.f32 %v2299, %v4433
      %v4458 = vmul.f32 %v2301, %v4434
      %v4459 = vmul.f32 %v2305, %v4435
      %v4460 = vmul.f32 %v2307, %v4436
      %v4461 = vmul.f32 %v2311, %v4431
      %v4462 = vmul.f32 %v2313, %v4432
      %v4463 = vmul.f32 %v2317, %v4433
      %v4464 = vmul.f32 %v2319, %v4434
      %v4465 = vmul.f32 %v2323, %v4435
      %v4466 = vmul.f32 %v2325, %v4436
      %v4467 = vmul.f32 %v2329, %v4431
      %v4468 = vmul.f32 %v2331, %v4432
      %v4469 = vmul.f32 %v2335, %v4433
      %v4470 = vmul.f32 %v2337, %v4434
      %v4471 = vmul.f32 %v2341, %v4435
      %v4472 = vmul.f32 %v2343, %v4436
      %v4473 = vmul.f32 %v2347, %v4431
      %v4474 = vmul.f32 %v2349, %v4432
      %v4475 = vmul.f32 %v2353, %v4433
      %v4476 = vmul.f32 %v2355, %v4434
      %v4477 = vmul.f32 %v2359, %v4435
      %v4478 = vmul.f32 %v2361, %v4436
      %v4479 = vmul.f32 %v2365, %v4431
      %v4480 = vmul.f32 %v2367, %v4432
      %v4481 = vmul.f32 %v2371, %v4433
      %v4482 = vmul.f32 %v2373, %v4434
      %v4483 = vmul.f32 %v2377, %v4435
      %v4484 = vmul.f32 %v2379, %v4436
      %v4485 = vadd.f32 %v4437, %v4439
      %v4486 = vadd.f32 %v4485, %v4441
      %v4487 = vrot.slane %v4486, 4
      %v4488 = vadd.f32 %v4486, %v4487
      %v4489 = vrot.slane %v4488, 2
      %v4490 = vadd.f32 %v4488, %v4489
      %v4491 = vrot.slane %v4490, 1
      %v4492 = vadd.f32 %v4490, %v4491
      %v4493 = vadd.f32 %v4438, %v4440
      %v4494 = vadd.f32 %v4493, %v4442
      %v4495 = vrot.slane %v4494, 4
      %v4496 = vadd.f32 %v4494, %v4495
      %v4497 = vrot.slane %v4496, 2
      %v4498 = vadd.f32 %v4496, %v4497
      %v4499 = vrot.slane %v4498, 1
      %v4500 = vadd.f32 %v4498, %v4499
      %v4501 = vadd.f32 %v4443, %v4445
      %v4502 = vadd.f32 %v4501, %v4447
      %v4503 = vrot.slane %v4502, 4
      %v4504 = vadd.f32 %v4502, %v4503
      %v4505 = vrot.slane %v4504, 2
      %v4506 = vadd.f32 %v4504, %v4505
      %v4507 = vrot.slane %v4506, 1
      %v4508 = vadd.f32 %v4506, %v4507
      %v4509 = vadd.f32 %v4444, %v4446
      %v4510 = vadd.f32 %v4509, %v4448
      %v4511 = vrot.slane %v4510, 4
      %v4512 = vadd.f32 %v4510, %v4511
      %v4513 = vrot.slane %v4512, 2
      %v4514 = vadd.f32 %v4512, %v4513
      %v4515 = vrot.slane %v4514, 1
      %v4516 = vadd.f32 %v4514, %v4515
      %v4517 = vadd.f32 %v4449, %v4451
      %v4518 = vadd.f32 %v4517, %v4453
      %v4519 = vrot.slane %v4518, 4
      %v4520 = vadd.f32 %v4518, %v4519
      %v4521 = vrot.slane %v4520, 2
      %v4522 = vadd.f32 %v4520, %v4521
      %v4523 = vrot.slane %v4522, 1
      %v4524 = vadd.f32 %v4522, %v4523
      %v4525 = vadd.f32 %v4450, %v4452
      %v4526 = vadd.f32 %v4525, %v4454
      %v4527 = vrot.slane %v4526, 4
      %v4528 = vadd.f32 %v4526, %v4527
      %v4529 = vrot.slane %v4528, 2
      %v4530 = vadd.f32 %v4528, %v4529
      %v4531 = vrot.slane %v4530, 1
      %v4532 = vadd.f32 %v4530, %v4531
      %v4533 = vadd.f32 %v4455, %v4457
      %v4534 = vadd.f32 %v4533, %v4459
      %v4535 = vrot.slane %v4534, 4
      %v4536 = vadd.f32 %v4534, %v4535
      %v4537 = vrot.slane %v4536, 2
      %v4538 = vadd.f32 %v4536, %v4537
      %v4539 = vrot.slane %v4538, 1
      %v4540 = vadd.f32 %v4538, %v4539
      %v4541 = vadd.f32 %v4456, %v4458
      %v4542 = vadd.f32 %v4541, %v4460
      %v4543 = vrot.slane %v4542, 4
      %v4544 = vadd.f32 %v4542, %v4543
      %v4545 = vrot.slane %v4544, 2
      %v4546 = vadd.f32 %v4544, %v4545
      %v4547 = vrot.slane %v4546, 1
      %v4548 = vadd.f32 %v4546, %v4547
      %v4549 = vadd.f32 %v4461, %v4463
      %v4550 = vadd.f32 %v4549, %v4465
      %v4551 = vrot.slane %v4550, 4
      %v4552 = vadd.f32 %v4550, %v4551
      %v4553 = vrot.slane %v4552, 2
      %v4554 = vadd.f32 %v4552, %v4553
      %v4555 = vrot.slane %v4554, 1
      %v4556 = vadd.f32 %v4554, %v4555
      %v4557 = vadd.f32 %v4462, %v4464
      %v4558 = vadd.f32 %v4557, %v4466
      %v4559 = vrot.slane %v4558, 4
      %v4560 = vadd.f32 %v4558, %v4559
      %v4561 = vrot.slane %v4560, 2
      %v4562 = vadd.f32 %v4560, %v4561
      %v4563 = vrot.slane %v4562, 1
      %v4564 = vadd.f32 %v4562, %v4563
      %v4565 = vadd.f32 %v4467, %v4469
      %v4566 = vadd.f32 %v4565, %v4471
      %v4567 = vrot.slane %v4566, 4
      %v4568 = vadd.f32 %v4566, %v4567
      %v4569 = vrot.slane %v4568, 2
      %v4570 = vadd.f32 %v4568, %v4569
      %v4571 = vrot.slane %v4570, 1
      %v4572 = vadd.f32 %v4570, %v4571
      %v4573 = vadd.f32 %v4468, %v4470
      %v4574 = vadd.f32 %v4573, %v4472
      %v4575 = vrot.slane %v4574, 4
      %v4576 = vadd.f32 %v4574, %v4575
      %v4577 = vrot.slane %v4576, 2
      %v4578 = vadd.f32 %v4576, %v4577
      %v4579 = vrot.slane %v4578, 1
      %v4580 = vadd.f32 %v4578, %v4579
      %v4581 = vadd.f32 %v4473, %v4475
      %v4582 = vadd.f32 %v4581, %v4477
      %v4583 = vrot.slane %v4582, 4
      %v4584 = vadd.f32 %v4582, %v4583
      %v4585 = vrot.slane %v4584, 2
      %v4586 = vadd.f32 %v4584, %v4585
      %v4587 = vrot.slane %v4586, 1
      %v4588 = vadd.f32 %v4586, %v4587
      %v4589 = vadd.f32 %v4474, %v4476
      %v4590 = vadd.f32 %v4589, %v4478
      %v4591 = vrot.slane %v4590, 4
      %v4592 = vadd.f32 %v4590, %v4591
      %v4593 = vrot.slane %v4592, 2
      %v4594 = vadd.f32 %v4592, %v4593
      %v4595 = vrot.slane %v4594, 1
      %v4596 = vadd.f32 %v4594, %v4595
      %v4597 = vadd.f32 %v4479, %v4481
      %v4598 = vadd.f32 %v4597, %v4483
      %v4599 = vrot.slane %v4598, 4
      %v4600 = vadd.f32 %v4598, %v4599
      %v4601 = vrot.slane %v4600, 2
      %v4602 = vadd.f32 %v4600, %v4601
      %v4603 = vrot.slane %v4602, 1
      %v4604 = vadd.f32 %v4602, %v4603
      %v4605 = vadd.f32 %v4480, %v4482
      %v4606 = vadd.f32 %v4605, %v4484
      %v4607 = vrot.slane %v4606, 4
      %v4608 = vadd.f32 %v4606, %v4607
      %v4609 = vrot.slane %v4608, 2
      %v4610 = vadd.f32 %v4608, %v4609
      %v4611 = vrot.slane %v4610, 1
      %v4612 = vadd.f32 %v4610, %v4611
      %v4629 = vsel %vm3262, %v4508, %v4492
      %v4630 = vsel %vm3264, %v4524, %v4629
      %v4631 = vsel %vm3266, %v4540, %v4630
      %v4632 = vsel %vm3268, %v4556, %v4631
      %v4633 = vsel %vm3270, %v4572, %v4632
      %v4634 = vsel %vm3272, %v4588, %v4633
      %v4635 = vsel %vm3274, %v4604, %v4634
      %v4636 = vsel %vm3262, %v4516, %v4500
      %v4637 = vsel %vm3264, %v4532, %v4636
      %v4638 = vsel %vm3266, %v4548, %v4637
      %v4639 = vsel %vm3268, %v4564, %v4638
      %v4640 = vsel %vm3270, %v4580, %v4639
      %v4641 = vsel %vm3272, %v4596, %v4640
      %v4642 = vsel %vm3274, %v4612, %v4641
      %4645 = vst [vmem:[#allocation2 + $0x50] sm:$0xff] %v4635
      %4646 = vst [vmem:[#allocation2 + $0x58] sm:$0xff] %v4642
      %v4647 = vlaneseq
      %v4648 = vshrl.u32 %v4647, 7
      %v4649 = vsub.s32 6, %v4648
      %v4650 = vrot.slane %v421, %v4649
      %v4651 = vlaneseq
      %v4652 = vshrl.u32 %v4651, 7
      %v4653 = vsub.s32 6, %v4652
      %v4654 = vrot.slane %v422, %v4653
      %vm4655 = vcmp.eq.s32.totalorder %v438, %v4650
      %vm4656 = vcmp.eq.s32.totalorder %v438, %v4654
      %vm4657 = vcmp.eq.s32.totalorder %v439, %v4650
      %vm4658 = vcmp.eq.s32.totalorder %v439, %v4654
      %vm4659 = vcmp.eq.s32.totalorder %v440, %v4650
      %vm4660 = vcmp.eq.s32.totalorder %v440, %v4654
      %v4661 = vlaneseq
      %v4662 = vshrl.u32 %v4661, 7
      %v4663 = vsub.s32 6, %v4662
      %v4664 = vrot.slane %v393, %v4663
      %v4665 = vlaneseq
      %v4666 = vshrl.u32 %v4665, 7
      %v4667 = vsub.s32 6, %v4666
      %v4668 = vrot.slane %v394, %v4667
      %v4669 = vsel %vm4655, %v4664, 0.0
      %v4670 = vsel %vm4656, %v4668, 0.0
      %v4671 = vsel %vm4657, %v4664, 0.0
      %v4672 = vsel %vm4658, %v4668, 0.0
      %v4673 = vsel %vm4659, %v4664, 0.0
      %v4674 = vsel %vm4660, %v4668, 0.0
      %v4675 = vlaneseq
      %v4676 = vshrl.u32 %v4675, 7
      %v4677 = vsub.s32 6, %v4676
      %v4678 = vrot.slane %v425, %v4677
      %v4679 = vlaneseq
      %v4680 = vshrl.u32 %v4679, 7
      %v4681 = vsub.s32 6, %v4680
      %v4682 = vrot.slane %v426, %v4681
      %vm4683 = vcmp.eq.s32.totalorder %v438, %v4678
      %vm4684 = vcmp.eq.s32.totalorder %v438, %v4682
      %vm4685 = vcmp.eq.s32.totalorder %v439, %v4678
      %vm4686 = vcmp.eq.s32.totalorder %v439, %v4682
      %vm4687 = vcmp.eq.s32.totalorder %v440, %v4678
      %vm4688 = vcmp.eq.s32.totalorder %v440, %v4682
      %v4689 = vlaneseq
      %v4690 = vshrl.u32 %v4689, 7
      %v4691 = vsub.s32 6, %v4690
      %v4692 = vrot.slane %v401, %v4691
      %v4693 = vlaneseq
      %v4694 = vshrl.u32 %v4693, 7
      %v4695 = vsub.s32 6, %v4694
      %v4696 = vrot.slane %v402, %v4695
      %v4697 = vsel %vm4683, %v4692, 0.0
      %v4698 = vsel %vm4684, %v4696, 0.0
      %v4699 = vsel %vm4685, %v4692, 0.0
      %v4700 = vsel %vm4686, %v4696, 0.0
      %v4701 = vsel %vm4687, %v4692, 0.0
      %v4702 = vsel %vm4688, %v4696, 0.0
      %v4703 = vadd.f32 %v4669, %v4697
      %v4704 = vadd.f32 %v4670, %v4698
      %v4705 = vadd.f32 %v4671, %v4699
      %v4706 = vadd.f32 %v4672, %v4700
      %v4707 = vadd.f32 %v4673, %v4701
      %v4708 = vadd.f32 %v4674, %v4702
      %v4709 = vmul.f32 %v2448, %v4703
      %v4710 = vmul.f32 %v2450, %v4704
      %v4711 = vmul.f32 %v2454, %v4705
      %v4712 = vmul.f32 %v2456, %v4706
      %v4713 = vmul.f32 %v2460, %v4707
      %v4714 = vmul.f32 %v2462, %v4708
      %v4715 = vmul.f32 %v2466, %v4703
      %v4716 = vmul.f32 %v2468, %v4704
      %v4717 = vmul.f32 %v2472, %v4705
      %v4718 = vmul.f32 %v2474, %v4706
      %v4719 = vmul.f32 %v2478, %v4707
      %v4720 = vmul.f32 %v2480, %v4708
      %v4721 = vmul.f32 %v2484, %v4703
      %v4722 = vmul.f32 %v2486, %v4704
      %v4723 = vmul.f32 %v2490, %v4705
      %v4724 = vmul.f32 %v2492, %v4706
      %v4725 = vmul.f32 %v2496, %v4707
      %v4726 = vmul.f32 %v2498, %v4708
      %v4727 = vmul.f32 %v2502, %v4703
      %v4728 = vmul.f32 %v2504, %v4704
      %v4729 = vmul.f32 %v2508, %v4705
      %v4730 = vmul.f32 %v2510, %v4706
      %v4731 = vmul.f32 %v2514, %v4707
      %v4732 = vmul.f32 %v2516, %v4708
      %v4733 = vmul.f32 %v2520, %v4703
      %v4734 = vmul.f32 %v2522, %v4704
      %v4735 = vmul.f32 %v2526, %v4705
      %v4736 = vmul.f32 %v2528, %v4706
      %v4737 = vmul.f32 %v2532, %v4707
      %v4738 = vmul.f32 %v2534, %v4708
      %v4739 = vmul.f32 %v2538, %v4703
      %v4740 = vmul.f32 %v2540, %v4704
      %v4741 = vmul.f32 %v2544, %v4705
      %v4742 = vmul.f32 %v2546, %v4706
      %v4743 = vmul.f32 %v2550, %v4707
      %v4744 = vmul.f32 %v2552, %v4708
      %v4745 = vmul.f32 %v2556, %v4703
      %v4746 = vmul.f32 %v2558, %v4704
      %v4747 = vmul.f32 %v2562, %v4705
      %v4748 = vmul.f32 %v2564, %v4706
      %v4749 = vmul.f32 %v2568, %v4707
      %v4750 = vmul.f32 %v2570, %v4708
      %v4751 = vmul.f32 %v2574, %v4703
      %v4752 = vmul.f32 %v2576, %v4704
      %v4753 = vmul.f32 %v2580, %v4705
      %v4754 = vmul.f32 %v2582, %v4706
      %v4755 = vmul.f32 %v2586, %v4707
      %v4756 = vmul.f32 %v2588, %v4708
      %v4757 = vadd.f32 %v4709, %v4711
      %v4758 = vadd.f32 %v4757, %v4713
      %v4759 = vrot.slane %v4758, 4
      %v4760 = vadd.f32 %v4758, %v4759
      %v4761 = vrot.slane %v4760, 2
      %v4762 = vadd.f32 %v4760, %v4761
      %v4763 = vrot.slane %v4762, 1
      %v4764 = vadd.f32 %v4762, %v4763
      %v4765 = vadd.f32 %v4710, %v4712
      %v4766 = vadd.f32 %v4765, %v4714
      %v4767 = vrot.slane %v4766, 4
      %v4768 = vadd.f32 %v4766, %v4767
      %v4769 = vrot.slane %v4768, 2
      %v4770 = vadd.f32 %v4768, %v4769
      %v4771 = vrot.slane %v4770, 1
      %v4772 = vadd.f32 %v4770, %v4771
      %v4773 = vadd.f32 %v4715, %v4717
      %v4774 = vadd.f32 %v4773, %v4719
      %v4775 = vrot.slane %v4774, 4
      %v4776 = vadd.f32 %v4774, %v4775
      %v4777 = vrot.slane %v4776, 2
      %v4778 = vadd.f32 %v4776, %v4777
      %v4779 = vrot.slane %v4778, 1
      %v4780 = vadd.f32 %v4778, %v4779
      %v4781 = vadd.f32 %v4716, %v4718
      %v4782 = vadd.f32 %v4781, %v4720
      %v4783 = vrot.slane %v4782, 4
      %v4784 = vadd.f32 %v4782, %v4783
      %v4785 = vrot.slane %v4784, 2
      %v4786 = vadd.f32 %v4784, %v4785
      %v4787 = vrot.slane %v4786, 1
      %v4788 = vadd.f32 %v4786, %v4787
      %v4789 = vadd.f32 %v4721, %v4723
      %v4790 = vadd.f32 %v4789, %v4725
      %v4791 = vrot.slane %v4790, 4
      %v4792 = vadd.f32 %v4790, %v4791
      %v4793 = vrot.slane %v4792, 2
      %v4794 = vadd.f32 %v4792, %v4793
      %v4795 = vrot.slane %v4794, 1
      %v4796 = vadd.f32 %v4794, %v4795
      %v4797 = vadd.f32 %v4722, %v4724
      %v4798 = vadd.f32 %v4797, %v4726
      %v4799 = vrot.slane %v4798, 4
      %v4800 = vadd.f32 %v4798, %v4799
      %v4801 = vrot.slane %v4800, 2
      %v4802 = vadd.f32 %v4800, %v4801
      %v4803 = vrot.slane %v4802, 1
      %v4804 = vadd.f32 %v4802, %v4803
      %v4805 = vadd.f32 %v4727, %v4729
      %v4806 = vadd.f32 %v4805, %v4731
      %v4807 = vrot.slane %v4806, 4
      %v4808 = vadd.f32 %v4806, %v4807
      %v4809 = vrot.slane %v4808, 2
      %v4810 = vadd.f32 %v4808, %v4809
      %v4811 = vrot.slane %v4810, 1
      %v4812 = vadd.f32 %v4810, %v4811
      %v4813 = vadd.f32 %v4728, %v4730
      %v4814 = vadd.f32 %v4813, %v4732
      %v4815 = vrot.slane %v4814, 4
      %v4816 = vadd.f32 %v4814, %v4815
      %v4817 = vrot.slane %v4816, 2
      %v4818 = vadd.f32 %v4816, %v4817
      %v4819 = vrot.slane %v4818, 1
      %v4820 = vadd.f32 %v4818, %v4819
      %v4821 = vadd.f32 %v4733, %v4735
      %v4822 = vadd.f32 %v4821, %v4737
      %v4823 = vrot.slane %v4822, 4
      %v4824 = vadd.f32 %v4822, %v4823
      %v4825 = vrot.slane %v4824, 2
      %v4826 = vadd.f32 %v4824, %v4825
      %v4827 = vrot.slane %v4826, 1
      %v4828 = vadd.f32 %v4826, %v4827
      %v4829 = vadd.f32 %v4734, %v4736
      %v4830 = vadd.f32 %v4829, %v4738
      %v4831 = vrot.slane %v4830, 4
      %v4832 = vadd.f32 %v4830, %v4831
      %v4833 = vrot.slane %v4832, 2
      %v4834 = vadd.f32 %v4832, %v4833
      %v4835 = vrot.slane %v4834, 1
      %v4836 = vadd.f32 %v4834, %v4835
      %v4837 = vadd.f32 %v4739, %v4741
      %v4838 = vadd.f32 %v4837, %v4743
      %v4839 = vrot.slane %v4838, 4
      %v4840 = vadd.f32 %v4838, %v4839
      %v4841 = vrot.slane %v4840, 2
      %v4842 = vadd.f32 %v4840, %v4841
      %v4843 = vrot.slane %v4842, 1
      %v4844 = vadd.f32 %v4842, %v4843
      %v4845 = vadd.f32 %v4740, %v4742
      %v4846 = vadd.f32 %v4845, %v4744
      %v4847 = vrot.slane %v4846, 4
      %v4848 = vadd.f32 %v4846, %v4847
      %v4849 = vrot.slane %v4848, 2
      %v4850 = vadd.f32 %v4848, %v4849
      %v4851 = vrot.slane %v4850, 1
      %v4852 = vadd.f32 %v4850, %v4851
      %v4853 = vadd.f32 %v4745, %v4747
      %v4854 = vadd.f32 %v4853, %v4749
      %v4855 = vrot.slane %v4854, 4
      %v4856 = vadd.f32 %v4854, %v4855
      %v4857 = vrot.slane %v4856, 2
      %v4858 = vadd.f32 %v4856, %v4857
      %v4859 = vrot.slane %v4858, 1
      %v4860 = vadd.f32 %v4858, %v4859
      %v4861 = vadd.f32 %v4746, %v4748
      %v4862 = vadd.f32 %v4861, %v4750
      %v4863 = vrot.slane %v4862, 4
      %v4864 = vadd.f32 %v4862, %v4863
      %v4865 = vrot.slane %v4864, 2
      %v4866 = vadd.f32 %v4864, %v4865
      %v4867 = vrot.slane %v4866, 1
      %v4868 = vadd.f32 %v4866, %v4867
      %v4869 = vadd.f32 %v4751, %v4753
      %v4870 = vadd.f32 %v4869, %v4755
      %v4871 = vrot.slane %v4870, 4
      %v4872 = vadd.f32 %v4870, %v4871
      %v4873 = vrot.slane %v4872, 2
      %v4874 = vadd.f32 %v4872, %v4873
      %v4875 = vrot.slane %v4874, 1
      %v4876 = vadd.f32 %v4874, %v4875
      %v4877 = vadd.f32 %v4752, %v4754
      %v4878 = vadd.f32 %v4877, %v4756
      %v4879 = vrot.slane %v4878, 4
      %v4880 = vadd.f32 %v4878, %v4879
      %v4881 = vrot.slane %v4880, 2
      %v4882 = vadd.f32 %v4880, %v4881
      %v4883 = vrot.slane %v4882, 1
      %v4884 = vadd.f32 %v4882, %v4883
      %v4901 = vsel %vm3262, %v4780, %v4764
      %v4902 = vsel %vm3264, %v4796, %v4901
      %v4903 = vsel %vm3266, %v4812, %v4902
      %v4904 = vsel %vm3268, %v4828, %v4903
      %v4905 = vsel %vm3270, %v4844, %v4904
      %v4906 = vsel %vm3272, %v4860, %v4905
      %v4907 = vsel %vm3274, %v4876, %v4906
      %v4908 = vsel %vm3262, %v4788, %v4772
      %v4909 = vsel %vm3264, %v4804, %v4908
      %v4910 = vsel %vm3266, %v4820, %v4909
      %v4911 = vsel %vm3268, %v4836, %v4910
      %v4912 = vsel %vm3270, %v4852, %v4911
      %v4913 = vsel %vm3272, %v4868, %v4912
      %v4914 = vsel %vm3274, %v4884, %v4913
      %4917 = vst [vmem:[#allocation2 + $0x60] sm:$0xff] %v4907
      %4918 = vst [vmem:[#allocation2 + $0x68] sm:$0xff] %v4914
      %v4919 = vlaneseq
      %v4920 = vshrl.u32 %v4919, 7
      %v4921 = vsub.s32 7, %v4920
      %v4922 = vrot.slane %v421, %v4921
      %v4923 = vlaneseq
      %v4924 = vshrl.u32 %v4923, 7
      %v4925 = vsub.s32 7, %v4924
      %v4926 = vrot.slane %v422, %v4925
      %vm4927 = vcmp.eq.s32.totalorder %v438, %v4922
      %vm4928 = vcmp.eq.s32.totalorder %v438, %v4926
      %vm4929 = vcmp.eq.s32.totalorder %v439, %v4922
      %vm4930 = vcmp.eq.s32.totalorder %v439, %v4926
      %vm4931 = vcmp.eq.s32.totalorder %v440, %v4922
      %vm4932 = vcmp.eq.s32.totalorder %v440, %v4926
      %v4933 = vlaneseq
      %v4934 = vshrl.u32 %v4933, 7
      %v4935 = vsub.s32 7, %v4934
      %v4936 = vrot.slane %v393, %v4935
      %v4937 = vlaneseq
      %v4938 = vshrl.u32 %v4937, 7
      %v4939 = vsub.s32 7, %v4938
      %v4940 = vrot.slane %v394, %v4939
      %v4941 = vsel %vm4927, %v4936, 0.0
      %v4942 = vsel %vm4928, %v4940, 0.0
      %v4943 = vsel %vm4929, %v4936, 0.0
      %v4944 = vsel %vm4930, %v4940, 0.0
      %v4945 = vsel %vm4931, %v4936, 0.0
      %v4946 = vsel %vm4932, %v4940, 0.0
      %v4947 = vlaneseq
      %v4948 = vshrl.u32 %v4947, 7
      %v4949 = vsub.s32 7, %v4948
      %v4950 = vrot.slane %v425, %v4949
      %v4951 = vlaneseq
      %v4952 = vshrl.u32 %v4951, 7
      %v4953 = vsub.s32 7, %v4952
      %v4954 = vrot.slane %v426, %v4953
      %vm4955 = vcmp.eq.s32.totalorder %v438, %v4950
      %vm4956 = vcmp.eq.s32.totalorder %v438, %v4954
      %vm4957 = vcmp.eq.s32.totalorder %v439, %v4950
      %vm4958 = vcmp.eq.s32.totalorder %v439, %v4954
      %vm4959 = vcmp.eq.s32.totalorder %v440, %v4950
      %vm4960 = vcmp.eq.s32.totalorder %v440, %v4954
      %v4961 = vlaneseq
      %v4962 = vshrl.u32 %v4961, 7
      %v4963 = vsub.s32 7, %v4962
      %v4964 = vrot.slane %v401, %v4963
      %v4965 = vlaneseq
      %v4966 = vshrl.u32 %v4965, 7
      %v4967 = vsub.s32 7, %v4966
      %v4968 = vrot.slane %v402, %v4967
      %v4969 = vsel %vm4955, %v4964, 0.0
      %v4970 = vsel %vm4956, %v4968, 0.0
      %v4971 = vsel %vm4957, %v4964, 0.0
      %v4972 = vsel %vm4958, %v4968, 0.0
      %v4973 = vsel %vm4959, %v4964, 0.0
      %v4974 = vsel %vm4960, %v4968, 0.0
      %v4975 = vadd.f32 %v4941, %v4969
      %v4976 = vadd.f32 %v4942, %v4970
      %v4977 = vadd.f32 %v4943, %v4971
      %v4978 = vadd.f32 %v4944, %v4972
      %v4979 = vadd.f32 %v4945, %v4973
      %v4980 = vadd.f32 %v4946, %v4974
      %v4981 = vmul.f32 %v2657, %v4975
      %v4982 = vmul.f32 %v2659, %v4976
      %v4983 = vmul.f32 %v2663, %v4977
      %v4984 = vmul.f32 %v2665, %v4978
      %v4985 = vmul.f32 %v2669, %v4979
      %v4986 = vmul.f32 %v2671, %v4980
      %v4987 = vmul.f32 %v2675, %v4975
      %v4988 = vmul.f32 %v2677, %v4976
      %v4989 = vmul.f32 %v2681, %v4977
      %v4990 = vmul.f32 %v2683, %v4978
      %v4991 = vmul.f32 %v2687, %v4979
      %v4992 = vmul.f32 %v2689, %v4980
      %v4993 = vmul.f32 %v2693, %v4975
      %v4994 = vmul.f32 %v2695, %v4976
      %v4995 = vmul.f32 %v2699, %v4977
      %v4996 = vmul.f32 %v2701, %v4978
      %v4997 = vmul.f32 %v2705, %v4979
      %v4998 = vmul.f32 %v2707, %v4980
      %v4999 = vmul.f32 %v2711, %v4975
      %v5000 = vmul.f32 %v2713, %v4976
      %v5001 = vmul.f32 %v2717, %v4977
      %v5002 = vmul.f32 %v2719, %v4978
      %v5003 = vmul.f32 %v2723, %v4979
      %v5004 = vmul.f32 %v2725, %v4980
      %v5005 = vmul.f32 %v2729, %v4975
      %v5006 = vmul.f32 %v2731, %v4976
      %v5007 = vmul.f32 %v2735, %v4977
      %v5008 = vmul.f32 %v2737, %v4978
      %v5009 = vmul.f32 %v2741, %v4979
      %v5010 = vmul.f32 %v2743, %v4980
      %v5011 = vmul.f32 %v2747, %v4975
      %v5012 = vmul.f32 %v2749, %v4976
      %v5013 = vmul.f32 %v2753, %v4977
      %v5014 = vmul.f32 %v2755, %v4978
      %v5015 = vmul.f32 %v2759, %v4979
      %v5016 = vmul.f32 %v2761, %v4980
      %v5017 = vmul.f32 %v2765, %v4975
      %v5018 = vmul.f32 %v2767, %v4976
      %v5019 = vmul.f32 %v2771, %v4977
      %v5020 = vmul.f32 %v2773, %v4978
      %v5021 = vmul.f32 %v2777, %v4979
      %v5022 = vmul.f32 %v2779, %v4980
      %v5023 = vmul.f32 %v2783, %v4975
      %v5024 = vmul.f32 %v2785, %v4976
      %v5025 = vmul.f32 %v2789, %v4977
      %v5026 = vmul.f32 %v2791, %v4978
      %v5027 = vmul.f32 %v2795, %v4979
      %v5028 = vmul.f32 %v2797, %v4980
      %v5029 = vadd.f32 %v4981, %v4983
      %v5030 = vadd.f32 %v5029, %v4985
      %v5031 = vrot.slane %v5030, 4
      %v5032 = vadd.f32 %v5030, %v5031
      %v5033 = vrot.slane %v5032, 2
      %v5034 = vadd.f32 %v5032, %v5033
      %v5035 = vrot.slane %v5034, 1
      %v5036 = vadd.f32 %v5034, %v5035
      %v5037 = vadd.f32 %v4982, %v4984
      %v5038 = vadd.f32 %v5037, %v4986
      %v5039 = vrot.slane %v5038, 4
      %v5040 = vadd.f32 %v5038, %v5039
      %v5041 = vrot.slane %v5040, 2
      %v5042 = vadd.f32 %v5040, %v5041
      %v5043 = vrot.slane %v5042, 1
      %v5044 = vadd.f32 %v5042, %v5043
      %v5045 = vadd.f32 %v4987, %v4989
      %v5046 = vadd.f32 %v5045, %v4991
      %v5047 = vrot.slane %v5046, 4
      %v5048 = vadd.f32 %v5046, %v5047
      %v5049 = vrot.slane %v5048, 2
      %v5050 = vadd.f32 %v5048, %v5049
      %v5051 = vrot.slane %v5050, 1
      %v5052 = vadd.f32 %v5050, %v5051
      %v5053 = vadd.f32 %v4988, %v4990
      %v5054 = vadd.f32 %v5053, %v4992
      %v5055 = vrot.slane %v5054, 4
      %v5056 = vadd.f32 %v5054, %v5055
      %v5057 = vrot.slane %v5056, 2
      %v5058 = vadd.f32 %v5056, %v5057
      %v5059 = vrot.slane %v5058, 1
      %v5060 = vadd.f32 %v5058, %v5059
      %v5061 = vadd.f32 %v4993, %v4995
      %v5062 = vadd.f32 %v5061, %v4997
      %v5063 = vrot.slane %v5062, 4
      %v5064 = vadd.f32 %v5062, %v5063
      %v5065 = vrot.slane %v5064, 2
      %v5066 = vadd.f32 %v5064, %v5065
      %v5067 = vrot.slane %v5066, 1
      %v5068 = vadd.f32 %v5066, %v5067
      %v5069 = vadd.f32 %v4994, %v4996
      %v5070 = vadd.f32 %v5069, %v4998
      %v5071 = vrot.slane %v5070, 4
      %v5072 = vadd.f32 %v5070, %v5071
      %v5073 = vrot.slane %v5072, 2
      %v5074 = vadd.f32 %v5072, %v5073
      %v5075 = vrot.slane %v5074, 1
      %v5076 = vadd.f32 %v5074, %v5075
      %v5077 = vadd.f32 %v4999, %v5001
      %v5078 = vadd.f32 %v5077, %v5003
      %v5079 = vrot.slane %v5078, 4
      %v5080 = vadd.f32 %v5078, %v5079
      %v5081 = vrot.slane %v5080, 2
      %v5082 = vadd.f32 %v5080, %v5081
      %v5083 = vrot.slane %v5082, 1
      %v5084 = vadd.f32 %v5082, %v5083
      %v5085 = vadd.f32 %v5000, %v5002
      %v5086 = vadd.f32 %v5085, %v5004
      %v5087 = vrot.slane %v5086, 4
      %v5088 = vadd.f32 %v5086, %v5087
      %v5089 = vrot.slane %v5088, 2
      %v5090 = vadd.f32 %v5088, %v5089
      %v5091 = vrot.slane %v5090, 1
      %v5092 = vadd.f32 %v5090, %v5091
      %v5093 = vadd.f32 %v5005, %v5007
      %v5094 = vadd.f32 %v5093, %v5009
      %v5095 = vrot.slane %v5094, 4
      %v5096 = vadd.f32 %v5094, %v5095
      %v5097 = vrot.slane %v5096, 2
      %v5098 = vadd.f32 %v5096, %v5097
      %v5099 = vrot.slane %v5098, 1
      %v5100 = vadd.f32 %v5098, %v5099
      %v5101 = vadd.f32 %v5006, %v5008
      %v5102 = vadd.f32 %v5101, %v5010
      %v5103 = vrot.slane %v5102, 4
      %v5104 = vadd.f32 %v5102, %v5103
      %v5105 = vrot.slane %v5104, 2
      %v5106 = vadd.f32 %v5104, %v5105
      %v5107 = vrot.slane %v5106, 1
      %v5108 = vadd.f32 %v5106, %v5107
      %v5109 = vadd.f32 %v5011, %v5013
      %v5110 = vadd.f32 %v5109, %v5015
      %v5111 = vrot.slane %v5110, 4
      %v5112 = vadd.f32 %v5110, %v5111
      %v5113 = vrot.slane %v5112, 2
      %v5114 = vadd.f32 %v5112, %v5113
      %v5115 = vrot.slane %v5114, 1
      %v5116 = vadd.f32 %v5114, %v5115
      %v5117 = vadd.f32 %v5012, %v5014
      %v5118 = vadd.f32 %v5117, %v5016
      %v5119 = vrot.slane %v5118, 4
      %v5120 = vadd.f32 %v5118, %v5119
      %v5121 = vrot.slane %v5120, 2
      %v5122 = vadd.f32 %v5120, %v5121
      %v5123 = vrot.slane %v5122, 1
      %v5124 = vadd.f32 %v5122, %v5123
      %v5125 = vadd.f32 %v5017, %v5019
      %v5126 = vadd.f32 %v5125, %v5021
      %v5127 = vrot.slane %v5126, 4
      %v5128 = vadd.f32 %v5126, %v5127
      %v5129 = vrot.slane %v5128, 2
      %v5130 = vadd.f32 %v5128, %v5129
      %v5131 = vrot.slane %v5130, 1
      %v5132 = vadd.f32 %v5130, %v5131
      %v5133 = vadd.f32 %v5018, %v5020
      %v5134 = vadd.f32 %v5133, %v5022
      %v5135 = vrot.slane %v5134, 4
      %v5136 = vadd.f32 %v5134, %v5135
      %v5137 = vrot.slane %v5136, 2
      %v5138 = vadd.f32 %v5136, %v5137
      %v5139 = vrot.slane %v5138, 1
      %v5140 = vadd.f32 %v5138, %v5139
      %v5141 = vadd.f32 %v5023, %v5025
      %v5142 = vadd.f32 %v5141, %v5027
      %v5143 = vrot.slane %v5142, 4
      %v5144 = vadd.f32 %v5142, %v5143
      %v5145 = vrot.slane %v5144, 2
      %v5146 = vadd.f32 %v5144, %v5145
      %v5147 = vrot.slane %v5146, 1
      %v5148 = vadd.f32 %v5146, %v5147
      %v5149 = vadd.f32 %v5024, %v5026
      %v5150 = vadd.f32 %v5149, %v5028
      %v5151 = vrot.slane %v5150, 4
      %v5152 = vadd.f32 %v5150, %v5151
      %v5153 = vrot.slane %v5152, 2
      %v5154 = vadd.f32 %v5152, %v5153
      %v5155 = vrot.slane %v5154, 1
      %v5156 = vadd.f32 %v5154, %v5155
      %v5173 = vsel %vm3262, %v5052, %v5036
      %v5174 = vsel %vm3264, %v5068, %v5173
      %v5175 = vsel %vm3266, %v5084, %v5174
      %v5176 = vsel %vm3268, %v5100, %v5175
      %v5177 = vsel %vm3270, %v5116, %v5176
      %v5178 = vsel %vm3272, %v5132, %v5177
      %v5179 = vsel %vm3274, %v5148, %v5178
      %v5180 = vsel %vm3262, %v5060, %v5044
      %v5181 = vsel %vm3264, %v5076, %v5180
      %v5182 = vsel %vm3266, %v5092, %v5181
      %v5183 = vsel %vm3268, %v5108, %v5182
      %v5184 = vsel %vm3270, %v5124, %v5183
      %v5185 = vsel %vm3272, %v5140, %v5184
      %v5186 = vsel %vm3274, %v5156, %v5185
      %5189 = vst [vmem:[#allocation2 + $0x70] sm:$0xff] %v5179
      %5190 = vst [vmem:[#allocation2 + $0x78] sm:$0xff] %v5186
      %v5191 = vlaneseq
      %v5192 = vshrl.u32 %v5191, 7
      %v5193 = vsub.s32 0, %v5192
      %v5194 = vrot.slane %v423, %v5193
      %v5195 = vlaneseq
      %v5196 = vshrl.u32 %v5195, 7
      %v5197 = vsub.s32 0, %v5196
      %v5198 = vrot.slane %v424, %v5197
      %vm5199 = vcmp.eq.s32.totalorder %v438, %v5194
      %vm5200 = vcmp.eq.s32.totalorder %v438, %v5198
      %vm5201 = vcmp.eq.s32.totalorder %v439, %v5194
      %vm5202 = vcmp.eq.s32.totalorder %v439, %v5198
      %vm5203 = vcmp.eq.s32.totalorder %v440, %v5194
      %vm5204 = vcmp.eq.s32.totalorder %v440, %v5198
      %v5205 = vlaneseq
      %v5206 = vshrl.u32 %v5205, 7
      %v5207 = vsub.s32 0, %v5206
      %v5208 = vrot.slane %v395, %v5207
      %v5209 = vlaneseq
      %v5210 = vshrl.u32 %v5209, 7
      %v5211 = vsub.s32 0, %v5210
      %v5212 = vrot.slane %v396, %v5211
      %v5213 = vsel %vm5199, %v5208, 0.0
      %v5214 = vsel %vm5200, %v5212, 0.0
      %v5215 = vsel %vm5201, %v5208, 0.0
      %v5216 = vsel %vm5202, %v5212, 0.0
      %v5217 = vsel %vm5203, %v5208, 0.0
      %v5218 = vsel %vm5204, %v5212, 0.0
      %v5219 = vlaneseq
      %v5220 = vshrl.u32 %v5219, 7
      %v5221 = vsub.s32 0, %v5220
      %v5222 = vrot.slane %v427, %v5221
      %v5223 = vlaneseq
      %v5224 = vshrl.u32 %v5223, 7
      %v5225 = vsub.s32 0, %v5224
      %v5226 = vrot.slane %v428, %v5225
      %vm5227 = vcmp.eq.s32.totalorder %v438, %v5222
      %vm5228 = vcmp.eq.s32.totalorder %v438, %v5226
      %vm5229 = vcmp.eq.s32.totalorder %v439, %v5222
      %vm5230 = vcmp.eq.s32.totalorder %v439, %v5226
      %vm5231 = vcmp.eq.s32.totalorder %v440, %v5222
      %vm5232 = vcmp.eq.s32.totalorder %v440, %v5226
      %v5233 = vlaneseq
      %v5234 = vshrl.u32 %v5233, 7
      %v5235 = vsub.s32 0, %v5234
      %v5236 = vrot.slane %v403, %v5235
      %v5237 = vlaneseq
      %v5238 = vshrl.u32 %v5237, 7
      %v5239 = vsub.s32 0, %v5238
      %v5240 = vrot.slane %v404, %v5239
      %v5241 = vsel %vm5227, %v5236, 0.0
      %v5242 = vsel %vm5228, %v5240, 0.0
      %v5243 = vsel %vm5229, %v5236, 0.0
      %v5244 = vsel %vm5230, %v5240, 0.0
      %v5245 = vsel %vm5231, %v5236, 0.0
      %v5246 = vsel %vm5232, %v5240, 0.0
      %v5247 = vadd.f32 %v5213, %v5241
      %v5248 = vadd.f32 %v5214, %v5242
      %v5249 = vadd.f32 %v5215, %v5243
      %v5250 = vadd.f32 %v5216, %v5244
      %v5251 = vadd.f32 %v5217, %v5245
      %v5252 = vadd.f32 %v5218, %v5246
      %v5253 = vmul.f32 %v2866, %v5247
      %v5254 = vmul.f32 %v2868, %v5248
      %v5255 = vmul.f32 %v2872, %v5249
      %v5256 = vmul.f32 %v2874, %v5250
      %v5257 = vmul.f32 %v2878, %v5251
      %v5258 = vmul.f32 %v2880, %v5252
      %v5259 = vmul.f32 %v2884, %v5247
      %v5260 = vmul.f32 %v2886, %v5248
      %v5261 = vmul.f32 %v2890, %v5249
      %v5262 = vmul.f32 %v2892, %v5250
      %v5263 = vmul.f32 %v2896, %v5251
      %v5264 = vmul.f32 %v2898, %v5252
      %v5265 = vmul.f32 %v2902, %v5247
      %v5266 = vmul.f32 %v2904, %v5248
      %v5267 = vmul.f32 %v2908, %v5249
      %v5268 = vmul.f32 %v2910, %v5250
      %v5269 = vmul.f32 %v2914, %v5251
      %v5270 = vmul.f32 %v2916, %v5252
      %v5271 = vmul.f32 %v2920, %v5247
      %v5272 = vmul.f32 %v2922, %v5248
      %v5273 = vmul.f32 %v2926, %v5249
      %v5274 = vmul.f32 %v2928, %v5250
      %v5275 = vmul.f32 %v2932, %v5251
      %v5276 = vmul.f32 %v2934, %v5252
      %v5277 = vmul.f32 %v2938, %v5247
      %v5278 = vmul.f32 %v2940, %v5248
      %v5279 = vmul.f32 %v2944, %v5249
      %v5280 = vmul.f32 %v2946, %v5250
      %v5281 = vmul.f32 %v2950, %v5251
      %v5282 = vmul.f32 %v2952, %v5252
      %v5283 = vmul.f32 %v2956, %v5247
      %v5284 = vmul.f32 %v2958, %v5248
      %v5285 = vmul.f32 %v2962, %v5249
      %v5286 = vmul.f32 %v2964, %v5250
      %v5287 = vmul.f32 %v2968, %v5251
      %v5288 = vmul.f32 %v2970, %v5252
      %v5289 = vmul.f32 %v2974, %v5247
      %v5290 = vmul.f32 %v2976, %v5248
      %v5291 = vmul.f32 %v2980, %v5249
      %v5292 = vmul.f32 %v2982, %v5250
      %v5293 = vmul.f32 %v2986, %v5251
      %v5294 = vmul.f32 %v2988, %v5252
      %v5295 = vmul.f32 %v2992, %v5247
      %v5296 = vmul.f32 %v2994, %v5248
      %v5297 = vmul.f32 %v2998, %v5249
      %v5298 = vmul.f32 %v3000, %v5250
      %v5299 = vmul.f32 %v3004, %v5251
      %v5300 = vmul.f32 %v3006, %v5252
      %v5301 = vadd.f32 %v5253, %v5255
      %v5302 = vadd.f32 %v5301, %v5257
      %v5303 = vrot.slane %v5302, 4
      %v5304 = vadd.f32 %v5302, %v5303
      %v5305 = vrot.slane %v5304, 2
      %v5306 = vadd.f32 %v5304, %v5305
      %v5307 = vrot.slane %v5306, 1
      %v5308 = vadd.f32 %v5306, %v5307
      %v5309 = vadd.f32 %v5254, %v5256
      %v5310 = vadd.f32 %v5309, %v5258
      %v5311 = vrot.slane %v5310, 4
      %v5312 = vadd.f32 %v5310, %v5311
      %v5313 = vrot.slane %v5312, 2
      %v5314 = vadd.f32 %v5312, %v5313
      %v5315 = vrot.slane %v5314, 1
      %v5316 = vadd.f32 %v5314, %v5315
      %v5317 = vadd.f32 %v5259, %v5261
      %v5318 = vadd.f32 %v5317, %v5263
      %v5319 = vrot.slane %v5318, 4
      %v5320 = vadd.f32 %v5318, %v5319
      %v5321 = vrot.slane %v5320, 2
      %v5322 = vadd.f32 %v5320, %v5321
      %v5323 = vrot.slane %v5322, 1
      %v5324 = vadd.f32 %v5322, %v5323
      %v5325 = vadd.f32 %v5260, %v5262
      %v5326 = vadd.f32 %v5325, %v5264
      %v5327 = vrot.slane %v5326, 4
      %v5328 = vadd.f32 %v5326, %v5327
      %v5329 = vrot.slane %v5328, 2
      %v5330 = vadd.f32 %v5328, %v5329
      %v5331 = vrot.slane %v5330, 1
      %v5332 = vadd.f32 %v5330, %v5331
      %v5333 = vadd.f32 %v5265, %v5267
      %v5334 = vadd.f32 %v5333, %v5269
      %v5335 = vrot.slane %v5334, 4
      %v5336 = vadd.f32 %v5334, %v5335
      %v5337 = vrot.slane %v5336, 2
      %v5338 = vadd.f32 %v5336, %v5337
      %v5339 = vrot.slane %v5338, 1
      %v5340 = vadd.f32 %v5338, %v5339
      %v5341 = vadd.f32 %v5266, %v5268
      %v5342 = vadd.f32 %v5341, %v5270
      %v5343 = vrot.slane %v5342, 4
      %v5344 = vadd.f32 %v5342, %v5343
      %v5345 = vrot.slane %v5344, 2
      %v5346 = vadd.f32 %v5344, %v5345
      %v5347 = vrot.slane %v5346, 1
      %v5348 = vadd.f32 %v5346, %v5347
      %v5349 = vadd.f32 %v5271, %v5273
      %v5350 = vadd.f32 %v5349, %v5275
      %v5351 = vrot.slane %v5350, 4
      %v5352 = vadd.f32 %v5350, %v5351
      %v5353 = vrot.slane %v5352, 2
      %v5354 = vadd.f32 %v5352, %v5353
      %v5355 = vrot.slane %v5354, 1
      %v5356 = vadd.f32 %v5354, %v5355
      %v5357 = vadd.f32 %v5272, %v5274
      %v5358 = vadd.f32 %v5357, %v5276
      %v5359 = vrot.slane %v5358, 4
      %v5360 = vadd.f32 %v5358, %v5359
      %v5361 = vrot.slane %v5360, 2
      %v5362 = vadd.f32 %v5360, %v5361
      %v5363 = vrot.slane %v5362, 1
      %v5364 = vadd.f32 %v5362, %v5363
      %v5365 = vadd.f32 %v5277, %v5279
      %v5366 = vadd.f32 %v5365, %v5281
      %v5367 = vrot.slane %v5366, 4
      %v5368 = vadd.f32 %v5366, %v5367
      %v5369 = vrot.slane %v5368, 2
      %v5370 = vadd.f32 %v5368, %v5369
      %v5371 = vrot.slane %v5370, 1
      %v5372 = vadd.f32 %v5370, %v5371
      %v5373 = vadd.f32 %v5278, %v5280
      %v5374 = vadd.f32 %v5373, %v5282
      %v5375 = vrot.slane %v5374, 4
      %v5376 = vadd.f32 %v5374, %v5375
      %v5377 = vrot.slane %v5376, 2
      %v5378 = vadd.f32 %v5376, %v5377
      %v5379 = vrot.slane %v5378, 1
      %v5380 = vadd.f32 %v5378, %v5379
      %v5381 = vadd.f32 %v5283, %v5285
      %v5382 = vadd.f32 %v5381, %v5287
      %v5383 = vrot.slane %v5382, 4
      %v5384 = vadd.f32 %v5382, %v5383
      %v5385 = vrot.slane %v5384, 2
      %v5386 = vadd.f32 %v5384, %v5385
      %v5387 = vrot.slane %v5386, 1
      %v5388 = vadd.f32 %v5386, %v5387
      %v5389 = vadd.f32 %v5284, %v5286
      %v5390 = vadd.f32 %v5389, %v5288
      %v5391 = vrot.slane %v5390, 4
      %v5392 = vadd.f32 %v5390, %v5391
      %v5393 = vrot.slane %v5392, 2
      %v5394 = vadd.f32 %v5392, %v5393
      %v5395 = vrot.slane %v5394, 1
      %v5396 = vadd.f32 %v5394, %v5395
      %v5397 = vadd.f32 %v5289, %v5291
      %v5398 = vadd.f32 %v5397, %v5293
      %v5399 = vrot.slane %v5398, 4
      %v5400 = vadd.f32 %v5398, %v5399
      %v5401 = vrot.slane %v5400, 2
      %v5402 = vadd.f32 %v5400, %v5401
      %v5403 = vrot.slane %v5402, 1
      %v5404 = vadd.f32 %v5402, %v5403
      %v5405 = vadd.f32 %v5290, %v5292
      %v5406 = vadd.f32 %v5405, %v5294
      %v5407 = vrot.slane %v5406, 4
      %v5408 = vadd.f32 %v5406, %v5407
      %v5409 = vrot.slane %v5408, 2
      %v5410 = vadd.f32 %v5408, %v5409
      %v5411 = vrot.slane %v5410, 1
      %v5412 = vadd.f32 %v5410, %v5411
      %v5413 = vadd.f32 %v5295, %v5297
      %v5414 = vadd.f32 %v5413, %v5299
      %v5415 = vrot.slane %v5414, 4
      %v5416 = vadd.f32 %v5414, %v5415
      %v5417 = vrot.slane %v5416, 2
      %v5418 = vadd.f32 %v5416, %v5417
      %v5419 = vrot.slane %v5418, 1
      %v5420 = vadd.f32 %v5418, %v5419
      %v5421 = vadd.f32 %v5296, %v5298
      %v5422 = vadd.f32 %v5421, %v5300
      %v5423 = vrot.slane %v5422, 4
      %v5424 = vadd.f32 %v5422, %v5423
      %v5425 = vrot.slane %v5424, 2
      %v5426 = vadd.f32 %v5424, %v5425
      %v5427 = vrot.slane %v5426, 1
      %v5428 = vadd.f32 %v5426, %v5427
      %v5445 = vsel %vm3262, %v5324, %v5308
      %v5446 = vsel %vm3264, %v5340, %v5445
      %v5447 = vsel %vm3266, %v5356, %v5446
      %v5448 = vsel %vm3268, %v5372, %v5447
      %v5449 = vsel %vm3270, %v5388, %v5448
      %v5450 = vsel %vm3272, %v5404, %v5449
      %v5451 = vsel %vm3274, %v5420, %v5450
      %v5452 = vsel %vm3262, %v5332, %v5316
      %v5453 = vsel %vm3264, %v5348, %v5452
      %v5454 = vsel %vm3266, %v5364, %v5453
      %v5455 = vsel %vm3268, %v5380, %v5454
      %v5456 = vsel %vm3270, %v5396, %v5455
      %v5457 = vsel %vm3272, %v5412, %v5456
      %v5458 = vsel %vm3274, %v5428, %v5457
      %5461 = vst [vmem:[#allocation2 + $0x80] sm:$0xff] %v5451
      %5462 = vst [vmem:[#allocation2 + $0x88] sm:$0xff] %v5458
      %v5463 = vld [vmem:[%s3] sm:$0xff]
      %v5464 = vld [vmem:[#allocation2] sm:$0xff]
      %v5465 = vld [vmem:[#allocation2 + $0x8] sm:$0xff]
      %v5466 = vld [vmem:[#allocation2 + $0x10] sm:$0xff]
      %v5467 = vld [vmem:[#allocation2 + $0x18] sm:$0xff]
      %v5468 = vld [vmem:[#allocation2 + $0x20] sm:$0xff]
      %v5469 = vld [vmem:[#allocation2 + $0x28] sm:$0xff]
      %v5470 = vld [vmem:[#allocation2 + $0x30] sm:$0xff]
      %v5471 = vld [vmem:[#allocation2 + $0x38] sm:$0xff]
      %v5472 = vld [vmem:[#allocation2 + $0x40] sm:$0xff]
      %v5473 = vld [vmem:[#allocation2 + $0x48] sm:$0xff]
      %v5474 = vld [vmem:[#allocation2 + $0x50] sm:$0xff]
      %v5475 = vld [vmem:[#allocation2 + $0x58] sm:$0xff]
      %v5476 = vld [vmem:[#allocation2 + $0x60] sm:$0xff]
      %v5477 = vld [vmem:[#allocation2 + $0x68] sm:$0xff]
      %v5478 = vld [vmem:[#allocation2 + $0x70] sm:$0xff]
      %v5479 = vld [vmem:[#allocation2 + $0x78] sm:$0xff]
      %v5480 = vld [vmem:[#allocation2 + $0x80] sm:$0xff]
      %v5481 = vld [vmem:[#allocation2 + $0x88] sm:$0xff]
      %vm5482 = vcmask 588800
      %v5484 = vsel %vm5482, %v5463, 0
      %5486 = vmatprep.subr.mxu0 %v5465
      %5487 = vmatpush1.msra.mxu0 %v5464
      %5488 = vmatprep.subr.mxu0 %v5467
      %5489 = vmatpush1.msra.mxu0 %v5466
      %5490 = vmatprep.subr.mxu0 %v5469
      %5491 = vmatpush1.msra.mxu0 %v5468
      %5492 = vmatprep.subr.mxu0 %v5471
      %5493 = vmatpush1.msra.mxu0 %v5470
      %5494 = vmatprep.subr.mxu0 %v5473
      %5495 = vmatpush1.msra.mxu0 %v5472
      %5496 = vmatprep.subr.mxu0 %v5475
      %5497 = vmatpush1.msra.mxu0 %v5474
      %5498 = vmatprep.subr.mxu0 %v5477
      %5499 = vmatpush1.msra.mxu0 %v5476
      %5500 = vmatprep.subr.mxu0 %v5479
      %5501 = vmatpush1.msra.mxu0 %v5478
      %5502 = vmatprep.subr.mxu0 %v5481
      %5503 = vmatpush1.msra.mxu0 %v5480
      %5504 = vmatprep.subr.mxu0 0.0
      %5505 = vmatpush1.msra.mxu0 0.0
      %5506 = vmatprep.subr.mxu0 0.0
      %5507 = vmatpush1.msra.mxu0 0.0
      %5508 = vmatprep.subr.mxu0 0.0
      %5509 = vmatpush1.msra.mxu0 0.0
      %5510 = vmatprep.subr.mxu0 0.0
      %5511 = vmatpush1.msra.mxu0 0.0
      %5512 = vmatprep.subr.mxu0 0.0
      %5513 = vmatpush1.msra.mxu0 0.0
      %5514 = vmatprep.subr.mxu0 0.0
      %5515 = vmatpush1.msra.mxu0 0.0
      %5516 = vmatprep.subr.mxu0 0.0
      %5517 = vmatpush1.msra.mxu0 0.0
      %5518 = vmatprep.subr.mxu0 0.0
      %5519 = vmatpush1.msra.mxu0 0.0
      %5520 = vmatprep.subr.mxu0 0.0
      %5521 = vmatpush1.msra.mxu0 0.0
      %5522 = vmatprep.subr.mxu0 0.0
      %5523 = vmatpush1.msra.mxu0 0.0
      %5524 = vmatprep.subr.mxu0 0.0
      %5525 = vmatpush1.msra.mxu0 0.0
      %5526 = vmatprep.subr.mxu0 0.0
      %5527 = vmatpush1.msra.mxu0 0.0
      %5528 = vmatprep.subr.mxu0 0.0
      %5529 = vmatpush1.msra.mxu0 0.0
      %5530 = vmatprep.subr.mxu0 0.0
      %5531 = vmatpush1.msra.mxu0 0.0
      %5532 = vmatprep.subr.mxu0 0.0
      %5533 = vmatpush1.msra.mxu0 0.0
      %5534 = vmatprep.subr.mxu0 0.0
      %5535 = vmatpush1.msra.mxu0 0.0
      %5536 = vmatprep.subr.mxu0 0.0
      %5537 = vmatpush1.msra.mxu0 0.0
      %5538 = vmatprep.subr.mxu0 0.0
      %5539 = vmatpush1.msra.mxu0 0.0
      %5540 = vmatprep.subr.mxu0 0.0
      %5541 = vmatpush1.msra.mxu0 0.0
      %5542 = vmatprep.subr.mxu0 0.0
      %5543 = vmatpush1.msra.mxu0 0.0
      %5544 = vmatprep.subr.mxu0 0.0
      %5545 = vmatpush1.msra.mxu0 0.0
      %5546 = vmatprep.subr.mxu0 0.0
      %5547 = vmatpush1.msra.mxu0 0.0
      %5548 = vmatprep.subr.mxu0 0.0
      %5549 = vmatpush1.msra.mxu0 0.0
      %5550 = vmatprep.mubr.f32.mxu0 0.0
      %5551 = vmatmul.mubr.f32.gmra.mrb[0].mxu0 %v5484
      %v5552 = vpop.f32.mrb[0].mxu0
      %v5553 = vadd.f32 0.0, %v5552
      %v5554 = vpop.f32.mrb[0].mxu0
      %v5555 = vadd.f32 0.0, %v5554
      %5556 = vdwg.mxu0
      %v5557 = vmax.f32 %v5553, 0.0
      %v5558 = vmax.f32 %v5555, 0.0
      %5559 = vst [vmem:[%s291] sm:$0xff] %v5557
      %5560 = vst [vmem:[%s291 + $0x8] sm:$0xff] %v5558
      %s5561 = smul.u32 2, %s20
      %p5562 = scmp.lt.s32.totalorder %s19, 1
      %s5563 = scalar_select %p5562, %s19, 1
      %p5564 = scmp.lt.s32.totalorder %s5561, 1
      %s5565 = scalar_select %p5564, %s5561, 1
      %s5566 = smul.addr %s5563, 2
      %s5567 = sadd.s32 %s5565, %s5566
      %s5568 = smul.addr %s5567, 8
      %s5569 = scalar_lea.vmem %s4, %s5568
      // Predicated region
      $region37: #{encoder3conv_pallas.1} parent=35 // pred_check
        %p5570 = pneg %p150
      $region38: #{encoder3conv_pallas.1} parent=35 // pred_check_branch
        %5572 = sbr.rel (%p5570) target = $region40
      $region39: #{encoder3conv_pallas.1} parent=35 // pred_region
        %s5573 = smul.u32 2, %s20
      $region40: #{encoder3conv_pallas.1} parent=35 // pred_fallthru
        _
    $region36: #{encoder3conv_pallas.1} parent=5 // pred_fallthru
      _
    %p5574 = scmp.le.s32.totalorder 2, %s10
    // Predicated region
    $region41: #{encoder3conv_pallas.1} parent=5 // pred_check
      %p5575 = pneg %p5574
    $region42: #{encoder3conv_pallas.1} parent=5 // pred_check_branch
      %5577 = sbr.rel (%p5575) target = $region44
    $region43: #{encoder3conv_pallas.1} parent=5 // pred_region
      %s5578 = ssub.s32 %s10, 2
      // Predicated region
      $region45: #{encoder3conv_pallas.1} parent=43 // pred_check
        %p5579 = pneg %p156
      $region46: #{encoder3conv_pallas.1} parent=43 // pred_check_branch
        %5581 = sbr.rel (%p5579) target = $region48
      $region47: #{encoder3conv_pallas.1} parent=43 // pred_region
        %s5582 = smul.u32 2, %s22
        %p5583 = scmp.lt.s32.totalorder %s21, 1
        %s5584 = scalar_select %p5583, %s21, 1
        %p5585 = scmp.lt.s32.totalorder %s5582, 1
        %s5586 = scalar_select %p5585, %s5582, 1
        %s5587 = smul.addr %s5584, 2
        %s5588 = sadd.s32 %s5586, %s5587
        %s5589 = smul.addr %s5588, 8
        %s5590 = scalar_lea.vmem %s4, %s5589
      $region48: #{encoder3conv_pallas.1} parent=43 // pred_fallthru
        _
    $region44: #{encoder3conv_pallas.1} parent=5 // pred_fallthru
      _
  $region6: #{encoder3conv_pallas.1} parent=0 // loop_footer
    %s14 = sadd.s32 1, %s10
  $region7: #{encoder3conv_pallas.1} parent=0 // loop_footer_branch
    %9 = sbr.rel target = $region3
  $region8: #{encoder3conv_pallas.1} parent=0 // loop_exit
    _

</llo_original>
